<compile_context>
chip_gen: v5e
topology: v5e:2x2
jax: 0.10.0
libtpu: 0.0.40
codegen_flags: <defaults>
</compile_context>

<pallas_src>
import jax
import jax.numpy as jnp
from jax.experimental import pallas as pl
from jax.experimental.pallas import tpu as pltpu


F_TILE_MAX = 128  # frames per grid step (multiple of 8)


# --------------------------------------------------------------------------
# Pallas kernel
# --------------------------------------------------------------------------
def make_speech_embedder_kernel(num_layers, window, stride, hidden, n_frames,
                                f_tile, slab_rows):
    H = hidden
    last = num_layers - 1

    def cell(g, c):
        # One full-width sigmoid pass over (F, 4H); g-gate columns were
        # pre-scaled by 2 in the wrapper, so tanh(x) == 2*sigmoid(2x) - 1.
        sg = jax.nn.sigmoid(g)
        i_g = sg[:, 0 * H:1 * H]
        f_g = sg[:, 1 * H:2 * H]
        g_g = 2.0 * sg[:, 2 * H:3 * H] - 1.0
        o_g = sg[:, 3 * H:4 * H]
        c_new = f_g * c + i_g * g_g
        h_new = o_g * jnp.tanh(c_new)
        return h_new, c_new

    def kernel(*refs):
        # refs layout:
        #   mel, w_ih0, b0, w_hh0, (w_ih, w_hh, b) * (L-1), w_proj, b_proj,
        #   out, gx0_scr, h_scr, gx_scr
        idx = 0
        mel_ref = refs[idx]; idx += 1
        wih0_ref = refs[idx]; idx += 1
        b0_ref = refs[idx]; idx += 1
        whh0_ref = refs[idx]; idx += 1
        upper = []
        for _ in range(num_layers - 1):
            upper.append((refs[idx], refs[idx + 1], refs[idx + 2]))
            idx += 3
        wproj_ref = refs[idx]; bproj_ref = refs[idx + 1]; idx += 2
        out_ref = refs[idx]; idx += 1
        gx0_scr, h_scr, gx_scr = refs[idx], refs[idx + 1], refs[idx + 2]

        i_par = pl.program_id(0)
        j_in = pl.program_id(1)
        tile = i_par * pl.num_programs(1) + j_in
        base = tile * (f_tile * stride)

        # ---- layer-0 input projection: one contiguous slab matmul per tile ----
        slab = mel_ref[pl.ds(base, slab_rows), :]                    # (S, M) bf16
        gx0_scr[...] = jnp.dot(slab, wih0_ref[...],
                               preferred_element_type=jnp.float32) + b0_ref[...]

        # ---- layer 0 recurrence (gx gathered lane-dense from the slab) ------
        whh = whh0_ref[...]
        h = jnp.zeros((f_tile, H), jnp.float32)
        c = jnp.zeros((f_tile, H), jnp.float32)
        for t in range(window):                      # window is small & static
            gx = gx0_scr[pl.ds(t, f_tile, stride=stride), :]         # (F, 4H)
            g = gx + jnp.dot(h.astype(jnp.bfloat16), whh,
                             preferred_element_type=jnp.float32)
            h, c = cell(g, c)
            if last > 0:
                h_scr[t * f_tile:(t + 1) * f_tile, :] = h.astype(jnp.bfloat16)

        # ---- layers 1..L-1: hoisted batched input projection + recurrence ---
        for li, (wih_ref, whh_ref, b_ref) in enumerate(upper, start=1):
            gx_scr[...] = jnp.dot(h_scr[...], wih_ref[...],
                                  preferred_element_type=jnp.float32) + b_ref[...]
            whh = whh_ref[...]
            h = jnp.zeros((f_tile, H), jnp.float32)
            c = jnp.zeros((f_tile, H), jnp.float32)
            for t in range(window):
                g = gx_scr[t * f_tile:(t + 1) * f_tile, :] + jnp.dot(
                    h.astype(jnp.bfloat16), whh,
                    preferred_element_type=jnp.float32)
                h, c = cell(g, c)
                if li < last:
                    h_scr[t * f_tile:(t + 1) * f_tile, :] = h.astype(jnp.bfloat16)

        # ---- projection of last-timestep hidden state (lanes padded to 128) --
        x = jnp.dot(h.astype(jnp.bfloat16), wproj_ref[...],
                    preferred_element_type=jnp.float32) + bproj_ref[...]  # (F, Ep)

        # L2-normalize + (1/n_frames) folded into a single rsqrt scale
        sumsq = jnp.sum(x * x, axis=1, keepdims=True)
        scale = jax.lax.rsqrt(sumsq) * (1.0 / n_frames)

        # mask frames beyond the valid range (tile padding)
        frame_idx = tile * f_tile + jax.lax.broadcasted_iota(
            jnp.int32, (f_tile, 1), 0)
        valid = frame_idx < n_frames
        contrib = jnp.sum(jnp.where(valid, x * scale, 0.0),
                          axis=0, keepdims=True)                      # (1, E_pad)

        @pl.when(j_in == 0)
        def _():
            out_ref[...] = jnp.zeros_like(out_ref)

        out_ref[...] += contrib

    return kernel


# --------------------------------------------------------------------------
# Wrapper (layout plumbing: transpose/pad/g-scale weights + pallas_call)
# --------------------------------------------------------------------------
def speech_embedder_forward(mel, params, hp):
    window = hp["window"]
    stride = hp["stride"]
    H = hp["lstm_hidden"]
    E = hp["emb_dim"]
    L = hp["lstm_layers"]

    M, T = mel.shape
    n_frames = (T - window) // stride + 1

    # frame tiling: big tiles (fill the MXU), split across a parallel axis for v7x
    f_tile = min(F_TILE_MAX, ((n_frames + 7) // 8) * 8)
    total_tiles = pl.cdiv(n_frames, f_tile)
    n_par = 2 if total_tiles >= 2 else 1           # one partial per TensorCore
    n_inner = pl.cdiv(total_tiles, n_par)

    # contiguous mel-row slab each tile needs for its in-kernel layer-0 projection
    slab_rows = (((f_tile - 1) * stride + window + 7) // 8) * 8
    t_need = (n_par * n_inner - 1) * (f_tile * stride) + slab_rows
    t_pad = ((max(t_need, T) + 7) // 8) * 8

    mel_tm = jnp.transpose(mel).astype(jnp.float32)
    mel_tm = jnp.pad(mel_tm, ((0, t_pad - T), (0, 0))).astype(jnp.bfloat16)

    E_pad = ((E + 127) // 128) * 128               # lane-dense output store

    # pre-scale g-gate columns by 2: in-kernel tanh(x) == 2*sigmoid(2x) - 1
    g_scale = jnp.ones((4 * H,), jnp.float32).at[2 * H:3 * H].set(2.0)

    def g2(a):                                     # a: (..., 4H) float32
        return a * g_scale

    inputs = [mel_tm]
    w_ih0, w_hh0, b_ih0, b_hh0 = params["lstm"][0]
    inputs += [
        g2(jnp.transpose(w_ih0)).astype(jnp.bfloat16),        # (M, 4H)
        g2(b_ih0 + b_hh0)[None, :].astype(jnp.float32),       # (1, 4H)
        g2(jnp.transpose(w_hh0)).astype(jnp.bfloat16),        # (H, 4H)
    ]
    for (w_ih, w_hh, b_ih, b_hh) in params["lstm"][1:]:
        inputs += [
            g2(jnp.transpose(w_ih)).astype(jnp.bfloat16),     # (H, 4H)
            g2(jnp.transpose(w_hh)).astype(jnp.bfloat16),     # (H, 4H)
            g2(b_ih + b_hh)[None, :].astype(jnp.float32),     # (1, 4H)
        ]
    wproj_t = jnp.pad(jnp.transpose(params["proj_w"]),
                      ((0, 0), (0, E_pad - E))).astype(jnp.bfloat16)   # (H, E_pad)
    bproj = jnp.pad(params["proj_b"], (0, E_pad - E))[None, :].astype(jnp.float32)
    inputs += [wproj_t, bproj]

    # whole arrays VMEM-resident across the grid (constant index maps)
    in_specs = [pl.BlockSpec(a.shape, lambda i, j: (0, 0)) for a in inputs]
    out_specs = pl.BlockSpec((1, E_pad), lambda i, j: (i, 0))

    kernel = make_speech_embedder_kernel(L, window, stride, H, n_frames,
                                         f_tile, slab_rows)
    partials = pl.pallas_call(
        kernel,
        out_shape=jax.ShapeDtypeStruct((n_par, E_pad), jnp.float32),
        grid_spec=pltpu.PrefetchScalarGridSpec(
            num_scalar_prefetch=0,
            grid=(n_par, n_inner),
            in_specs=in_specs,
            out_specs=out_specs,
            scratch_shapes=[
                pltpu.VMEM((slab_rows, 4 * H), jnp.float32),            # layer-0 gx slab
                pltpu.VMEM((window * f_tile, H), jnp.bfloat16),         # inter-layer h
                pltpu.VMEM((window * f_tile, 4 * H), jnp.float32),      # layers>=1 gx
            ],
        ),
        # leading axis: independent frame super-tiles (v7x: one per TC);
        # trailing axis: accumulation into the per-super-tile partial row.
        compiler_params=pltpu.CompilerParams(
            dimension_semantics=("parallel", "arbitrary"),
            vmem_limit_bytes=32 * 1024 * 1024,
        ),
    )(*inputs)
    # reduce per-core partials in the wrapper
    return jnp.sum(partials, axis=0)[:E]


# --------------------------------------------------------------------------
# Pure-JAX reference (mirrors torch nn.LSTM / nn.Linear math, full f32)
# --------------------------------------------------------------------------
def speech_embedder_reference(mel, params, hp):
    window, stride = hp["window"], hp["stride"]
    H = hp["lstm_hidden"]
    num_mels, T = mel.shape
    n_frames = (T - window) // stride + 1
    frames = jnp.stack(
        [mel[:, f * stride: f * stride + window] for f in range(n_frames)], axis=1
    )
    seq = jnp.transpose(frames, (1, 2, 0)).astype(jnp.float32)   # (F, W, M)

    h = None
    for (w_ih, w_hh, b_ih, b_hh) in params["lstm"]:
        h = jnp.zeros((n_frames, H), jnp.float32)
        c = jnp.zeros((n_frames, H), jnp.float32)
        outs = []
        for t in range(window):
            gates = seq[:, t, :] @ w_ih.T + h @ w_hh.T + b_ih + b_hh
            i_g = jax.nn.sigmoid(gates[:, 0 * H:1 * H])
            f_g = jax.nn.sigmoid(gates[:, 1 * H:2 * H])
            g_g = jnp.tanh(gates[:, 2 * H:3 * H])
            o_g = jax.nn.sigmoid(gates[:, 3 * H:4 * H])
            c = f_g * c + i_g * g_g
            h = o_g * jnp.tanh(c)
            outs.append(h)
        seq = jnp.stack(outs, axis=1)

    x = h @ params["proj_w"].T + params["proj_b"]
    x = x / jnp.sqrt(jnp.sum(x * x, axis=1, keepdims=True))
    return jnp.sum(x, axis=0) / n_frames


# --------------------------------------------------------------------------
# Deterministic parameter construction
# --------------------------------------------------------------------------
def make_params(key, hp):
    M, H, E, L = hp["num_mels"], hp["lstm_hidden"], hp["emb_dim"], hp["lstm_layers"]
    k = 1.0 / jnp.sqrt(jnp.float32(H))
    keys = jax.random.split(key, 4 * L + 2)
    lstm = []
    ki = 0
    for l in range(L):
        in_dim = M if l == 0 else H
        w_ih = jax.random.uniform(keys[ki + 0], (4 * H, in_dim), jnp.float32, -k, k)
        w_hh = jax.random.uniform(keys[ki + 1], (4 * H, H), jnp.float32, -k, k)
        b_ih = jax.random.uniform(keys[ki + 2], (4 * H,), jnp.float32, -k, k)
        b_hh = jax.random.uniform(keys[ki + 3], (4 * H,), jnp.float32, -k, k)
        lstm.append((w_ih, w_hh, b_ih, b_hh))
        ki += 4
    proj_w = jax.random.uniform(keys[ki + 0], (E, H), jnp.float32, -k, k)
    proj_b = jax.random.uniform(keys[ki + 1], (E,), jnp.float32, -k, k)
    return {"lstm": lstm, "proj_w": proj_w, "proj_b": proj_b}


# --------------------------------------------------------------------------
if __name__ == "__main__":
    hp = dict(
        num_mels=16,
        lstm_hidden=32,
        lstm_layers=3,
        emb_dim=16,
        window=8,
        stride=4,
    )
    key = jax.random.PRNGKey(0)
    k_mel, k_params, k_mel2 = jax.random.split(key, 3)
    params = make_params(k_params, hp)

    # Case 1: T=28 -> 6 frames, single tile (exercises the frame-padding mask).
    mel = jax.random.normal(k_mel, (hp["num_mels"], 28), jnp.float32)
    out = jax.block_until_ready(speech_embedder_forward(mel, params, hp))
    ref = speech_embedder_reference(mel, params, hp)
    assert out.shape == (hp["emb_dim"],)
    # bf16 MXU operands in the kernel -> slightly looser tolerance than pure f32
    assert jnp.allclose(out, ref, atol=2e-2, rtol=2e-2), (out, ref)

    # Case 2: T=560 -> 139 frames, f_tile=128, 2 super-tiles
    # (exercises the large-tile path and the parallel partial-sum reduction).
    mel2 = jax.random.normal(k_mel2, (hp["num_mels"], 560), jnp.float32)
    out2 = jax.block_until_ready(speech_embedder_forward(mel2, params, hp))
    ref2 = speech_embedder_reference(mel2, params, hp)
    assert jnp.allclose(out2, ref2, atol=2e-2, rtol=2e-2), (out2, ref2)

    print("KERNEL_OK")
</pallas_src>

<mosaic_0001>
module attributes {stable_mosaic.version = 11 : i64} {
  func.func @kernel(%arg0: i32, %arg1: i32, %arg2: memref<40x16xbf16, #tpu.memory_space<vmem>>, %arg3: memref<16x128xbf16, #tpu.memory_space<vmem>>, %arg4: memref<1x128xf32, #tpu.memory_space<vmem>>, %arg5: memref<32x128xbf16, #tpu.memory_space<vmem>>, %arg6: memref<32x128xbf16, #tpu.memory_space<vmem>>, %arg7: memref<32x128xbf16, #tpu.memory_space<vmem>>, %arg8: memref<1x128xf32, #tpu.memory_space<vmem>>, %arg9: memref<32x128xbf16, #tpu.memory_space<vmem>>, %arg10: memref<32x128xbf16, #tpu.memory_space<vmem>>, %arg11: memref<1x128xf32, #tpu.memory_space<vmem>>, %arg12: memref<32x128xbf16, #tpu.memory_space<vmem>>, %arg13: memref<1x128xf32, #tpu.memory_space<vmem>>, %arg14: memref<1x128xf32, #tpu.memory_space<vmem>>, %arg15: memref<40x128xf32, #tpu.memory_space<vmem>>, %arg16: memref<64x32xbf16, #tpu.memory_space<vmem>>, %arg17: memref<64x128xf32, #tpu.memory_space<vmem>>) attributes {dimension_semantics = [#tpu.dimension_semantics<parallel>, #tpu.dimension_semantics<arbitrary>], iteration_bounds = array<i64: 1, 1>, scalar_prefetch = 0 : i64, scratch_operands = 3 : i64, tpu.core_type = #tpu.core_type<tc>, window_params = [{pipeline_mode = #tpu.pipeline_mode<synchronous>, transform_indices = @transform_0, window_bounds = array<i64: 40, 16>}, {pipeline_mode = #tpu.pipeline_mode<synchronous>, transform_indices = @transform_1, window_bounds = array<i64: 16, 128>}, {pipeline_mode = #tpu.pipeline_mode<synchronous>, transform_indices = @transform_2, window_bounds = array<i64: 1, 128>}, {pipeline_mode = #tpu.pipeline_mode<synchronous>, transform_indices = @transform_3, window_bounds = array<i64: 32, 128>}, {pipeline_mode = #tpu.pipeline_mode<synchronous>, transform_indices = @transform_4, window_bounds = array<i64: 32, 128>}, {pipeline_mode = #tpu.pipeline_mode<synchronous>, transform_indices = @transform_5, window_bounds = array<i64: 32, 128>}, {pipeline_mode = #tpu.pipeline_mode<synchronous>, transform_indices = @transform_6, window_bounds = array<i64: 1, 128>}, {pipeline_mode = #tpu.pipeline_mode<synchronous>, transform_indices = @transform_7, window_bounds = array<i64: 32, 128>}, {pipeline_mode = #tpu.pipeline_mode<synchronous>, transform_indices = @transform_8, window_bounds = array<i64: 32, 128>}, {pipeline_mode = #tpu.pipeline_mode<synchronous>, transform_indices = @transform_9, window_bounds = array<i64: 1, 128>}, {pipeline_mode = #tpu.pipeline_mode<synchronous>, transform_indices = @transform_10, window_bounds = array<i64: 32, 128>}, {pipeline_mode = #tpu.pipeline_mode<synchronous>, transform_indices = @transform_11, window_bounds = array<i64: 1, 128>}, {transform_indices = @transform_12, window_bounds = array<i64: 1, 128>}]} {
    %c1_i32 = arith.constant 1 : i32
    %0 = arith.muli %arg0, %c1_i32 : i32
    %1 = arith.addi %0, %arg1 : i32
    %c32_i32 = arith.constant 32 : i32
    %2 = arith.muli %1, %c32_i32 : i32
    %3 = arith.index_cast %2 : i32 to index
    %c0 = arith.constant 0 : index
    %4 = vector.load %arg2[%3, %c0] : memref<40x16xbf16, #tpu.memory_space<vmem>>, vector<40x16xbf16>
    %c0_0 = arith.constant 0 : index
    %c0_1 = arith.constant 0 : index
    %5 = vector.load %arg3[%c0_0, %c0_1] : memref<16x128xbf16, #tpu.memory_space<vmem>>, vector<16x128xbf16>
    %cst = arith.constant dense<0.000000e+00> : vector<40x128xf32>
    %6 = tpu.matmul %4, %5, %cst {dimension_numbers = #tpu.dot_dimension_numbers<[1], [0], [0], [1], [0, 0, 1, 1], [], []>} : vector<40x16xbf16>, vector<16x128xbf16>, vector<40x128xf32> -> vector<40x128xf32>
    %c0_2 = arith.constant 0 : index
    %c0_3 = arith.constant 0 : index
    %7 = vector.load %arg4[%c0_2, %c0_3] : memref<1x128xf32, #tpu.memory_space<vmem>>, vector<1x128xf32>
    %8 = vector.broadcast %7 : vector<1x128xf32> to vector<40x128xf32>
    %9 = arith.addf %6, %8 : vector<40x128xf32>
    %c0_4 = arith.constant 0 : index
    %c0_5 = arith.constant 0 : index
    %10 = vector.load %arg15[%c0_4, %c0_5] : memref<40x128xf32, #tpu.memory_space<vmem>>, vector<40x128xf32>
    tpu.vector_store %arg15[%c0_4, %c0_5], %9 {strides = array<i32>} : memref<40x128xf32, #tpu.memory_space<vmem>>, vector<40x128xf32>,
    %c0_6 = arith.constant 0 : index
    %c0_7 = arith.constant 0 : index
    %11 = vector.load %arg5[%c0_6, %c0_7] : memref<32x128xbf16, #tpu.memory_space<vmem>>, vector<32x128xbf16>
    %cst_8 = arith.constant 0.000000e+00 : f32
    %12 = vector.broadcast %cst_8 : f32 to vector<8x32xf32>
    %cst_9 = arith.constant 0.000000e+00 : f32
    %13 = vector.broadcast %cst_9 : f32 to vector<8x32xf32>
    %c0_10 = arith.constant 0 : index
    %c0_11 = arith.constant 0 : index
    %14 = tpu.strided_load %arg15[%c0_10, %c0_11] {strides = array<i32: 4, 1>} : memref<40x128xf32, #tpu.memory_space<vmem>>, vector<8x128xf32>
    %15 = arith.truncf %12 : vector<8x32xf32> to vector<8x32xbf16>
    %cst_12 = arith.constant dense<0.000000e+00> : vector<8x128xf32>
    %16 = tpu.matmul %15, %11, %cst_12 {dimension_numbers = #tpu.dot_dimension_numbers<[1], [0], [0], [1], [0, 0, 1, 1], [], []>} : vector<8x32xbf16>, vector<32x128xbf16>, vector<8x128xf32> -> vector<8x128xf32>
    %17 = arith.addf %14, %16 : vector<8x128xf32>
    %18 = arith.negf %17 : vector<8x128xf32>
    %19 = math.exp %18 : vector<8x128xf32>
    %cst_13 = arith.constant 1.000000e+00 : f32
    %20 = vector.broadcast %cst_13 : f32 to vector<8x128xf32>
    %21 = arith.addf %20, %19 : vector<8x128xf32>
    %22 = arith.divf %20, %21 : vector<8x128xf32>
    %23 = vector.extract_strided_slice %22 {offsets = [0, 0], sizes = [8, 32], strides = [1, 1]} : vector<8x128xf32> to vector<8x32xf32>
    %24 = vector.extract_strided_slice %22 {offsets = [0, 32], sizes = [8, 32], strides = [1, 1]} : vector<8x128xf32> to vector<8x32xf32>
    %25 = vector.extract_strided_slice %22 {offsets = [0, 64], sizes = [8, 32], strides = [1, 1]} : vector<8x128xf32> to vector<8x32xf32>
    %cst_14 = arith.constant 2.000000e+00 : f32
    %26 = vector.broadcast %cst_14 : f32 to vector<8x32xf32>
    %27 = arith.mulf %26, %25 : vector<8x32xf32>
    %cst_15 = arith.constant 1.000000e+00 : f32
    %28 = vector.broadcast %cst_15 : f32 to vector<8x32xf32>
    %29 = arith.subf %27, %28 : vector<8x32xf32>
    %30 = vector.extract_strided_slice %22 {offsets = [0, 96], sizes = [8, 32], strides = [1, 1]} : vector<8x128xf32> to vector<8x32xf32>
    %31 = arith.mulf %24, %13 : vector<8x32xf32>
    %32 = arith.mulf %23, %29 : vector<8x32xf32>
    %33 = arith.addf %31, %32 : vector<8x32xf32>
    %34 = math.tanh %33 : vector<8x32xf32>
    %35 = arith.mulf %30, %34 : vector<8x32xf32>
    %36 = arith.truncf %35 : vector<8x32xf32> to vector<8x32xbf16>
    %c0_16 = arith.constant 0 : index
    %c0_17 = arith.constant 0 : index
    %37 = vector.load %arg16[%c0_16, %c0_17] : memref<64x32xbf16, #tpu.memory_space<vmem>>, vector<8x32xbf16>
    tpu.vector_store %arg16[%c0_16, %c0_17], %36 {strides = array<i32>} : memref<64x32xbf16, #tpu.memory_space<vmem>>, vector<8x32xbf16>,
    %c1 = arith.constant 1 : index
    %c0_18 = arith.constant 0 : index
    %38 = tpu.strided_load %arg15[%c1, %c0_18] {strides = array<i32: 4, 1>} : memref<40x128xf32, #tpu.memory_space<vmem>>, vector<8x128xf32>
    %39 = arith.truncf %35 : vector<8x32xf32> to vector<8x32xbf16>
    %cst_19 = arith.constant dense<0.000000e+00> : vector<8x128xf32>
    %40 = tpu.matmul %39, %11, %cst_19 {dimension_numbers = #tpu.dot_dimension_numbers<[1], [0], [0], [1], [0, 0, 1, 1], [], []>} : vector<8x32xbf16>, vector<32x128xbf16>, vector<8x128xf32> -> vector<8x128xf32>
    %41 = arith.addf %38, %40 : vector<8x128xf32>
    %42 = arith.negf %41 : vector<8x128xf32>
    %43 = math.exp %42 : vector<8x128xf32>
    %cst_20 = arith.constant 1.000000e+00 : f32
    %44 = vector.broadcast %cst_20 : f32 to vector<8x128xf32>
    %45 = arith.addf %44, %43 : vector<8x128xf32>
    %46 = arith.divf %44, %45 : vector<8x128xf32>
    %47 = vector.extract_strided_slice %46 {offsets = [0, 0], sizes = [8, 32], strides = [1, 1]} : vector<8x128xf32> to vector<8x32xf32>
    %48 = vector.extract_strided_slice %46 {offsets = [0, 32], sizes = [8, 32], strides = [1, 1]} : vector<8x128xf32> to vector<8x32xf32>
    %49 = vector.extract_strided_slice %46 {offsets = [0, 64], sizes = [8, 32], strides = [1, 1]} : vector<8x128xf32> to vector<8x32xf32>
    %cst_21 = arith.constant 2.000000e+00 : f32
    %50 = vector.broadcast %cst_21 : f32 to vector<8x32xf32>
    %51 = arith.mulf %50, %49 : vector<8x32xf32>
    %cst_22 = arith.constant 1.000000e+00 : f32
    %52 = vector.broadcast %cst_22 : f32 to vector<8x32xf32>
    %53 = arith.subf %51, %52 : vector<8x32xf32>
    %54 = vector.extract_strided_slice %46 {offsets = [0, 96], sizes = [8, 32], strides = [1, 1]} : vector<8x128xf32> to vector<8x32xf32>
    %55 = arith.mulf %48, %33 : vector<8x32xf32>
    %56 = arith.mulf %47, %53 : vector<8x32xf32>
    %57 = arith.addf %55, %56 : vector<8x32xf32>
    %58 = math.tanh %57 : vector<8x32xf32>
    %59 = arith.mulf %54, %58 : vector<8x32xf32>
    %60 = arith.truncf %59 : vector<8x32xf32> to vector<8x32xbf16>
    %c8 = arith.constant 8 : index
    %c0_23 = arith.constant 0 : index
    %61 = vector.load %arg16[%c8, %c0_23] : memref<64x32xbf16, #tpu.memory_space<vmem>>, vector<8x32xbf16>
    tpu.vector_store %arg16[%c8, %c0_23], %60 {strides = array<i32>} : memref<64x32xbf16, #tpu.memory_space<vmem>>, vector<8x32xbf16>,
    %c2 = arith.constant 2 : index
    %c0_24 = arith.constant 0 : index
    %62 = tpu.strided_load %arg15[%c2, %c0_24] {strides = array<i32: 4, 1>} : memref<40x128xf32, #tpu.memory_space<vmem>>, vector<8x128xf32>
    %63 = arith.truncf %59 : vector<8x32xf32> to vector<8x32xbf16>
    %cst_25 = arith.constant dense<0.000000e+00> : vector<8x128xf32>
    %64 = tpu.matmul %63, %11, %cst_25 {dimension_numbers = #tpu.dot_dimension_numbers<[1], [0], [0], [1], [0, 0, 1, 1], [], []>} : vector<8x32xbf16>, vector<32x128xbf16>, vector<8x128xf32> -> vector<8x128xf32>
    %65 = arith.addf %62, %64 : vector<8x128xf32>
    %66 = arith.negf %65 : vector<8x128xf32>
    %67 = math.exp %66 : vector<8x128xf32>
    %cst_26 = arith.constant 1.000000e+00 : f32
    %68 = vector.broadcast %cst_26 : f32 to vector<8x128xf32>
    %69 = arith.addf %68, %67 : vector<8x128xf32>
    %70 = arith.divf %68, %69 : vector<8x128xf32>
    %71 = vector.extract_strided_slice %70 {offsets = [0, 0], sizes = [8, 32], strides = [1, 1]} : vector<8x128xf32> to vector<8x32xf32>
    %72 = vector.extract_strided_slice %70 {offsets = [0, 32], sizes = [8, 32], strides = [1, 1]} : vector<8x128xf32> to vector<8x32xf32>
    %73 = vector.extract_strided_slice %70 {offsets = [0, 64], sizes = [8, 32], strides = [1, 1]} : vector<8x128xf32> to vector<8x32xf32>
    %cst_27 = arith.constant 2.000000e+00 : f32
    %74 = vector.broadcast %cst_27 : f32 to vector<8x32xf32>
    %75 = arith.mulf %74, %73 : vector<8x32xf32>
    %cst_28 = arith.constant 1.000000e+00 : f32
    %76 = vector.broadcast %cst_28 : f32 to vector<8x32xf32>
    %77 = arith.subf %75, %76 : vector<8x32xf32>
    %78 = vector.extract_strided_slice %70 {offsets = [0, 96], sizes = [8, 32], strides = [1, 1]} : vector<8x128xf32> to vector<8x32xf32>
    %79 = arith.mulf %72, %57 : vector<8x32xf32>
    %80 = arith.mulf %71, %77 : vector<8x32xf32>
    %81 = arith.addf %79, %80 : vector<8x32xf32>
    %82 = math.tanh %81 : vector<8x32xf32>
    %83 = arith.mulf %78, %82 : vector<8x32xf32>
    %84 = arith.truncf %83 : vector<8x32xf32> to vector<8x32xbf16>
    %c16 = arith.constant 16 : index
    %c0_29 = arith.constant 0 : index
    %85 = vector.load %arg16[%c16, %c0_29] : memref<64x32xbf16, #tpu.memory_space<vmem>>, vector<8x32xbf16>
    tpu.vector_store %arg16[%c16, %c0_29], %84 {strides = array<i32>} : memref<64x32xbf16, #tpu.memory_space<vmem>>, vector<8x32xbf16>,
    %c3 = arith.constant 3 : index
    %c0_30 = arith.constant 0 : index
    %86 = tpu.strided_load %arg15[%c3, %c0_30] {strides = array<i32: 4, 1>} : memref<40x128xf32, #tpu.memory_space<vmem>>, vector<8x128xf32>
    %87 = arith.truncf %83 : vector<8x32xf32> to vector<8x32xbf16>
    %cst_31 = arith.constant dense<0.000000e+00> : vector<8x128xf32>
    %88 = tpu.matmul %87, %11, %cst_31 {dimension_numbers = #tpu.dot_dimension_numbers<[1], [0], [0], [1], [0, 0, 1, 1], [], []>} : vector<8x32xbf16>, vector<32x128xbf16>, vector<8x128xf32> -> vector<8x128xf32>
    %89 = arith.addf %86, %88 : vector<8x128xf32>
    %90 = arith.negf %89 : vector<8x128xf32>
    %91 = math.exp %90 : vector<8x128xf32>
    %cst_32 = arith.constant 1.000000e+00 : f32
    %92 = vector.broadcast %cst_32 : f32 to vector<8x128xf32>
    %93 = arith.addf %92, %91 : vector<8x128xf32>
    %94 = arith.divf %92, %93 : vector<8x128xf32>
    %95 = vector.extract_strided_slice %94 {offsets = [0, 0], sizes = [8, 32], strides = [1, 1]} : vector<8x128xf32> to vector<8x32xf32>
    %96 = vector.extract_strided_slice %94 {offsets = [0, 32], sizes = [8, 32], strides = [1, 1]} : vector<8x128xf32> to vector<8x32xf32>
    %97 = vector.extract_strided_slice %94 {offsets = [0, 64], sizes = [8, 32], strides = [1, 1]} : vector<8x128xf32> to vector<8x32xf32>
    %cst_33 = arith.constant 2.000000e+00 : f32
    %98 = vector.broadcast %cst_33 : f32 to vector<8x32xf32>
    %99 = arith.mulf %98, %97 : vector<8x32xf32>
    %cst_34 = arith.constant 1.000000e+00 : f32
    %100 = vector.broadcast %cst_34 : f32 to vector<8x32xf32>
    %101 = arith.subf %99, %100 : vector<8x32xf32>
    %102 = vector.extract_strided_slice %94 {offsets = [0, 96], sizes = [8, 32], strides = [1, 1]} : vector<8x128xf32> to vector<8x32xf32>
    %103 = arith.mulf %96, %81 : vector<8x32xf32>
    %104 = arith.mulf %95, %101 : vector<8x32xf32>
    %105 = arith.addf %103, %104 : vector<8x32xf32>
    %106 = math.tanh %105 : vector<8x32xf32>
    %107 = arith.mulf %102, %106 : vector<8x32xf32>
    %108 = arith.truncf %107 : vector<8x32xf32> to vector<8x32xbf16>
    %c24 = arith.constant 24 : index
    %c0_35 = arith.constant 0 : index
    %109 = vector.load %arg16[%c24, %c0_35] : memref<64x32xbf16, #tpu.memory_space<vmem>>, vector<8x32xbf16>
    tpu.vector_store %arg16[%c24, %c0_35], %108 {strides = array<i32>} : memref<64x32xbf16, #tpu.memory_space<vmem>>, vector<8x32xbf16>,
    %c4 = arith.constant 4 : index
    %c0_36 = arith.constant 0 : index
    %110 = tpu.strided_load %arg15[%c4, %c0_36] {strides = array<i32: 4, 1>} : memref<40x128xf32, #tpu.memory_space<vmem>>, vector<8x128xf32>
    %111 = arith.truncf %107 : vector<8x32xf32> to vector<8x32xbf16>
    %cst_37 = arith.constant dense<0.000000e+00> : vector<8x128xf32>
    %112 = tpu.matmul %111, %11, %cst_37 {dimension_numbers = #tpu.dot_dimension_numbers<[1], [0], [0], [1], [0, 0, 1, 1], [], []>} : vector<8x32xbf16>, vector<32x128xbf16>, vector<8x128xf32> -> vector<8x128xf32>
    %113 = arith.addf %110, %112 : vector<8x128xf32>
    %114 = arith.negf %113 : vector<8x128xf32>
    %115 = math.exp %114 : vector<8x128xf32>
    %cst_38 = arith.constant 1.000000e+00 : f32
    %116 = vector.broadcast %cst_38 : f32 to vector<8x128xf32>
    %117 = arith.addf %116, %115 : vector<8x128xf32>
    %118 = arith.divf %116, %117 : vector<8x128xf32>
    %119 = vector.extract_strided_slice %118 {offsets = [0, 0], sizes = [8, 32], strides = [1, 1]} : vector<8x128xf32> to vector<8x32xf32>
    %120 = vector.extract_strided_slice %118 {offsets = [0, 32], sizes = [8, 32], strides = [1, 1]} : vector<8x128xf32> to vector<8x32xf32>
    %121 = vector.extract_strided_slice %118 {offsets = [0, 64], sizes = [8, 32], strides = [1, 1]} : vector<8x128xf32> to vector<8x32xf32>
    %cst_39 = arith.constant 2.000000e+00 : f32
    %122 = vector.broadcast %cst_39 : f32 to vector<8x32xf32>
    %123 = arith.mulf %122, %121 : vector<8x32xf32>
    %cst_40 = arith.constant 1.000000e+00 : f32
    %124 = vector.broadcast %cst_40 : f32 to vector<8x32xf32>
    %125 = arith.subf %123, %124 : vector<8x32xf32>
    %126 = vector.extract_strided_slice %118 {offsets = [0, 96], sizes = [8, 32], strides = [1, 1]} : vector<8x128xf32> to vector<8x32xf32>
    %127 = arith.mulf %120, %105 : vector<8x32xf32>
    %128 = arith.mulf %119, %125 : vector<8x32xf32>
    %129 = arith.addf %127, %128 : vector<8x32xf32>
    %130 = math.tanh %129 : vector<8x32xf32>
    %131 = arith.mulf %126, %130 : vector<8x32xf32>
    %132 = arith.truncf %131 : vector<8x32xf32> to vector<8x32xbf16>
    %c32 = arith.constant 32 : index
    %c0_41 = arith.constant 0 : index
    %133 = vector.load %arg16[%c32, %c0_41] : memref<64x32xbf16, #tpu.memory_space<vmem>>, vector<8x32xbf16>
    tpu.vector_store %arg16[%c32, %c0_41], %132 {strides = array<i32>} : memref<64x32xbf16, #tpu.memory_space<vmem>>, vector<8x32xbf16>,
    %c5 = arith.constant 5 : index
    %c0_42 = arith.constant 0 : index
    %134 = tpu.strided_load %arg15[%c5, %c0_42] {strides = array<i32: 4, 1>} : memref<40x128xf32, #tpu.memory_space<vmem>>, vector<8x128xf32>
    %135 = arith.truncf %131 : vector<8x32xf32> to vector<8x32xbf16>
    %cst_43 = arith.constant dense<0.000000e+00> : vector<8x128xf32>
    %136 = tpu.matmul %135, %11, %cst_43 {dimension_numbers = #tpu.dot_dimension_numbers<[1], [0], [0], [1], [0, 0, 1, 1], [], []>} : vector<8x32xbf16>, vector<32x128xbf16>, vector<8x128xf32> -> vector<8x128xf32>
    %137 = arith.addf %134, %136 : vector<8x128xf32>
    %138 = arith.negf %137 : vector<8x128xf32>
    %139 = math.exp %138 : vector<8x128xf32>
    %cst_44 = arith.constant 1.000000e+00 : f32
    %140 = vector.broadcast %cst_44 : f32 to vector<8x128xf32>
    %141 = arith.addf %140, %139 : vector<8x128xf32>
    %142 = arith.divf %140, %141 : vector<8x128xf32>
    %143 = vector.extract_strided_slice %142 {offsets = [0, 0], sizes = [8, 32], strides = [1, 1]} : vector<8x128xf32> to vector<8x32xf32>
    %144 = vector.extract_strided_slice %142 {offsets = [0, 32], sizes = [8, 32], strides = [1, 1]} : vector<8x128xf32> to vector<8x32xf32>
    %145 = vector.extract_strided_slice %142 {offsets = [0, 64], sizes = [8, 32], strides = [1, 1]} : vector<8x128xf32> to vector<8x32xf32>
    %cst_45 = arith.constant 2.000000e+00 : f32
    %146 = vector.broadcast %cst_45 : f32 to vector<8x32xf32>
    %147 = arith.mulf %146, %145 : vector<8x32xf32>
    %cst_46 = arith.constant 1.000000e+00 : f32
    %148 = vector.broadcast %cst_46 : f32 to vector<8x32xf32>
    %149 = arith.subf %147, %148 : vector<8x32xf32>
    %150 = vector.extract_strided_slice %142 {offsets = [0, 96], sizes = [8, 32], strides = [1, 1]} : vector<8x128xf32> to vector<8x32xf32>
    %151 = arith.mulf %144, %129 : vector<8x32xf32>
    %152 = arith.mulf %143, %149 : vector<8x32xf32>
    %153 = arith.addf %151, %152 : vector<8x32xf32>
    %154 = math.tanh %153 : vector<8x32xf32>
    %155 = arith.mulf %150, %154 : vector<8x32xf32>
    %156 = arith.truncf %155 : vector<8x32xf32> to vector<8x32xbf16>
    %c40 = arith.constant 40 : index
    %c0_47 = arith.constant 0 : index
    %157 = vector.load %arg16[%c40, %c0_47] : memref<64x32xbf16, #tpu.memory_space<vmem>>, vector<8x32xbf16>
    tpu.vector_store %arg16[%c40, %c0_47], %156 {strides = array<i32>} : memref<64x32xbf16, #tpu.memory_space<vmem>>, vector<8x32xbf16>,
    %c6 = arith.constant 6 : index
    %c0_48 = arith.constant 0 : index
    %158 = tpu.strided_load %arg15[%c6, %c0_48] {strides = array<i32: 4, 1>} : memref<40x128xf32, #tpu.memory_space<vmem>>, vector<8x128xf32>
    %159 = arith.truncf %155 : vector<8x32xf32> to vector<8x32xbf16>
    %cst_49 = arith.constant dense<0.000000e+00> : vector<8x128xf32>
    %160 = tpu.matmul %159, %11, %cst_49 {dimension_numbers = #tpu.dot_dimension_numbers<[1], [0], [0], [1], [0, 0, 1, 1], [], []>} : vector<8x32xbf16>, vector<32x128xbf16>, vector<8x128xf32> -> vector<8x128xf32>
    %161 = arith.addf %158, %160 : vector<8x128xf32>
    %162 = arith.negf %161 : vector<8x128xf32>
    %163 = math.exp %162 : vector<8x128xf32>
    %cst_50 = arith.constant 1.000000e+00 : f32
    %164 = vector.broadcast %cst_50 : f32 to vector<8x128xf32>
    %165 = arith.addf %164, %163 : vector<8x128xf32>
    %166 = arith.divf %164, %165 : vector<8x128xf32>
    %167 = vector.extract_strided_slice %166 {offsets = [0, 0], sizes = [8, 32], strides = [1, 1]} : vector<8x128xf32> to vector<8x32xf32>
    %168 = vector.extract_strided_slice %166 {offsets = [0, 32], sizes = [8, 32], strides = [1, 1]} : vector<8x128xf32> to vector<8x32xf32>
    %169 = vector.extract_strided_slice %166 {offsets = [0, 64], sizes = [8, 32], strides = [1, 1]} : vector<8x128xf32> to vector<8x32xf32>
    %cst_51 = arith.constant 2.000000e+00 : f32
    %170 = vector.broadcast %cst_51 : f32 to vector<8x32xf32>
    %171 = arith.mulf %170, %169 : vector<8x32xf32>
    %cst_52 = arith.constant 1.000000e+00 : f32
    %172 = vector.broadcast %cst_52 : f32 to vector<8x32xf32>
    %173 = arith.subf %171, %172 : vector<8x32xf32>
    %174 = vector.extract_strided_slice %166 {offsets = [0, 96], sizes = [8, 32], strides = [1, 1]} : vector<8x128xf32> to vector<8x32xf32>
    %175 = arith.mulf %168, %153 : vector<8x32xf32>
    %176 = arith.mulf %167, %173 : vector<8x32xf32>
    %177 = arith.addf %175, %176 : vector<8x32xf32>
    %178 = math.tanh %177 : vector<8x32xf32>
    %179 = arith.mulf %174, %178 : vector<8x32xf32>
    %180 = arith.truncf %179 : vector<8x32xf32> to vector<8x32xbf16>
    %c48 = arith.constant 48 : index
    %c0_53 = arith.constant 0 : index
    %181 = vector.load %arg16[%c48, %c0_53] : memref<64x32xbf16, #tpu.memory_space<vmem>>, vector<8x32xbf16>
    tpu.vector_store %arg16[%c48, %c0_53], %180 {strides = array<i32>} : memref<64x32xbf16, #tpu.memory_space<vmem>>, vector<8x32xbf16>,
    %c7 = arith.constant 7 : index
    %c0_54 = arith.constant 0 : index
    %182 = tpu.strided_load %arg15[%c7, %c0_54] {strides = array<i32: 4, 1>} : memref<40x128xf32, #tpu.memory_space<vmem>>, vector<8x128xf32>
    %183 = arith.truncf %179 : vector<8x32xf32> to vector<8x32xbf16>
    %cst_55 = arith.constant dense<0.000000e+00> : vector<8x128xf32>
    %184 = tpu.matmul %183, %11, %cst_55 {dimension_numbers = #tpu.dot_dimension_numbers<[1], [0], [0], [1], [0, 0, 1, 1], [], []>} : vector<8x32xbf16>, vector<32x128xbf16>, vector<8x128xf32> -> vector<8x128xf32>
    %185 = arith.addf %182, %184 : vector<8x128xf32>
    %186 = arith.negf %185 : vector<8x128xf32>
    %187 = math.exp %186 : vector<8x128xf32>
    %cst_56 = arith.constant 1.000000e+00 : f32
    %188 = vector.broadcast %cst_56 : f32 to vector<8x128xf32>
    %189 = arith.addf %188, %187 : vector<8x128xf32>
    %190 = arith.divf %188, %189 : vector<8x128xf32>
    %191 = vector.extract_strided_slice %190 {offsets = [0, 0], sizes = [8, 32], strides = [1, 1]} : vector<8x128xf32> to vector<8x32xf32>
    %192 = vector.extract_strided_slice %190 {offsets = [0, 32], sizes = [8, 32], strides = [1, 1]} : vector<8x128xf32> to vector<8x32xf32>
    %193 = vector.extract_strided_slice %190 {offsets = [0, 64], sizes = [8, 32], strides = [1, 1]} : vector<8x128xf32> to vector<8x32xf32>
    %cst_57 = arith.constant 2.000000e+00 : f32
    %194 = vector.broadcast %cst_57 : f32 to vector<8x32xf32>
    %195 = arith.mulf %194, %193 : vector<8x32xf32>
    %cst_58 = arith.constant 1.000000e+00 : f32
    %196 = vector.broadcast %cst_58 : f32 to vector<8x32xf32>
    %197 = arith.subf %195, %196 : vector<8x32xf32>
    %198 = vector.extract_strided_slice %190 {offsets = [0, 96], sizes = [8, 32], strides = [1, 1]} : vector<8x128xf32> to vector<8x32xf32>
    %199 = arith.mulf %192, %177 : vector<8x32xf32>
    %200 = arith.mulf %191, %197 : vector<8x32xf32>
    %201 = arith.addf %199, %200 : vector<8x32xf32>
    %202 = math.tanh %201 : vector<8x32xf32>
    %203 = arith.mulf %198, %202 : vector<8x32xf32>
    %204 = arith.truncf %203 : vector<8x32xf32> to vector<8x32xbf16>
    %c56 = arith.constant 56 : index
    %c0_59 = arith.constant 0 : index
    %205 = vector.load %arg16[%c56, %c0_59] : memref<64x32xbf16, #tpu.memory_space<vmem>>, vector<8x32xbf16>
    tpu.vector_store %arg16[%c56, %c0_59], %204 {strides = array<i32>} : memref<64x32xbf16, #tpu.memory_space<vmem>>, vector<8x32xbf16>,
    %c0_60 = arith.constant 0 : index
    %c0_61 = arith.constant 0 : index
    %206 = vector.load %arg16[%c0_60, %c0_61] : memref<64x32xbf16, #tpu.memory_space<vmem>>, vector<64x32xbf16>
    %c0_62 = arith.constant 0 : index
    %c0_63 = arith.constant 0 : index
    %207 = vector.load %arg6[%c0_62, %c0_63] : memref<32x128xbf16, #tpu.memory_space<vmem>>, vector<32x128xbf16>
    %cst_64 = arith.constant dense<0.000000e+00> : vector<64x128xf32>
    %208 = tpu.matmul %206, %207, %cst_64 {dimension_numbers = #tpu.dot_dimension_numbers<[1], [0], [0], [1], [0, 0, 1, 1], [], []>} : vector<64x32xbf16>, vector<32x128xbf16>, vector<64x128xf32> -> vector<64x128xf32>
    %c0_65 = arith.constant 0 : index
    %c0_66 = arith.constant 0 : index
    %209 = vector.load %arg8[%c0_65, %c0_66] : memref<1x128xf32, #tpu.memory_space<vmem>>, vector<1x128xf32>
    %210 = vector.broadcast %209 : vector<1x128xf32> to vector<64x128xf32>
    %211 = arith.addf %208, %210 : vector<64x128xf32>
    %c0_67 = arith.constant 0 : index
    %c0_68 = arith.constant 0 : index
    %212 = vector.load %arg17[%c0_67, %c0_68] : memref<64x128xf32, #tpu.memory_space<vmem>>, vector<64x128xf32>
    tpu.vector_store %arg17[%c0_67, %c0_68], %211 {strides = array<i32>} : memref<64x128xf32, #tpu.memory_space<vmem>>, vector<64x128xf32>,
    %c0_69 = arith.constant 0 : index
    %c0_70 = arith.constant 0 : index
    %213 = vector.load %arg7[%c0_69, %c0_70] : memref<32x128xbf16, #tpu.memory_space<vmem>>, vector<32x128xbf16>
    %cst_71 = arith.constant 0.000000e+00 : f32
    %214 = vector.broadcast %cst_71 : f32 to vector<8x32xf32>
    %cst_72 = arith.constant 0.000000e+00 : f32
    %215 = vector.broadcast %cst_72 : f32 to vector<8x32xf32>
    %c0_73 = arith.constant 0 : index
    %c0_74 = arith.constant 0 : index
    %216 = vector.load %arg17[%c0_73, %c0_74] : memref<64x128xf32, #tpu.memory_space<vmem>>, vector<8x128xf32>
    %217 = arith.truncf %214 : vector<8x32xf32> to vector<8x32xbf16>
    %cst_75 = arith.constant dense<0.000000e+00> : vector<8x128xf32>
    %218 = tpu.matmul %217, %213, %cst_75 {dimension_numbers = #tpu.dot_dimension_numbers<[1], [0], [0], [1], [0, 0, 1, 1], [], []>} : vector<8x32xbf16>, vector<32x128xbf16>, vector<8x128xf32> -> vector<8x128xf32>
    %219 = arith.addf %216, %218 : vector<8x128xf32>
    %220 = arith.negf %219 : vector<8x128xf32>
    %221 = math.exp %220 : vector<8x128xf32>
    %cst_76 = arith.constant 1.000000e+00 : f32
    %222 = vector.broadcast %cst_76 : f32 to vector<8x128xf32>
    %223 = arith.addf %222, %221 : vector<8x128xf32>
    %224 = arith.divf %222, %223 : vector<8x128xf32>
    %225 = vector.extract_strided_slice %224 {offsets = [0, 0], sizes = [8, 32], strides = [1, 1]} : vector<8x128xf32> to vector<8x32xf32>
    %226 = vector.extract_strided_slice %224 {offsets = [0, 32], sizes = [8, 32], strides = [1, 1]} : vector<8x128xf32> to vector<8x32xf32>
    %227 = vector.extract_strided_slice %224 {offsets = [0, 64], sizes = [8, 32], strides = [1, 1]} : vector<8x128xf32> to vector<8x32xf32>
    %cst_77 = arith.constant 2.000000e+00 : f32
    %228 = vector.broadcast %cst_77 : f32 to vector<8x32xf32>
    %229 = arith.mulf %228, %227 : vector<8x32xf32>
    %cst_78 = arith.constant 1.000000e+00 : f32
    %230 = vector.broadcast %cst_78 : f32 to vector<8x32xf32>
    %231 = arith.subf %229, %230 : vector<8x32xf32>
    %232 = vector.extract_strided_slice %224 {offsets = [0, 96], sizes = [8, 32], strides = [1, 1]} : vector<8x128xf32> to vector<8x32xf32>
    %233 = arith.mulf %226, %215 : vector<8x32xf32>
    %234 = arith.mulf %225, %231 : vector<8x32xf32>
    %235 = arith.addf %233, %234 : vector<8x32xf32>
    %236 = math.tanh %235 : vector<8x32xf32>
    %237 = arith.mulf %232, %236 : vector<8x32xf32>
    %238 = arith.truncf %237 : vector<8x32xf32> to vector<8x32xbf16>
    %c0_79 = arith.constant 0 : index
    %c0_80 = arith.constant 0 : index
    %239 = vector.load %arg16[%c0_79, %c0_80] : memref<64x32xbf16, #tpu.memory_space<vmem>>, vector<8x32xbf16>
    tpu.vector_store %arg16[%c0_79, %c0_80], %238 {strides = array<i32>} : memref<64x32xbf16, #tpu.memory_space<vmem>>, vector<8x32xbf16>,
    %c8_81 = arith.constant 8 : index
    %c0_82 = arith.constant 0 : index
    %240 = vector.load %arg17[%c8_81, %c0_82] : memref<64x128xf32, #tpu.memory_space<vmem>>, vector<8x128xf32>
    %241 = arith.truncf %237 : vector<8x32xf32> to vector<8x32xbf16>
    %cst_83 = arith.constant dense<0.000000e+00> : vector<8x128xf32>
    %242 = tpu.matmul %241, %213, %cst_83 {dimension_numbers = #tpu.dot_dimension_numbers<[1], [0], [0], [1], [0, 0, 1, 1], [], []>} : vector<8x32xbf16>, vector<32x128xbf16>, vector<8x128xf32> -> vector<8x128xf32>
    %243 = arith.addf %240, %242 : vector<8x128xf32>
    %244 = arith.negf %243 : vector<8x128xf32>
    %245 = math.exp %244 : vector<8x128xf32>
    %cst_84 = arith.constant 1.000000e+00 : f32
    %246 = vector.broadcast %cst_84 : f32 to vector<8x128xf32>
    %247 = arith.addf %246, %245 : vector<8x128xf32>
    %248 = arith.divf %246, %247 : vector<8x128xf32>
    %249 = vector.extract_strided_slice %248 {offsets = [0, 0], sizes = [8, 32], strides = [1, 1]} : vector<8x128xf32> to vector<8x32xf32>
    %250 = vector.extract_strided_slice %248 {offsets = [0, 32], sizes = [8, 32], strides = [1, 1]} : vector<8x128xf32> to vector<8x32xf32>
    %251 = vector.extract_strided_slice %248 {offsets = [0, 64], sizes = [8, 32], strides = [1, 1]} : vector<8x128xf32> to vector<8x32xf32>
    %cst_85 = arith.constant 2.000000e+00 : f32
    %252 = vector.broadcast %cst_85 : f32 to vector<8x32xf32>
    %253 = arith.mulf %252, %251 : vector<8x32xf32>
    %cst_86 = arith.constant 1.000000e+00 : f32
    %254 = vector.broadcast %cst_86 : f32 to vector<8x32xf32>
    %255 = arith.subf %253, %254 : vector<8x32xf32>
    %256 = vector.extract_strided_slice %248 {offsets = [0, 96], sizes = [8, 32], strides = [1, 1]} : vector<8x128xf32> to vector<8x32xf32>
    %257 = arith.mulf %250, %235 : vector<8x32xf32>
    %258 = arith.mulf %249, %255 : vector<8x32xf32>
    %259 = arith.addf %257, %258 : vector<8x32xf32>
    %260 = math.tanh %259 : vector<8x32xf32>
    %261 = arith.mulf %256, %260 : vector<8x32xf32>
    %262 = arith.truncf %261 : vector<8x32xf32> to vector<8x32xbf16>
    %c8_87 = arith.constant 8 : index
    %c0_88 = arith.constant 0 : index
    %263 = vector.load %arg16[%c8_87, %c0_88] : memref<64x32xbf16, #tpu.memory_space<vmem>>, vector<8x32xbf16>
    tpu.vector_store %arg16[%c8_87, %c0_88], %262 {strides = array<i32>} : memref<64x32xbf16, #tpu.memory_space<vmem>>, vector<8x32xbf16>,
    %c16_89 = arith.constant 16 : index
    %c0_90 = arith.constant 0 : index
    %264 = vector.load %arg17[%c16_89, %c0_90] : memref<64x128xf32, #tpu.memory_space<vmem>>, vector<8x128xf32>
    %265 = arith.truncf %261 : vector<8x32xf32> to vector<8x32xbf16>
    %cst_91 = arith.constant dense<0.000000e+00> : vector<8x128xf32>
    %266 = tpu.matmul %265, %213, %cst_91 {dimension_numbers = #tpu.dot_dimension_numbers<[1], [0], [0], [1], [0, 0, 1, 1], [], []>} : vector<8x32xbf16>, vector<32x128xbf16>, vector<8x128xf32> -> vector<8x128xf32>
    %267 = arith.addf %264, %266 : vector<8x128xf32>
    %268 = arith.negf %267 : vector<8x128xf32>
    %269 = math.exp %268 : vector<8x128xf32>
    %cst_92 = arith.constant 1.000000e+00 : f32
    %270 = vector.broadcast %cst_92 : f32 to vector<8x128xf32>
    %271 = arith.addf %270, %269 : vector<8x128xf32>
    %272 = arith.divf %270, %271 : vector<8x128xf32>
    %273 = vector.extract_strided_slice %272 {offsets = [0, 0], sizes = [8, 32], strides = [1, 1]} : vector<8x128xf32> to vector<8x32xf32>
    %274 = vector.extract_strided_slice %272 {offsets = [0, 32], sizes = [8, 32], strides = [1, 1]} : vector<8x128xf32> to vector<8x32xf32>
    %275 = vector.extract_strided_slice %272 {offsets = [0, 64], sizes = [8, 32], strides = [1, 1]} : vector<8x128xf32> to vector<8x32xf32>
    %cst_93 = arith.constant 2.000000e+00 : f32
    %276 = vector.broadcast %cst_93 : f32 to vector<8x32xf32>
    %277 = arith.mulf %276, %275 : vector<8x32xf32>
    %cst_94 = arith.constant 1.000000e+00 : f32
    %278 = vector.broadcast %cst_94 : f32 to vector<8x32xf32>
    %279 = arith.subf %277, %278 : vector<8x32xf32>
    %280 = vector.extract_strided_slice %272 {offsets = [0, 96], sizes = [8, 32], strides = [1, 1]} : vector<8x128xf32> to vector<8x32xf32>
    %281 = arith.mulf %274, %259 : vector<8x32xf32>
    %282 = arith.mulf %273, %279 : vector<8x32xf32>
    %283 = arith.addf %281, %282 : vector<8x32xf32>
    %284 = math.tanh %283 : vector<8x32xf32>
    %285 = arith.mulf %280, %284 : vector<8x32xf32>
    %286 = arith.truncf %285 : vector<8x32xf32> to vector<8x32xbf16>
    %c16_95 = arith.constant 16 : index
    %c0_96 = arith.constant 0 : index
    %287 = vector.load %arg16[%c16_95, %c0_96] : memref<64x32xbf16, #tpu.memory_space<vmem>>, vector<8x32xbf16>
    tpu.vector_store %arg16[%c16_95, %c0_96], %286 {strides = array<i32>} : memref<64x32xbf16, #tpu.memory_space<vmem>>, vector<8x32xbf16>,
    %c24_97 = arith.constant 24 : index
    %c0_98 = arith.constant 0 : index
    %288 = vector.load %arg17[%c24_97, %c0_98] : memref<64x128xf32, #tpu.memory_space<vmem>>, vector<8x128xf32>
    %289 = arith.truncf %285 : vector<8x32xf32> to vector<8x32xbf16>
    %cst_99 = arith.constant dense<0.000000e+00> : vector<8x128xf32>
    %290 = tpu.matmul %289, %213, %cst_99 {dimension_numbers = #tpu.dot_dimension_numbers<[1], [0], [0], [1], [0, 0, 1, 1], [], []>} : vector<8x32xbf16>, vector<32x128xbf16>, vector<8x128xf32> -> vector<8x128xf32>
    %291 = arith.addf %288, %290 : vector<8x128xf32>
    %292 = arith.negf %291 : vector<8x128xf32>
    %293 = math.exp %292 : vector<8x128xf32>
    %cst_100 = arith.constant 1.000000e+00 : f32
    %294 = vector.broadcast %cst_100 : f32 to vector<8x128xf32>
    %295 = arith.addf %294, %293 : vector<8x128xf32>
    %296 = arith.divf %294, %295 : vector<8x128xf32>
    %297 = vector.extract_strided_slice %296 {offsets = [0, 0], sizes = [8, 32], strides = [1, 1]} : vector<8x128xf32> to vector<8x32xf32>
    %298 = vector.extract_strided_slice %296 {offsets = [0, 32], sizes = [8, 32], strides = [1, 1]} : vector<8x128xf32> to vector<8x32xf32>
    %299 = vector.extract_strided_slice %296 {offsets = [0, 64], sizes = [8, 32], strides = [1, 1]} : vector<8x128xf32> to vector<8x32xf32>
    %cst_101 = arith.constant 2.000000e+00 : f32
    %300 = vector.broadcast %cst_101 : f32 to vector<8x32xf32>
    %301 = arith.mulf %300, %299 : vector<8x32xf32>
    %cst_102 = arith.constant 1.000000e+00 : f32
    %302 = vector.broadcast %cst_102 : f32 to vector<8x32xf32>
    %303 = arith.subf %301, %302 : vector<8x32xf32>
    %304 = vector.extract_strided_slice %296 {offsets = [0, 96], sizes = [8, 32], strides = [1, 1]} : vector<8x128xf32> to vector<8x32xf32>
    %305 = arith.mulf %298, %283 : vector<8x32xf32>
    %306 = arith.mulf %297, %303 : vector<8x32xf32>
    %307 = arith.addf %305, %306 : vector<8x32xf32>
    %308 = math.tanh %307 : vector<8x32xf32>
    %309 = arith.mulf %304, %308 : vector<8x32xf32>
    %310 = arith.truncf %309 : vector<8x32xf32> to vector<8x32xbf16>
    %c24_103 = arith.constant 24 : index
    %c0_104 = arith.constant 0 : index
    %311 = vector.load %arg16[%c24_103, %c0_104] : memref<64x32xbf16, #tpu.memory_space<vmem>>, vector<8x32xbf16>
    tpu.vector_store %arg16[%c24_103, %c0_104], %310 {strides = array<i32>} : memref<64x32xbf16, #tpu.memory_space<vmem>>, vector<8x32xbf16>,
    %c32_105 = arith.constant 32 : index
    %c0_106 = arith.constant 0 : index
    %312 = vector.load %arg17[%c32_105, %c0_106] : memref<64x128xf32, #tpu.memory_space<vmem>>, vector<8x128xf32>
    %313 = arith.truncf %309 : vector<8x32xf32> to vector<8x32xbf16>
    %cst_107 = arith.constant dense<0.000000e+00> : vector<8x128xf32>
    %314 = tpu.matmul %313, %213, %cst_107 {dimension_numbers = #tpu.dot_dimension_numbers<[1], [0], [0], [1], [0, 0, 1, 1], [], []>} : vector<8x32xbf16>, vector<32x128xbf16>, vector<8x128xf32> -> vector<8x128xf32>
    %315 = arith.addf %312, %314 : vector<8x128xf32>
    %316 = arith.negf %315 : vector<8x128xf32>
    %317 = math.exp %316 : vector<8x128xf32>
    %cst_108 = arith.constant 1.000000e+00 : f32
    %318 = vector.broadcast %cst_108 : f32 to vector<8x128xf32>
    %319 = arith.addf %318, %317 : vector<8x128xf32>
    %320 = arith.divf %318, %319 : vector<8x128xf32>
    %321 = vector.extract_strided_slice %320 {offsets = [0, 0], sizes = [8, 32], strides = [1, 1]} : vector<8x128xf32> to vector<8x32xf32>
    %322 = vector.extract_strided_slice %320 {offsets = [0, 32], sizes = [8, 32], strides = [1, 1]} : vector<8x128xf32> to vector<8x32xf32>
    %323 = vector.extract_strided_slice %320 {offsets = [0, 64], sizes = [8, 32], strides = [1, 1]} : vector<8x128xf32> to vector<8x32xf32>
    %cst_109 = arith.constant 2.000000e+00 : f32
    %324 = vector.broadcast %cst_109 : f32 to vector<8x32xf32>
    %325 = arith.mulf %324, %323 : vector<8x32xf32>
    %cst_110 = arith.constant 1.000000e+00 : f32
    %326 = vector.broadcast %cst_110 : f32 to vector<8x32xf32>
    %327 = arith.subf %325, %326 : vector<8x32xf32>
    %328 = vector.extract_strided_slice %320 {offsets = [0, 96], sizes = [8, 32], strides = [1, 1]} : vector<8x128xf32> to vector<8x32xf32>
    %329 = arith.mulf %322, %307 : vector<8x32xf32>
    %330 = arith.mulf %321, %327 : vector<8x32xf32>
    %331 = arith.addf %329, %330 : vector<8x32xf32>
    %332 = math.tanh %331 : vector<8x32xf32>
    %333 = arith.mulf %328, %332 : vector<8x32xf32>
    %334 = arith.truncf %333 : vector<8x32xf32> to vector<8x32xbf16>
    %c32_111 = arith.constant 32 : index
    %c0_112 = arith.constant 0 : index
    %335 = vector.load %arg16[%c32_111, %c0_112] : memref<64x32xbf16, #tpu.memory_space<vmem>>, vector<8x32xbf16>
    tpu.vector_store %arg16[%c32_111, %c0_112], %334 {strides = array<i32>} : memref<64x32xbf16, #tpu.memory_space<vmem>>, vector<8x32xbf16>,
    %c40_113 = arith.constant 40 : index
    %c0_114 = arith.constant 0 : index
    %336 = vector.load %arg17[%c40_113, %c0_114] : memref<64x128xf32, #tpu.memory_space<vmem>>, vector<8x128xf32>
    %337 = arith.truncf %333 : vector<8x32xf32> to vector<8x32xbf16>
    %cst_115 = arith.constant dense<0.000000e+00> : vector<8x128xf32>
    %338 = tpu.matmul %337, %213, %cst_115 {dimension_numbers = #tpu.dot_dimension_numbers<[1], [0], [0], [1], [0, 0, 1, 1], [], []>} : vector<8x32xbf16>, vector<32x128xbf16>, vector<8x128xf32> -> vector<8x128xf32>
    %339 = arith.addf %336, %338 : vector<8x128xf32>
    %340 = arith.negf %339 : vector<8x128xf32>
    %341 = math.exp %340 : vector<8x128xf32>
    %cst_116 = arith.constant 1.000000e+00 : f32
    %342 = vector.broadcast %cst_116 : f32 to vector<8x128xf32>
    %343 = arith.addf %342, %341 : vector<8x128xf32>
    %344 = arith.divf %342, %343 : vector<8x128xf32>
    %345 = vector.extract_strided_slice %344 {offsets = [0, 0], sizes = [8, 32], strides = [1, 1]} : vector<8x128xf32> to vector<8x32xf32>
    %346 = vector.extract_strided_slice %344 {offsets = [0, 32], sizes = [8, 32], strides = [1, 1]} : vector<8x128xf32> to vector<8x32xf32>
    %347 = vector.extract_strided_slice %344 {offsets = [0, 64], sizes = [8, 32], strides = [1, 1]} : vector<8x128xf32> to vector<8x32xf32>
    %cst_117 = arith.constant 2.000000e+00 : f32
    %348 = vector.broadcast %cst_117 : f32 to vector<8x32xf32>
    %349 = arith.mulf %348, %347 : vector<8x32xf32>
    %cst_118 = arith.constant 1.000000e+00 : f32
    %350 = vector.broadcast %cst_118 : f32 to vector<8x32xf32>
    %351 = arith.subf %349, %350 : vector<8x32xf32>
    %352 = vector.extract_strided_slice %344 {offsets = [0, 96], sizes = [8, 32], strides = [1, 1]} : vector<8x128xf32> to vector<8x32xf32>
    %353 = arith.mulf %346, %331 : vector<8x32xf32>
    %354 = arith.mulf %345, %351 : vector<8x32xf32>
    %355 = arith.addf %353, %354 : vector<8x32xf32>
    %356 = math.tanh %355 : vector<8x32xf32>
    %357 = arith.mulf %352, %356 : vector<8x32xf32>
    %358 = arith.truncf %357 : vector<8x32xf32> to vector<8x32xbf16>
    %c40_119 = arith.constant 40 : index
    %c0_120 = arith.constant 0 : index
    %359 = vector.load %arg16[%c40_119, %c0_120] : memref<64x32xbf16, #tpu.memory_space<vmem>>, vector<8x32xbf16>
    tpu.vector_store %arg16[%c40_119, %c0_120], %358 {strides = array<i32>} : memref<64x32xbf16, #tpu.memory_space<vmem>>, vector<8x32xbf16>,
    %c48_121 = arith.constant 48 : index
    %c0_122 = arith.constant 0 : index
    %360 = vector.load %arg17[%c48_121, %c0_122] : memref<64x128xf32, #tpu.memory_space<vmem>>, vector<8x128xf32>
    %361 = arith.truncf %357 : vector<8x32xf32> to vector<8x32xbf16>
    %cst_123 = arith.constant dense<0.000000e+00> : vector<8x128xf32>
    %362 = tpu.matmul %361, %213, %cst_123 {dimension_numbers = #tpu.dot_dimension_numbers<[1], [0], [0], [1], [0, 0, 1, 1], [], []>} : vector<8x32xbf16>, vector<32x128xbf16>, vector<8x128xf32> -> vector<8x128xf32>
    %363 = arith.addf %360, %362 : vector<8x128xf32>
    %364 = arith.negf %363 : vector<8x128xf32>
    %365 = math.exp %364 : vector<8x128xf32>
    %cst_124 = arith.constant 1.000000e+00 : f32
    %366 = vector.broadcast %cst_124 : f32 to vector<8x128xf32>
    %367 = arith.addf %366, %365 : vector<8x128xf32>
    %368 = arith.divf %366, %367 : vector<8x128xf32>
    %369 = vector.extract_strided_slice %368 {offsets = [0, 0], sizes = [8, 32], strides = [1, 1]} : vector<8x128xf32> to vector<8x32xf32>
    %370 = vector.extract_strided_slice %368 {offsets = [0, 32], sizes = [8, 32], strides = [1, 1]} : vector<8x128xf32> to vector<8x32xf32>
    %371 = vector.extract_strided_slice %368 {offsets = [0, 64], sizes = [8, 32], strides = [1, 1]} : vector<8x128xf32> to vector<8x32xf32>
    %cst_125 = arith.constant 2.000000e+00 : f32
    %372 = vector.broadcast %cst_125 : f32 to vector<8x32xf32>
    %373 = arith.mulf %372, %371 : vector<8x32xf32>
    %cst_126 = arith.constant 1.000000e+00 : f32
    %374 = vector.broadcast %cst_126 : f32 to vector<8x32xf32>
    %375 = arith.subf %373, %374 : vector<8x32xf32>
    %376 = vector.extract_strided_slice %368 {offsets = [0, 96], sizes = [8, 32], strides = [1, 1]} : vector<8x128xf32> to vector<8x32xf32>
    %377 = arith.mulf %370, %355 : vector<8x32xf32>
    %378 = arith.mulf %369, %375 : vector<8x32xf32>
    %379 = arith.addf %377, %378 : vector<8x32xf32>
    %380 = math.tanh %379 : vector<8x32xf32>
    %381 = arith.mulf %376, %380 : vector<8x32xf32>
    %382 = arith.truncf %381 : vector<8x32xf32> to vector<8x32xbf16>
    %c48_127 = arith.constant 48 : index
    %c0_128 = arith.constant 0 : index
    %383 = vector.load %arg16[%c48_127, %c0_128] : memref<64x32xbf16, #tpu.memory_space<vmem>>, vector<8x32xbf16>
    tpu.vector_store %arg16[%c48_127, %c0_128], %382 {strides = array<i32>} : memref<64x32xbf16, #tpu.memory_space<vmem>>, vector<8x32xbf16>,
    %c56_129 = arith.constant 56 : index
    %c0_130 = arith.constant 0 : index
    %384 = vector.load %arg17[%c56_129, %c0_130] : memref<64x128xf32, #tpu.memory_space<vmem>>, vector<8x128xf32>
    %385 = arith.truncf %381 : vector<8x32xf32> to vector<8x32xbf16>
    %cst_131 = arith.constant dense<0.000000e+00> : vector<8x128xf32>
    %386 = tpu.matmul %385, %213, %cst_131 {dimension_numbers = #tpu.dot_dimension_numbers<[1], [0], [0], [1], [0, 0, 1, 1], [], []>} : vector<8x32xbf16>, vector<32x128xbf16>, vector<8x128xf32> -> vector<8x128xf32>
    %387 = arith.addf %384, %386 : vector<8x128xf32>
    %388 = arith.negf %387 : vector<8x128xf32>
    %389 = math.exp %388 : vector<8x128xf32>
    %cst_132 = arith.constant 1.000000e+00 : f32
    %390 = vector.broadcast %cst_132 : f32 to vector<8x128xf32>
    %391 = arith.addf %390, %389 : vector<8x128xf32>
    %392 = arith.divf %390, %391 : vector<8x128xf32>
    %393 = vector.extract_strided_slice %392 {offsets = [0, 0], sizes = [8, 32], strides = [1, 1]} : vector<8x128xf32> to vector<8x32xf32>
    %394 = vector.extract_strided_slice %392 {offsets = [0, 32], sizes = [8, 32], strides = [1, 1]} : vector<8x128xf32> to vector<8x32xf32>
    %395 = vector.extract_strided_slice %392 {offsets = [0, 64], sizes = [8, 32], strides = [1, 1]} : vector<8x128xf32> to vector<8x32xf32>
    %cst_133 = arith.constant 2.000000e+00 : f32
    %396 = vector.broadcast %cst_133 : f32 to vector<8x32xf32>
    %397 = arith.mulf %396, %395 : vector<8x32xf32>
    %cst_134 = arith.constant 1.000000e+00 : f32
    %398 = vector.broadcast %cst_134 : f32 to vector<8x32xf32>
    %399 = arith.subf %397, %398 : vector<8x32xf32>
    %400 = vector.extract_strided_slice %392 {offsets = [0, 96], sizes = [8, 32], strides = [1, 1]} : vector<8x128xf32> to vector<8x32xf32>
    %401 = arith.mulf %394, %379 : vector<8x32xf32>
    %402 = arith.mulf %393, %399 : vector<8x32xf32>
    %403 = arith.addf %401, %402 : vector<8x32xf32>
    %404 = math.tanh %403 : vector<8x32xf32>
    %405 = arith.mulf %400, %404 : vector<8x32xf32>
    %406 = arith.truncf %405 : vector<8x32xf32> to vector<8x32xbf16>
    %c56_135 = arith.constant 56 : index
    %c0_136 = arith.constant 0 : index
    %407 = vector.load %arg16[%c56_135, %c0_136] : memref<64x32xbf16, #tpu.memory_space<vmem>>, vector<8x32xbf16>
    tpu.vector_store %arg16[%c56_135, %c0_136], %406 {strides = array<i32>} : memref<64x32xbf16, #tpu.memory_space<vmem>>, vector<8x32xbf16>,
    %c0_137 = arith.constant 0 : index
    %c0_138 = arith.constant 0 : index
    %408 = vector.load %arg16[%c0_137, %c0_138] : memref<64x32xbf16, #tpu.memory_space<vmem>>, vector<64x32xbf16>
    %c0_139 = arith.constant 0 : index
    %c0_140 = arith.constant 0 : index
    %409 = vector.load %arg9[%c0_139, %c0_140] : memref<32x128xbf16, #tpu.memory_space<vmem>>, vector<32x128xbf16>
    %cst_141 = arith.constant dense<0.000000e+00> : vector<64x128xf32>
    %410 = tpu.matmul %408, %409, %cst_141 {dimension_numbers = #tpu.dot_dimension_numbers<[1], [0], [0], [1], [0, 0, 1, 1], [], []>} : vector<64x32xbf16>, vector<32x128xbf16>, vector<64x128xf32> -> vector<64x128xf32>
    %c0_142 = arith.constant 0 : index
    %c0_143 = arith.constant 0 : index
    %411 = vector.load %arg11[%c0_142, %c0_143] : memref<1x128xf32, #tpu.memory_space<vmem>>, vector<1x128xf32>
    %412 = vector.broadcast %411 : vector<1x128xf32> to vector<64x128xf32>
    %413 = arith.addf %410, %412 : vector<64x128xf32>
    %c0_144 = arith.constant 0 : index
    %c0_145 = arith.constant 0 : index
    %414 = vector.load %arg17[%c0_144, %c0_145] : memref<64x128xf32, #tpu.memory_space<vmem>>, vector<64x128xf32>
    tpu.vector_store %arg17[%c0_144, %c0_145], %413 {strides = array<i32>} : memref<64x128xf32, #tpu.memory_space<vmem>>, vector<64x128xf32>,
    %c0_146 = arith.constant 0 : index
    %c0_147 = arith.constant 0 : index
    %415 = vector.load %arg10[%c0_146, %c0_147] : memref<32x128xbf16, #tpu.memory_space<vmem>>, vector<32x128xbf16>
    %cst_148 = arith.constant 0.000000e+00 : f32
    %416 = vector.broadcast %cst_148 : f32 to vector<8x32xf32>
    %cst_149 = arith.constant 0.000000e+00 : f32
    %417 = vector.broadcast %cst_149 : f32 to vector<8x32xf32>
    %c0_150 = arith.constant 0 : index
    %c0_151 = arith.constant 0 : index
    %418 = vector.load %arg17[%c0_150, %c0_151] : memref<64x128xf32, #tpu.memory_space<vmem>>, vector<8x128xf32>
    %419 = arith.truncf %416 : vector<8x32xf32> to vector<8x32xbf16>
    %cst_152 = arith.constant dense<0.000000e+00> : vector<8x128xf32>
    %420 = tpu.matmul %419, %415, %cst_152 {dimension_numbers = #tpu.dot_dimension_numbers<[1], [0], [0], [1], [0, 0, 1, 1], [], []>} : vector<8x32xbf16>, vector<32x128xbf16>, vector<8x128xf32> -> vector<8x128xf32>
    %421 = arith.addf %418, %420 : vector<8x128xf32>
    %422 = arith.negf %421 : vector<8x128xf32>
    %423 = math.exp %422 : vector<8x128xf32>
    %cst_153 = arith.constant 1.000000e+00 : f32
    %424 = vector.broadcast %cst_153 : f32 to vector<8x128xf32>
    %425 = arith.addf %424, %423 : vector<8x128xf32>
    %426 = arith.divf %424, %425 : vector<8x128xf32>
    %427 = vector.extract_strided_slice %426 {offsets = [0, 0], sizes = [8, 32], strides = [1, 1]} : vector<8x128xf32> to vector<8x32xf32>
    %428 = vector.extract_strided_slice %426 {offsets = [0, 32], sizes = [8, 32], strides = [1, 1]} : vector<8x128xf32> to vector<8x32xf32>
    %429 = vector.extract_strided_slice %426 {offsets = [0, 64], sizes = [8, 32], strides = [1, 1]} : vector<8x128xf32> to vector<8x32xf32>
    %cst_154 = arith.constant 2.000000e+00 : f32
    %430 = vector.broadcast %cst_154 : f32 to vector<8x32xf32>
    %431 = arith.mulf %430, %429 : vector<8x32xf32>
    %cst_155 = arith.constant 1.000000e+00 : f32
    %432 = vector.broadcast %cst_155 : f32 to vector<8x32xf32>
    %433 = arith.subf %431, %432 : vector<8x32xf32>
    %434 = vector.extract_strided_slice %426 {offsets = [0, 96], sizes = [8, 32], strides = [1, 1]} : vector<8x128xf32> to vector<8x32xf32>
    %435 = arith.mulf %428, %417 : vector<8x32xf32>
    %436 = arith.mulf %427, %433 : vector<8x32xf32>
    %437 = arith.addf %435, %436 : vector<8x32xf32>
    %438 = math.tanh %437 : vector<8x32xf32>
    %439 = arith.mulf %434, %438 : vector<8x32xf32>
    %c8_156 = arith.constant 8 : index
    %c0_157 = arith.constant 0 : index
    %440 = vector.load %arg17[%c8_156, %c0_157] : memref<64x128xf32, #tpu.memory_space<vmem>>, vector<8x128xf32>
    %441 = arith.truncf %439 : vector<8x32xf32> to vector<8x32xbf16>
    %cst_158 = arith.constant dense<0.000000e+00> : vector<8x128xf32>
    %442 = tpu.matmul %441, %415, %cst_158 {dimension_numbers = #tpu.dot_dimension_numbers<[1], [0], [0], [1], [0, 0, 1, 1], [], []>} : vector<8x32xbf16>, vector<32x128xbf16>, vector<8x128xf32> -> vector<8x128xf32>
    %443 = arith.addf %440, %442 : vector<8x128xf32>
    %444 = arith.negf %443 : vector<8x128xf32>
    %445 = math.exp %444 : vector<8x128xf32>
    %cst_159 = arith.constant 1.000000e+00 : f32
    %446 = vector.broadcast %cst_159 : f32 to vector<8x128xf32>
    %447 = arith.addf %446, %445 : vector<8x128xf32>
    %448 = arith.divf %446, %447 : vector<8x128xf32>
    %449 = vector.extract_strided_slice %448 {offsets = [0, 0], sizes = [8, 32], strides = [1, 1]} : vector<8x128xf32> to vector<8x32xf32>
    %450 = vector.extract_strided_slice %448 {offsets = [0, 32], sizes = [8, 32], strides = [1, 1]} : vector<8x128xf32> to vector<8x32xf32>
    %451 = vector.extract_strided_slice %448 {offsets = [0, 64], sizes = [8, 32], strides = [1, 1]} : vector<8x128xf32> to vector<8x32xf32>
    %cst_160 = arith.constant 2.000000e+00 : f32
    %452 = vector.broadcast %cst_160 : f32 to vector<8x32xf32>
    %453 = arith.mulf %452, %451 : vector<8x32xf32>
    %cst_161 = arith.constant 1.000000e+00 : f32
    %454 = vector.broadcast %cst_161 : f32 to vector<8x32xf32>
    %455 = arith.subf %453, %454 : vector<8x32xf32>
    %456 = vector.extract_strided_slice %448 {offsets = [0, 96], sizes = [8, 32], strides = [1, 1]} : vector<8x128xf32> to vector<8x32xf32>
    %457 = arith.mulf %450, %437 : vector<8x32xf32>
    %458 = arith.mulf %449, %455 : vector<8x32xf32>
    %459 = arith.addf %457, %458 : vector<8x32xf32>
    %460 = math.tanh %459 : vector<8x32xf32>
    %461 = arith.mulf %456, %460 : vector<8x32xf32>
    %c16_162 = arith.constant 16 : index
    %c0_163 = arith.constant 0 : index
    %462 = vector.load %arg17[%c16_162, %c0_163] : memref<64x128xf32, #tpu.memory_space<vmem>>, vector<8x128xf32>
    %463 = arith.truncf %461 : vector<8x32xf32> to vector<8x32xbf16>
    %cst_164 = arith.constant dense<0.000000e+00> : vector<8x128xf32>
    %464 = tpu.matmul %463, %415, %cst_164 {dimension_numbers = #tpu.dot_dimension_numbers<[1], [0], [0], [1], [0, 0, 1, 1], [], []>} : vector<8x32xbf16>, vector<32x128xbf16>, vector<8x128xf32> -> vector<8x128xf32>
    %465 = arith.addf %462, %464 : vector<8x128xf32>
    %466 = arith.negf %465 : vector<8x128xf32>
    %467 = math.exp %466 : vector<8x128xf32>
    %cst_165 = arith.constant 1.000000e+00 : f32
    %468 = vector.broadcast %cst_165 : f32 to vector<8x128xf32>
    %469 = arith.addf %468, %467 : vector<8x128xf32>
    %470 = arith.divf %468, %469 : vector<8x128xf32>
    %471 = vector.extract_strided_slice %470 {offsets = [0, 0], sizes = [8, 32], strides = [1, 1]} : vector<8x128xf32> to vector<8x32xf32>
    %472 = vector.extract_strided_slice %470 {offsets = [0, 32], sizes = [8, 32], strides = [1, 1]} : vector<8x128xf32> to vector<8x32xf32>
    %473 = vector.extract_strided_slice %470 {offsets = [0, 64], sizes = [8, 32], strides = [1, 1]} : vector<8x128xf32> to vector<8x32xf32>
    %cst_166 = arith.constant 2.000000e+00 : f32
    %474 = vector.broadcast %cst_166 : f32 to vector<8x32xf32>
    %475 = arith.mulf %474, %473 : vector<8x32xf32>
    %cst_167 = arith.constant 1.000000e+00 : f32
    %476 = vector.broadcast %cst_167 : f32 to vector<8x32xf32>
    %477 = arith.subf %475, %476 : vector<8x32xf32>
    %478 = vector.extract_strided_slice %470 {offsets = [0, 96], sizes = [8, 32], strides = [1, 1]} : vector<8x128xf32> to vector<8x32xf32>
    %479 = arith.mulf %472, %459 : vector<8x32xf32>
    %480 = arith.mulf %471, %477 : vector<8x32xf32>
    %481 = arith.addf %479, %480 : vector<8x32xf32>
    %482 = math.tanh %481 : vector<8x32xf32>
    %483 = arith.mulf %478, %482 : vector<8x32xf32>
    %c24_168 = arith.constant 24 : index
    %c0_169 = arith.constant 0 : index
    %484 = vector.load %arg17[%c24_168, %c0_169] : memref<64x128xf32, #tpu.memory_space<vmem>>, vector<8x128xf32>
    %485 = arith.truncf %483 : vector<8x32xf32> to vector<8x32xbf16>
    %cst_170 = arith.constant dense<0.000000e+00> : vector<8x128xf32>
    %486 = tpu.matmul %485, %415, %cst_170 {dimension_numbers = #tpu.dot_dimension_numbers<[1], [0], [0], [1], [0, 0, 1, 1], [], []>} : vector<8x32xbf16>, vector<32x128xbf16>, vector<8x128xf32> -> vector<8x128xf32>
    %487 = arith.addf %484, %486 : vector<8x128xf32>
    %488 = arith.negf %487 : vector<8x128xf32>
    %489 = math.exp %488 : vector<8x128xf32>
    %cst_171 = arith.constant 1.000000e+00 : f32
    %490 = vector.broadcast %cst_171 : f32 to vector<8x128xf32>
    %491 = arith.addf %490, %489 : vector<8x128xf32>
    %492 = arith.divf %490, %491 : vector<8x128xf32>
    %493 = vector.extract_strided_slice %492 {offsets = [0, 0], sizes = [8, 32], strides = [1, 1]} : vector<8x128xf32> to vector<8x32xf32>
    %494 = vector.extract_strided_slice %492 {offsets = [0, 32], sizes = [8, 32], strides = [1, 1]} : vector<8x128xf32> to vector<8x32xf32>
    %495 = vector.extract_strided_slice %492 {offsets = [0, 64], sizes = [8, 32], strides = [1, 1]} : vector<8x128xf32> to vector<8x32xf32>
    %cst_172 = arith.constant 2.000000e+00 : f32
    %496 = vector.broadcast %cst_172 : f32 to vector<8x32xf32>
    %497 = arith.mulf %496, %495 : vector<8x32xf32>
    %cst_173 = arith.constant 1.000000e+00 : f32
    %498 = vector.broadcast %cst_173 : f32 to vector<8x32xf32>
    %499 = arith.subf %497, %498 : vector<8x32xf32>
    %500 = vector.extract_strided_slice %492 {offsets = [0, 96], sizes = [8, 32], strides = [1, 1]} : vector<8x128xf32> to vector<8x32xf32>
    %501 = arith.mulf %494, %481 : vector<8x32xf32>
    %502 = arith.mulf %493, %499 : vector<8x32xf32>
    %503 = arith.addf %501, %502 : vector<8x32xf32>
    %504 = math.tanh %503 : vector<8x32xf32>
    %505 = arith.mulf %500, %504 : vector<8x32xf32>
    %c32_174 = arith.constant 32 : index
    %c0_175 = arith.constant 0 : index
    %506 = vector.load %arg17[%c32_174, %c0_175] : memref<64x128xf32, #tpu.memory_space<vmem>>, vector<8x128xf32>
    %507 = arith.truncf %505 : vector<8x32xf32> to vector<8x32xbf16>
    %cst_176 = arith.constant dense<0.000000e+00> : vector<8x128xf32>
    %508 = tpu.matmul %507, %415, %cst_176 {dimension_numbers = #tpu.dot_dimension_numbers<[1], [0], [0], [1], [0, 0, 1, 1], [], []>} : vector<8x32xbf16>, vector<32x128xbf16>, vector<8x128xf32> -> vector<8x128xf32>
    %509 = arith.addf %506, %508 : vector<8x128xf32>
    %510 = arith.negf %509 : vector<8x128xf32>
    %511 = math.exp %510 : vector<8x128xf32>
    %cst_177 = arith.constant 1.000000e+00 : f32
    %512 = vector.broadcast %cst_177 : f32 to vector<8x128xf32>
    %513 = arith.addf %512, %511 : vector<8x128xf32>
    %514 = arith.divf %512, %513 : vector<8x128xf32>
    %515 = vector.extract_strided_slice %514 {offsets = [0, 0], sizes = [8, 32], strides = [1, 1]} : vector<8x128xf32> to vector<8x32xf32>
    %516 = vector.extract_strided_slice %514 {offsets = [0, 32], sizes = [8, 32], strides = [1, 1]} : vector<8x128xf32> to vector<8x32xf32>
    %517 = vector.extract_strided_slice %514 {offsets = [0, 64], sizes = [8, 32], strides = [1, 1]} : vector<8x128xf32> to vector<8x32xf32>
    %cst_178 = arith.constant 2.000000e+00 : f32
    %518 = vector.broadcast %cst_178 : f32 to vector<8x32xf32>
    %519 = arith.mulf %518, %517 : vector<8x32xf32>
    %cst_179 = arith.constant 1.000000e+00 : f32
    %520 = vector.broadcast %cst_179 : f32 to vector<8x32xf32>
    %521 = arith.subf %519, %520 : vector<8x32xf32>
    %522 = vector.extract_strided_slice %514 {offsets = [0, 96], sizes = [8, 32], strides = [1, 1]} : vector<8x128xf32> to vector<8x32xf32>
    %523 = arith.mulf %516, %503 : vector<8x32xf32>
    %524 = arith.mulf %515, %521 : vector<8x32xf32>
    %525 = arith.addf %523, %524 : vector<8x32xf32>
    %526 = math.tanh %525 : vector<8x32xf32>
    %527 = arith.mulf %522, %526 : vector<8x32xf32>
    %c40_180 = arith.constant 40 : index
    %c0_181 = arith.constant 0 : index
    %528 = vector.load %arg17[%c40_180, %c0_181] : memref<64x128xf32, #tpu.memory_space<vmem>>, vector<8x128xf32>
    %529 = arith.truncf %527 : vector<8x32xf32> to vector<8x32xbf16>
    %cst_182 = arith.constant dense<0.000000e+00> : vector<8x128xf32>
    %530 = tpu.matmul %529, %415, %cst_182 {dimension_numbers = #tpu.dot_dimension_numbers<[1], [0], [0], [1], [0, 0, 1, 1], [], []>} : vector<8x32xbf16>, vector<32x128xbf16>, vector<8x128xf32> -> vector<8x128xf32>
    %531 = arith.addf %528, %530 : vector<8x128xf32>
    %532 = arith.negf %531 : vector<8x128xf32>
    %533 = math.exp %532 : vector<8x128xf32>
    %cst_183 = arith.constant 1.000000e+00 : f32
    %534 = vector.broadcast %cst_183 : f32 to vector<8x128xf32>
    %535 = arith.addf %534, %533 : vector<8x128xf32>
    %536 = arith.divf %534, %535 : vector<8x128xf32>
    %537 = vector.extract_strided_slice %536 {offsets = [0, 0], sizes = [8, 32], strides = [1, 1]} : vector<8x128xf32> to vector<8x32xf32>
    %538 = vector.extract_strided_slice %536 {offsets = [0, 32], sizes = [8, 32], strides = [1, 1]} : vector<8x128xf32> to vector<8x32xf32>
    %539 = vector.extract_strided_slice %536 {offsets = [0, 64], sizes = [8, 32], strides = [1, 1]} : vector<8x128xf32> to vector<8x32xf32>
    %cst_184 = arith.constant 2.000000e+00 : f32
    %540 = vector.broadcast %cst_184 : f32 to vector<8x32xf32>
    %541 = arith.mulf %540, %539 : vector<8x32xf32>
    %cst_185 = arith.constant 1.000000e+00 : f32
    %542 = vector.broadcast %cst_185 : f32 to vector<8x32xf32>
    %543 = arith.subf %541, %542 : vector<8x32xf32>
    %544 = vector.extract_strided_slice %536 {offsets = [0, 96], sizes = [8, 32], strides = [1, 1]} : vector<8x128xf32> to vector<8x32xf32>
    %545 = arith.mulf %538, %525 : vector<8x32xf32>
    %546 = arith.mulf %537, %543 : vector<8x32xf32>
    %547 = arith.addf %545, %546 : vector<8x32xf32>
    %548 = math.tanh %547 : vector<8x32xf32>
    %549 = arith.mulf %544, %548 : vector<8x32xf32>
    %c48_186 = arith.constant 48 : index
    %c0_187 = arith.constant 0 : index
    %550 = vector.load %arg17[%c48_186, %c0_187] : memref<64x128xf32, #tpu.memory_space<vmem>>, vector<8x128xf32>
    %551 = arith.truncf %549 : vector<8x32xf32> to vector<8x32xbf16>
    %cst_188 = arith.constant dense<0.000000e+00> : vector<8x128xf32>
    %552 = tpu.matmul %551, %415, %cst_188 {dimension_numbers = #tpu.dot_dimension_numbers<[1], [0], [0], [1], [0, 0, 1, 1], [], []>} : vector<8x32xbf16>, vector<32x128xbf16>, vector<8x128xf32> -> vector<8x128xf32>
    %553 = arith.addf %550, %552 : vector<8x128xf32>
    %554 = arith.negf %553 : vector<8x128xf32>
    %555 = math.exp %554 : vector<8x128xf32>
    %cst_189 = arith.constant 1.000000e+00 : f32
    %556 = vector.broadcast %cst_189 : f32 to vector<8x128xf32>
    %557 = arith.addf %556, %555 : vector<8x128xf32>
    %558 = arith.divf %556, %557 : vector<8x128xf32>
    %559 = vector.extract_strided_slice %558 {offsets = [0, 0], sizes = [8, 32], strides = [1, 1]} : vector<8x128xf32> to vector<8x32xf32>
    %560 = vector.extract_strided_slice %558 {offsets = [0, 32], sizes = [8, 32], strides = [1, 1]} : vector<8x128xf32> to vector<8x32xf32>
    %561 = vector.extract_strided_slice %558 {offsets = [0, 64], sizes = [8, 32], strides = [1, 1]} : vector<8x128xf32> to vector<8x32xf32>
    %cst_190 = arith.constant 2.000000e+00 : f32
    %562 = vector.broadcast %cst_190 : f32 to vector<8x32xf32>
    %563 = arith.mulf %562, %561 : vector<8x32xf32>
    %cst_191 = arith.constant 1.000000e+00 : f32
    %564 = vector.broadcast %cst_191 : f32 to vector<8x32xf32>
    %565 = arith.subf %563, %564 : vector<8x32xf32>
    %566 = vector.extract_strided_slice %558 {offsets = [0, 96], sizes = [8, 32], strides = [1, 1]} : vector<8x128xf32> to vector<8x32xf32>
    %567 = arith.mulf %560, %547 : vector<8x32xf32>
    %568 = arith.mulf %559, %565 : vector<8x32xf32>
    %569 = arith.addf %567, %568 : vector<8x32xf32>
    %570 = math.tanh %569 : vector<8x32xf32>
    %571 = arith.mulf %566, %570 : vector<8x32xf32>
    %c56_192 = arith.constant 56 : index
    %c0_193 = arith.constant 0 : index
    %572 = vector.load %arg17[%c56_192, %c0_193] : memref<64x128xf32, #tpu.memory_space<vmem>>, vector<8x128xf32>
    %573 = arith.truncf %571 : vector<8x32xf32> to vector<8x32xbf16>
    %cst_194 = arith.constant dense<0.000000e+00> : vector<8x128xf32>
    %574 = tpu.matmul %573, %415, %cst_194 {dimension_numbers = #tpu.dot_dimension_numbers<[1], [0], [0], [1], [0, 0, 1, 1], [], []>} : vector<8x32xbf16>, vector<32x128xbf16>, vector<8x128xf32> -> vector<8x128xf32>
    %575 = arith.addf %572, %574 : vector<8x128xf32>
    %576 = arith.negf %575 : vector<8x128xf32>
    %577 = math.exp %576 : vector<8x128xf32>
    %cst_195 = arith.constant 1.000000e+00 : f32
    %578 = vector.broadcast %cst_195 : f32 to vector<8x128xf32>
    %579 = arith.addf %578, %577 : vector<8x128xf32>
    %580 = arith.divf %578, %579 : vector<8x128xf32>
    %581 = vector.extract_strided_slice %580 {offsets = [0, 0], sizes = [8, 32], strides = [1, 1]} : vector<8x128xf32> to vector<8x32xf32>
    %582 = vector.extract_strided_slice %580 {offsets = [0, 32], sizes = [8, 32], strides = [1, 1]} : vector<8x128xf32> to vector<8x32xf32>
    %583 = vector.extract_strided_slice %580 {offsets = [0, 64], sizes = [8, 32], strides = [1, 1]} : vector<8x128xf32> to vector<8x32xf32>
    %cst_196 = arith.constant 2.000000e+00 : f32
    %584 = vector.broadcast %cst_196 : f32 to vector<8x32xf32>
    %585 = arith.mulf %584, %583 : vector<8x32xf32>
    %cst_197 = arith.constant 1.000000e+00 : f32
    %586 = vector.broadcast %cst_197 : f32 to vector<8x32xf32>
    %587 = arith.subf %585, %586 : vector<8x32xf32>
    %588 = vector.extract_strided_slice %580 {offsets = [0, 96], sizes = [8, 32], strides = [1, 1]} : vector<8x128xf32> to vector<8x32xf32>
    %589 = arith.mulf %582, %569 : vector<8x32xf32>
    %590 = arith.mulf %581, %587 : vector<8x32xf32>
    %591 = arith.addf %589, %590 : vector<8x32xf32>
    %592 = math.tanh %591 : vector<8x32xf32>
    %593 = arith.mulf %588, %592 : vector<8x32xf32>
    %594 = arith.truncf %593 : vector<8x32xf32> to vector<8x32xbf16>
    %c0_198 = arith.constant 0 : index
    %c0_199 = arith.constant 0 : index
    %595 = vector.load %arg12[%c0_198, %c0_199] : memref<32x128xbf16, #tpu.memory_space<vmem>>, vector<32x128xbf16>
    %cst_200 = arith.constant dense<0.000000e+00> : vector<8x128xf32>
    %596 = tpu.matmul %594, %595, %cst_200 {dimension_numbers = #tpu.dot_dimension_numbers<[1], [0], [0], [1], [0, 0, 1, 1], [], []>} : vector<8x32xbf16>, vector<32x128xbf16>, vector<8x128xf32> -> vector<8x128xf32>
    %c0_201 = arith.constant 0 : index
    %c0_202 = arith.constant 0 : index
    %597 = vector.load %arg13[%c0_201, %c0_202] : memref<1x128xf32, #tpu.memory_space<vmem>>, vector<1x128xf32>
    %598 = vector.broadcast %597 : vector<1x128xf32> to vector<8x128xf32>
    %599 = arith.addf %596, %598 : vector<8x128xf32>
    %600 = arith.mulf %599, %599 : vector<8x128xf32>
    %cst_203 = arith.constant dense<0.000000e+00> : vector<8xf32>
    %601 = vector.multi_reduction <add>, %600, %cst_203 [1] : vector<8x128xf32> to vector<8xf32>
    %602 = vector.shape_cast %601 : vector<8xf32> to vector<8x1xf32>
    %603 = math.rsqrt %602 : vector<8x1xf32>
    %cst_204 = arith.constant 0.166666672 : f32
    %604 = vector.broadcast %cst_204 : f32 to vector<8x1xf32>
    %605 = arith.mulf %603, %604 : vector<8x1xf32>
    %c8_i32 = arith.constant 8 : i32
    %606 = arith.muli %1, %c8_i32 : i32
    %607 = tpu.iota {dimensions = array<i32: 0>} : vector<8x1xi32>
    %608 = vector.broadcast %606 : i32 to vector<8x1xi32>
    %609 = arith.addi %608, %607 : vector<8x1xi32>
    %c6_i32 = arith.constant 6 : i32
    %610 = vector.broadcast %c6_i32 : i32 to vector<8x1xi32>
    %611 = arith.cmpi slt, %609, %610 : vector<8x1xi32>
    %612 = vector.broadcast %605 : vector<8x1xf32> to vector<8x128xf32>
    %613 = arith.mulf %599, %612 : vector<8x128xf32>
    %cst_205 = arith.constant 0.000000e+00 : f32
    %614 = vector.shape_cast %611 : vector<8x1xi1> to vector<8x1xi1>
    %615 = vector.broadcast %614 : vector<8x1xi1> to vector<8x128xi1>
    %616 = vector.broadcast %cst_205 : f32 to vector<8x128xf32>
    %617 = arith.select %615, %613, %616 : vector<8x128xi1>, vector<8x128xf32>
    %cst_206 = arith.constant dense<0.000000e+00> : vector<128xf32>
    %618 = vector.multi_reduction <add>, %617, %cst_206 [0] : vector<8x128xf32> to vector<128xf32>
    %619 = vector.shape_cast %618 : vector<128xf32> to vector<1x128xf32>
    %c0_i32 = arith.constant 0 : i32
    %620 = arith.cmpi eq, %arg1, %c0_i32 : i32
    %621 = arith.extui %620 : i1 to i32
    %c0_i32_207 = arith.constant 0 : i32
    %622 = arith.cmpi ne, %621, %c0_i32_207 : i32
    scf.if %622 {
      %cst_212 = arith.constant 0.000000e+00 : f32
      %626 = vector.broadcast %cst_212 : f32 to vector<1x128xf32>
      %c0_213 = arith.constant 0 : index
      %c0_214 = arith.constant 0 : index
      %627 = vector.load %arg14[%c0_213, %c0_214] : memref<1x128xf32, #tpu.memory_space<vmem>>, vector<1x128xf32>
      tpu.vector_store %arg14[%c0_213, %c0_214], %626 {strides = array<i32>} : memref<1x128xf32, #tpu.memory_space<vmem>>, vector<1x128xf32>,
    } else {
    }
    %c0_208 = arith.constant 0 : index
    %c0_209 = arith.constant 0 : index
    %623 = vector.load %arg14[%c0_208, %c0_209] : memref<1x128xf32, #tpu.memory_space<vmem>>, vector<1x128xf32>
    %624 = arith.addf %623, %619 : vector<1x128xf32>
    %c0_210 = arith.constant 0 : index
    %c0_211 = arith.constant 0 : index
    %625 = vector.load %arg14[%c0_210, %c0_211] : memref<1x128xf32, #tpu.memory_space<vmem>>, vector<1x128xf32>
    tpu.vector_store %arg14[%c0_210, %c0_211], %624 {strides = array<i32>} : memref<1x128xf32, #tpu.memory_space<vmem>>, vector<1x128xf32>,
    return
  }
  func.func @transform_0(%arg0: i32, %arg1: i32) -> (i32, i32) {
    %c0_i32 = arith.constant 0 : i32
    %c0_i32_0 = arith.constant 0 : i32
    %c0_i32_1 = arith.constant 0 : i32
    return %c0_i32, %c0_i32_0 : i32, i32
  }
  func.func @transform_1(%arg0: i32, %arg1: i32) -> (i32, i32) {
    %c0_i32 = arith.constant 0 : i32
    %c0_i32_0 = arith.constant 0 : i32
    %c0_i32_1 = arith.constant 0 : i32
    return %c0_i32, %c0_i32_0 : i32, i32
  }
  func.func @transform_2(%arg0: i32, %arg1: i32) -> (i32, i32) {
    %c0_i32 = arith.constant 0 : i32
    %c0_i32_0 = arith.constant 0 : i32
    %c0_i32_1 = arith.constant 0 : i32
    return %c0_i32, %c0_i32_0 : i32, i32
  }
  func.func @transform_3(%arg0: i32, %arg1: i32) -> (i32, i32) {
    %c0_i32 = arith.constant 0 : i32
    %c0_i32_0 = arith.constant 0 : i32
    %c0_i32_1 = arith.constant 0 : i32
    return %c0_i32, %c0_i32_0 : i32, i32
  }
  func.func @transform_4(%arg0: i32, %arg1: i32) -> (i32, i32) {
    %c0_i32 = arith.constant 0 : i32
    %c0_i32_0 = arith.constant 0 : i32
    %c0_i32_1 = arith.constant 0 : i32
    return %c0_i32, %c0_i32_0 : i32, i32
  }
  func.func @transform_5(%arg0: i32, %arg1: i32) -> (i32, i32) {
    %c0_i32 = arith.constant 0 : i32
    %c0_i32_0 = arith.constant 0 : i32
    %c0_i32_1 = arith.constant 0 : i32
    return %c0_i32, %c0_i32_0 : i32, i32
  }
  func.func @transform_6(%arg0: i32, %arg1: i32) -> (i32, i32) {
    %c0_i32 = arith.constant 0 : i32
    %c0_i32_0 = arith.constant 0 : i32
    %c0_i32_1 = arith.constant 0 : i32
    return %c0_i32, %c0_i32_0 : i32, i32
  }
  func.func @transform_7(%arg0: i32, %arg1: i32) -> (i32, i32) {
    %c0_i32 = arith.constant 0 : i32
    %c0_i32_0 = arith.constant 0 : i32
    %c0_i32_1 = arith.constant 0 : i32
    return %c0_i32, %c0_i32_0 : i32, i32
  }
  func.func @transform_8(%arg0: i32, %arg1: i32) -> (i32, i32) {
    %c0_i32 = arith.constant 0 : i32
    %c0_i32_0 = arith.constant 0 : i32
    %c0_i32_1 = arith.constant 0 : i32
    return %c0_i32, %c0_i32_0 : i32, i32
  }
  func.func @transform_9(%arg0: i32, %arg1: i32) -> (i32, i32) {
    %c0_i32 = arith.constant 0 : i32
    %c0_i32_0 = arith.constant 0 : i32
    %c0_i32_1 = arith.constant 0 : i32
    return %c0_i32, %c0_i32_0 : i32, i32
  }
  func.func @transform_10(%arg0: i32, %arg1: i32) -> (i32, i32) {
    %c0_i32 = arith.constant 0 : i32
    %c0_i32_0 = arith.constant 0 : i32
    %c0_i32_1 = arith.constant 0 : i32
    return %c0_i32, %c0_i32_0 : i32, i32
  }
  func.func @transform_11(%arg0: i32, %arg1: i32) -> (i32, i32) {
    %c0_i32 = arith.constant 0 : i32
    %c0_i32_0 = arith.constant 0 : i32
    %c0_i32_1 = arith.constant 0 : i32
    return %c0_i32, %c0_i32_0 : i32, i32
  }
  func.func @transform_12(%arg0: i32, %arg1: i32) -> (i32, i32) {
    %c0_i32 = arith.constant 0 : i32
    %c0_i32_0 = arith.constant 0 : i32
    return %arg0, %c0_i32 : i32, i32
  }
}

</mosaic_0001>

<llo_original>
// kernel: tpu_custom_call.1
$region0: #{tpu_custom_call.1}
  #allocation0 [shape = 'u32[]', space=smem, size = 0x4, offset = 0x4, fixed_abs, tag = 'smem constant byte address 0x4 - core index']
  #allocation1 [shape = 'u32[72,128]{1,0:T(1,128)}', space=vmem, size = 0x9000, scoped, tag = 'internal scratch']
  #allocation2 [shape = 'f32[40,128]{1,0:T(8,128)}', space=vmem, size = 0x5000, scoped, tag = 'scratch operand']
  #allocation3 [shape = 'bf16[64,32]{1,0:T(8,128)(2,1)}', space=vmem, size = 0x4000, scoped, tag = 'scratch operand']
  #allocation4 [shape = 'f32[64,128]{1,0:T(8,128)}', space=vmem, size = 0x8000, scoped, tag = 'scratch operand']
  %s0 = inlined_call_operand.vmem [shape: bf16[40,16], index: 0, kind: input, shape index: {}]
  %s1 = inlined_call_operand.hbm [shape: bf16[16,128], index: 1, kind: input, shape index: {}]
  %s2 = inlined_call_operand.hbm [shape: f32[1,128], index: 2, kind: input, shape index: {}]
  %s3 = inlined_call_operand.vmem [shape: bf16[32,128], index: 3, kind: input, shape index: {}]
  %s4 = inlined_call_operand.hbm [shape: bf16[32,128], index: 4, kind: input, shape index: {}]
  %s5 = inlined_call_operand.vmem [shape: bf16[32,128], index: 5, kind: input, shape index: {}]
  %s6 = inlined_call_operand.vmem [shape: f32[1,128], index: 6, kind: input, shape index: {}]
  %s7 = inlined_call_operand.hbm [shape: bf16[32,128], index: 7, kind: input, shape index: {}]
  %s8 = inlined_call_operand.hbm [shape: bf16[32,128], index: 8, kind: input, shape index: {}]
  %s9 = inlined_call_operand.vmem [shape: f32[1,128], index: 9, kind: input, shape index: {}]
  %s10 = inlined_call_operand.hbm [shape: bf16[32,128], index: 10, kind: input, shape index: {}]
  %s11 = inlined_call_operand.vmem [shape: f32[1,128], index: 11, kind: input, shape index: {}]
  %s12 = inlined_call_operand.hbm [shape: f32[1,128], index: 12, kind: output, shape index: {}]
  %s13 = sld [smem:[#allocation0]]
  $region86: #{tpu_custom_call.1} parent=0
    _
  %s15 = ssub.s32 1, %s13
  %s16 = scalar_select 0, %s15, %s13
  $region1: #{tpu_custom_call.1} parent=0
    #allocation5 [shape = 'u8[4096]{0}', space=vmem, size = 0x1000, scoped, tag = 'input window, operand 1, single buffered']
    #allocation6 [shape = 's32[1]{0}', space=sflag, size = 0x4, scoped, tag = 'scoped memory for tpu_custom_call.1']
    #allocation7 [shape = 's32[1]{0}', space=sflag, size = 0x4, scoped, tag = 'scoped memory for tpu_custom_call.1']
    #allocation8 [shape = 'u8[512]{0}', space=vmem, size = 0x400, scoped, tag = 'input window, operand 2, single buffered']
    #allocation9 [shape = 's32[1]{0}', space=sflag, size = 0x4, scoped, tag = 'scoped memory for tpu_custom_call.1']
    #allocation10 [shape = 'u8[8192]{0}', space=vmem, size = 0x2000, scoped, tag = 'input window, operand 4, single buffered']
    #allocation11 [shape = 'u8[8192]{0}', space=vmem, size = 0x2000, scoped, tag = 'input window, operand 7, single buffered']
    #allocation12 [shape = 's32[1]{0}', space=sflag, size = 0x4, scoped, tag = 'scoped memory for tpu_custom_call.1']
    #allocation13 [shape = 'u8[8192]{0}', space=vmem, size = 0x2000, scoped, tag = 'input window, operand 8, single buffered']
    #allocation14 [shape = 'u8[8192]{0}', space=vmem, size = 0x2000, scoped, tag = 'input window, operand 10, single buffered']
    #allocation15 [shape = 's32[1]{0}', space=sflag, size = 0x4, scoped, tag = 'scoped memory for tpu_custom_call.1']
    #allocation16 [shape = 'u8[512]{0}', space=vmem, size = 0x400, scoped, tag = 'output window, operand 0, single buffered']
    %17 = vsyncpa [#allocation6], 0
    %18 = vsyncpa [#allocation9], 0
    %19 = vsyncpa [#allocation12], 0
    %20 = vsyncpa [#allocation15], 0
    %21 = vsyncpa [#allocation7], 0
    // Predicated region
    $region2: #{tpu_custom_call.1} parent=1 // pred_check
      _
    $region3: #{tpu_custom_call.1} parent=1 // pred_check_branch
      %23 = sbr.rel (0) target = $region5
    $region4: #{tpu_custom_call.1} parent=1 // pred_region
      _
    $region5: #{tpu_custom_call.1} parent=1 // pred_fallthru
      _
    // Predicated region
    $region6: #{tpu_custom_call.1} parent=1 // pred_check
      _
    $region7: #{tpu_custom_call.1} parent=1 // pred_check_branch
      %25 = sbr.rel (0) target = $region9
    $region8: #{tpu_custom_call.1} parent=1 // pred_region
      %27 = vsyncadd [#allocation6], 0
      %s28 = sshll.u32 %s1, 4
      %s29 = int_to_ptr.hbm [resolvable:$true] %s28
      %s30 = sshll.u32 [#allocation5], 4
      %s31 = int_to_ptr.vmem [resolvable:$true] %s30
      %36 = dma.hbm_to_vmem [thread:$0]  %s29, 128, %s31, [#allocation6], 64, 64, 4
    $region9: #{tpu_custom_call.1} parent=1 // pred_fallthru
      _
    // Predicated region
    $region10: #{tpu_custom_call.1} parent=1 // pred_check
      _
    $region11: #{tpu_custom_call.1} parent=1 // pred_check_branch
      %38 = sbr.rel (0) target = $region13
    $region12: #{tpu_custom_call.1} parent=1 // pred_region
      %40 = vsyncadd [#allocation9], 0
      %s42 = sshll.u32 %s2, 4
      %s43 = int_to_ptr.hbm [resolvable:$true] %s42
      %s44 = sshll.u32 [#allocation8], 4
      %s45 = int_to_ptr.vmem [resolvable:$true] %s44
      %47 = dma.hbm_to_vmem [thread:$0]  %s43, 16, %s45, [#allocation9]
    $region13: #{tpu_custom_call.1} parent=1 // pred_fallthru
      _
    // Predicated region
    $region14: #{tpu_custom_call.1} parent=1 // pred_check
      _
    $region15: #{tpu_custom_call.1} parent=1 // pred_check_branch
      %49 = sbr.rel (0) target = $region17
    $region16: #{tpu_custom_call.1} parent=1 // pred_region
      _
    $region17: #{tpu_custom_call.1} parent=1 // pred_fallthru
      _
    // Predicated region
    $region18: #{tpu_custom_call.1} parent=1 // pred_check
      _
    $region19: #{tpu_custom_call.1} parent=1 // pred_check_branch
      %51 = sbr.rel (0) target = $region21
    $region20: #{tpu_custom_call.1} parent=1 // pred_region
      %53 = vsyncadd [#allocation9], 0
      %s54 = sshll.u32 %s4, 4
      %s55 = int_to_ptr.hbm [resolvable:$true] %s54
      %s56 = sshll.u32 [#allocation10], 4
      %s57 = int_to_ptr.vmem [resolvable:$true] %s56
      %62 = dma.hbm_to_vmem [thread:$0]  %s55, 256, %s57, [#allocation9], 64, 64, 4
    $region21: #{tpu_custom_call.1} parent=1 // pred_fallthru
      _
    // Predicated region
    $region22: #{tpu_custom_call.1} parent=1 // pred_check
      _
    $region23: #{tpu_custom_call.1} parent=1 // pred_check_branch
      %64 = sbr.rel (0) target = $region25
    $region24: #{tpu_custom_call.1} parent=1 // pred_region
      _
    $region25: #{tpu_custom_call.1} parent=1 // pred_fallthru
      _
    // Predicated region
    $region26: #{tpu_custom_call.1} parent=1 // pred_check
      _
    $region27: #{tpu_custom_call.1} parent=1 // pred_check_branch
      %66 = sbr.rel (0) target = $region29
    $region28: #{tpu_custom_call.1} parent=1 // pred_region
      _
    $region29: #{tpu_custom_call.1} parent=1 // pred_fallthru
      _
    // Predicated region
    $region30: #{tpu_custom_call.1} parent=1 // pred_check
      _
    $region31: #{tpu_custom_call.1} parent=1 // pred_check_branch
      %68 = sbr.rel (0) target = $region33
    $region32: #{tpu_custom_call.1} parent=1 // pred_region
      %70 = vsyncadd [#allocation12], 0
      %s71 = sshll.u32 %s7, 4
      %s72 = int_to_ptr.hbm [resolvable:$true] %s71
      %s73 = sshll.u32 [#allocation11], 4
      %s74 = int_to_ptr.vmem [resolvable:$true] %s73
      %79 = dma.hbm_to_vmem [thread:$0]  %s72, 256, %s74, [#allocation12], 64, 64, 4
    $region33: #{tpu_custom_call.1} parent=1 // pred_fallthru
      _
    // Predicated region
    $region34: #{tpu_custom_call.1} parent=1 // pred_check
      _
    $region35: #{tpu_custom_call.1} parent=1 // pred_check_branch
      %81 = sbr.rel (0) target = $region37
    $region36: #{tpu_custom_call.1} parent=1 // pred_region
      %83 = vsyncadd [#allocation12], 0
      %s84 = sshll.u32 %s8, 4
      %s85 = int_to_ptr.hbm [resolvable:$true] %s84
      %s86 = sshll.u32 [#allocation13], 4
      %s87 = int_to_ptr.vmem [resolvable:$true] %s86
      %92 = dma.hbm_to_vmem [thread:$0]  %s85, 256, %s87, [#allocation12], 64, 64, 4
    $region37: #{tpu_custom_call.1} parent=1 // pred_fallthru
      _
    // Predicated region
    $region38: #{tpu_custom_call.1} parent=1 // pred_check
      _
    $region39: #{tpu_custom_call.1} parent=1 // pred_check_branch
      %94 = sbr.rel (0) target = $region41
    $region40: #{tpu_custom_call.1} parent=1 // pred_region
      _
    $region41: #{tpu_custom_call.1} parent=1 // pred_fallthru
      _
    // Predicated region
    $region42: #{tpu_custom_call.1} parent=1 // pred_check
      _
    $region43: #{tpu_custom_call.1} parent=1 // pred_check_branch
      %96 = sbr.rel (0) target = $region45
    $region44: #{tpu_custom_call.1} parent=1 // pred_region
      %98 = vsyncadd [#allocation15], 0
      %s99 = sshll.u32 %s10, 4
      %s100 = int_to_ptr.hbm [resolvable:$true] %s99
      %s101 = sshll.u32 [#allocation14], 4
      %s102 = int_to_ptr.vmem [resolvable:$true] %s101
      %107 = dma.hbm_to_vmem [thread:$0]  %s100, 256, %s102, [#allocation15], 64, 64, 4
    $region45: #{tpu_custom_call.1} parent=1 // pred_fallthru
      _
    // Predicated region
    $region46: #{tpu_custom_call.1} parent=1 // pred_check
      _
    $region47: #{tpu_custom_call.1} parent=1 // pred_check_branch
      %109 = sbr.rel (0) target = $region49
    $region48: #{tpu_custom_call.1} parent=1 // pred_region
      _
    $region49: #{tpu_custom_call.1} parent=1 // pred_fallthru
      _
    // Predicated region
    $region50: #{tpu_custom_call.1} parent=1 // pred_check
      _
    $region51: #{tpu_custom_call.1} parent=1 // pred_check_branch
      %111 = sbr.rel (0) target = $region53
    $region52: #{tpu_custom_call.1} parent=1 // pred_region
      %113 = dma.done [#allocation6], 128
    $region53: #{tpu_custom_call.1} parent=1 // pred_fallthru
      _
    // Predicated region
    $region54: #{tpu_custom_call.1} parent=1 // pred_check
      _
    $region55: #{tpu_custom_call.1} parent=1 // pred_check_branch
      %115 = sbr.rel (0) target = $region57
    $region56: #{tpu_custom_call.1} parent=1 // pred_region
      %117 = dma.done [#allocation9], 16
    $region57: #{tpu_custom_call.1} parent=1 // pred_fallthru
      _
    // Predicated region
    $region58: #{tpu_custom_call.1} parent=1 // pred_check
      _
    $region59: #{tpu_custom_call.1} parent=1 // pred_check_branch
      %119 = sbr.rel (0) target = $region61
    $region60: #{tpu_custom_call.1} parent=1 // pred_region
      %121 = dma.done [#allocation9], 256
    $region61: #{tpu_custom_call.1} parent=1 // pred_fallthru
      _
    // Predicated region
    $region62: #{tpu_custom_call.1} parent=1 // pred_check
      _
    $region63: #{tpu_custom_call.1} parent=1 // pred_check_branch
      %123 = sbr.rel (0) target = $region65
    $region64: #{tpu_custom_call.1} parent=1 // pred_region
      %125 = dma.done [#allocation12], 256
    $region65: #{tpu_custom_call.1} parent=1 // pred_fallthru
      _
    // Predicated region
    $region66: #{tpu_custom_call.1} parent=1 // pred_check
      _
    $region67: #{tpu_custom_call.1} parent=1 // pred_check_branch
      %127 = sbr.rel (0) target = $region69
    $region68: #{tpu_custom_call.1} parent=1 // pred_region
      %129 = dma.done [#allocation12], 256
    $region69: #{tpu_custom_call.1} parent=1 // pred_fallthru
      _
    // Predicated region
    $region70: #{tpu_custom_call.1} parent=1 // pred_check
      _
    $region71: #{tpu_custom_call.1} parent=1 // pred_check_branch
      %131 = sbr.rel (0) target = $region73
    $region72: #{tpu_custom_call.1} parent=1 // pred_region
      %133 = dma.done [#allocation15], 256
    $region73: #{tpu_custom_call.1} parent=1 // pred_fallthru
      _
    %s135 = sadd.s32 0, 0
    %s136 = smul.u32 %s135, 32
    %s137 = sshra.s32 %s136, 3
    %s138 = sand.u32 %s136, 7
    %s139 = smul.addr %s137, 4
    %s140 = scalar_lea.vmem %s0, %s139
    %v141 = vld [vmem:[%s140] sm:$0xf]
    %v142 = vld [vmem:[%s140 + $0x4] sm:$0xf]
    %v143 = vld [vmem:[%s140 + $0x8] sm:$0xf]
    %v144 = vld [vmem:[%s140 + $0xc] sm:$0xf]
    %v145 = vld [vmem:[%s140 + $0x10] sm:$0xf]
    %v146 = vld [vmem:[#allocation5] sm:$0xf]
    %v147 = vld [vmem:[#allocation5 + $0x4] sm:$0xf]
    %v148 = vld [vmem:[#allocation8] sm:$0x1]
    %v150 = vperm.slane %v148, 0
    %v157 = vunpack.c.l.b16 %v141
    %v158 = vunpack.c.l.b16 %v142
    %v159 = vunpack.c.l.b16 %v143
    %v160 = vunpack.c.l.b16 %v144
    %v161 = vunpack.c.l.b16 %v145
    %v162 = vpack.c.b16 %v158, %v157
    %v163 = vpack.c.b16 %v160, %v159
    %v164 = vpack.c.b16 %v161, %v161
    %v167 = vunpack.c.l.b16 %v146
    %v168 = vunpack.c.l.b16 %v147
    %v169 = vpack.c.b16 %v168, %v167
    %vm171 = vcmask 130048
    %v173 = vsel %vm171, %v162, 0
    %v176 = vsel %vm171, %v163, 0
    %v179 = vsel %vm171, %v164, 0
    %181 = vmatpush.bf16.msra.mxu0 0
    %182 = vmatpush.bf16.msra.mxu0 0
    %183 = vmatpush.bf16.msra.mxu0 0
    %184 = vmatpush.bf16.msra.mxu0 0
    %185 = vmatpush.bf16.msra.mxu0 0
    %186 = vmatpush.bf16.msra.mxu0 0
    %187 = vmatpush.bf16.msra.mxu0 0
    %188 = vmatpush.bf16.msra.mxu0 %v169
    %189 = vmatmul.bf16.gmra.mxu0 %v173
    %v190 = vpop.f32.mrf.mxu0
    %v191 = vadd.f32 %v150, %v190
    %v192 = vpop.f32.mrf.mxu0
    %v193 = vadd.f32 %v150, %v192
    %194 = vmatmul.bf16.gmra.mxu0 %v176
    %v195 = vpop.f32.mrf.mxu0
    %v196 = vadd.f32 %v150, %v195
    %v197 = vpop.f32.mrf.mxu0
    %v198 = vadd.f32 %v150, %v197
    %199 = vmatmul.bf16.gmra.mxu0 %v179
    %v200 = vpop.f32.mrf.mxu0
    %v201 = vadd.f32 %v150, %v200
    %v202 = vpop.f32.mrf.mxu0
    %203 = vdwg.mxu0
    %204 = vst [vmem:[#allocation2] sm:$0xff] %v191
    %205 = vst [vmem:[#allocation2 + $0x8] sm:$0xff] %v193
    %206 = vst [vmem:[#allocation2 + $0x10] sm:$0xff] %v196
    %207 = vst [vmem:[#allocation2 + $0x18] sm:$0xff] %v198
    %208 = vst [vmem:[#allocation2 + $0x20] sm:$0xff] %v201
    %v209 = vld [vmem:[%s3] sm:$0xf]
    %v210 = vld [vmem:[%s3 + $0x4] sm:$0xf]
    %v211 = vld [vmem:[%s3 + $0x8] sm:$0xf]
    %v212 = vld [vmem:[%s3 + $0xc] sm:$0xf]
    %v213 = vld [vmem:[#allocation2] ss:$4 sm:$0xff]
    %v218 = vunpack.c.l.b16 %v209
    %v219 = vunpack.c.l.b16 %v210
    %v220 = vunpack.c.l.b16 %v211
    %v221 = vunpack.c.l.b16 %v212
    %v222 = vpack.c.b16 %v219, %v218
    %v223 = vpack.c.b16 %v221, %v220
    %vm226 = vcmask 261120
    %v228 = vsel %vm226, 0, 0
    %230 = vmatpush.bf16.msra.mxu0 0
    %231 = vmatpush.bf16.msra.mxu0 0
    %232 = vmatpush.bf16.msra.mxu0 0
    %233 = vmatpush.bf16.msra.mxu0 0
    %234 = vmatpush.bf16.msra.mxu0 0
    %235 = vmatpush.bf16.msra.mxu0 0
    %236 = vmatpush.bf16.msra.mxu0 %v223
    %237 = vmatpush.bf16.msra.mxu0 %v222
    %238 = vmatmul.bf16.gmra.mxu0 %v228
    %v239 = vpop.f32.mrf.mxu0
    %v240 = vadd.f32 0.0, %v239
    %v241 = vpop.f32.mrf.mxu0
    %242 = vdwg.mxu0
    %v243 = vadd.f32 %v213, %v240
    %v244 = vxor.u32 %v243, 2147483648
    %v245 = vmul.f32 %v244, 1.442695
    %v246 = vpow.pop %v245
    %v247 = vadd.f32 %v246, 1.0
    %v248 = vrcp.pop %v247
    %v249 = vmul.f32 %v247, %v248
    %v250 = vsub.f32 1.0, %v249
    %v251 = vmul.f32 %v248, %v250
    %v252 = vadd.f32 %v248, %v251
    %vm253 = vweird.f32 %v247
    %vm254 = vweird.f32 %v248
    %vm255 = vmor %vm253, %vm254
    %v256 = vsel %vm255, %v248, %v252
    %v257 = vand.u32 2147483647, %v247
    %vm258 = vcmp.eq.f32.partialorder %v257, 8.507059e+37
    %v259 = vand.u32 %v247, 2147483648
    %v260 = vor.u32 1.1754944e-38, %v259
    %v261 = vsel %vm258, %v260, %v256
    %v262 = vmul.f32 1.0, %v261
    %v263 = vmul.f32 %v262, 2.0
    %v264 = vsub.f32 %v263, 1.0
    %v265 = vmul.f32 %v262, 0.0
    %267 = vrot.lane.b32.xlu0 %v264, 64
    %v268 = vpop.permute.xlu0 %267
    %v270 = vmul.f32 %v262, %v268
    %272 = vrot.lane.b32.xlu0 %v270, 32
    %v273 = vpop.permute.xlu0 %272
    %v275 = vadd.f32 %v265, %v273
    %v276 = vtanh.pop %v275
    %278 = vrot.lane.b32.xlu0 %v276, 64
    %v279 = vpop.permute.xlu0 %278
    %v281 = vmul.f32 %v262, %v279
    %v282 = vpack.c.bf16 %v281, %v281
    %284 = vrot.lane.b32.xlu0 %v282, 32
    %v285 = vpop.permute.xlu0 %284
    %vm287 = vcmask 257024
    %288 = vst.msk [vmem:[#allocation3] sm:$0xf] %vm287, %v285
    %s289 = scalar_lea.vmem [#allocation2], 1
    %v290 = vld [vmem:[%s289] ss:$4 sm:$0xff]
    %v291 = vunpack.c.l.b16 %v282
    %v292 = vpack.c.b16 %v291, %v291
    %293 = vrot.lane.b32.xlu0 %v292, 32
    %v294 = vpop.permute.xlu0 %293
    %v296 = vsel %vm226, %v294, 0
    %298 = vmatpush.bf16.msra.mxu0 0
    %299 = vmatpush.bf16.msra.mxu0 0
    %300 = vmatpush.bf16.msra.mxu0 0
    %301 = vmatpush.bf16.msra.mxu0 0
    %302 = vmatpush.bf16.msra.mxu0 0
    %303 = vmatpush.bf16.msra.mxu0 0
    %304 = vmatpush.bf16.msra.mxu0 %v223
    %305 = vmatpush.bf16.msra.mxu0 %v222
    %306 = vmatmul.bf16.gmra.mxu0 %v296
    %v307 = vpop.f32.mrf.mxu0
    %v308 = vadd.f32 0.0, %v307
    %v309 = vpop.f32.mrf.mxu0
    %310 = vdwg.mxu0
    %v311 = vadd.f32 %v290, %v308
    %v312 = vxor.u32 %v311, 2147483648
    %v313 = vmul.f32 %v312, 1.442695
    %v314 = vpow.pop %v313
    %v315 = vadd.f32 %v314, 1.0
    %v316 = vrcp.pop %v315
    %v317 = vmul.f32 %v315, %v316
    %v318 = vsub.f32 1.0, %v317
    %v319 = vmul.f32 %v316, %v318
    %v320 = vadd.f32 %v316, %v319
    %vm321 = vweird.f32 %v315
    %vm322 = vweird.f32 %v316
    %vm323 = vmor %vm321, %vm322
    %v324 = vsel %vm323, %v316, %v320
    %v325 = vand.u32 2147483647, %v315
    %vm326 = vcmp.eq.f32.partialorder %v325, 8.507059e+37
    %v327 = vand.u32 %v315, 2147483648
    %v328 = vor.u32 1.1754944e-38, %v327
    %v329 = vsel %vm326, %v328, %v324
    %v330 = vmul.f32 1.0, %v329
    %v331 = vmul.f32 %v330, 2.0
    %v332 = vsub.f32 %v331, 1.0
    %v333 = vmul.f32 %v330, %v275
    %335 = vrot.lane.b32.xlu0 %v332, 64
    %v336 = vpop.permute.xlu0 %335
    %v338 = vmul.f32 %v330, %v336
    %340 = vrot.lane.b32.xlu0 %v338, 32
    %v341 = vpop.permute.xlu0 %340
    %v343 = vadd.f32 %v333, %v341
    %v344 = vtanh.pop %v343
    %346 = vrot.lane.b32.xlu0 %v344, 64
    %v347 = vpop.permute.xlu0 %346
    %v349 = vmul.f32 %v330, %v347
    %v350 = vpack.c.bf16 %v349, %v349
    %352 = vrot.lane.b32.xlu0 %v350, 32
    %v353 = vpop.permute.xlu0 %352
    %355 = vst.msk [vmem:[#allocation3 + $0x4] sm:$0xf] %vm287, %v353
    %s356 = scalar_lea.vmem [#allocation2], 2
    %v357 = vld [vmem:[%s356] ss:$4 sm:$0xff]
    %v358 = vunpack.c.l.b16 %v350
    %v359 = vpack.c.b16 %v358, %v358
    %360 = vrot.lane.b32.xlu0 %v359, 32
    %v361 = vpop.permute.xlu0 %360
    %v363 = vsel %vm226, %v361, 0
    %365 = vmatpush.bf16.msra.mxu0 0
    %366 = vmatpush.bf16.msra.mxu0 0
    %367 = vmatpush.bf16.msra.mxu0 0
    %368 = vmatpush.bf16.msra.mxu0 0
    %369 = vmatpush.bf16.msra.mxu0 0
    %370 = vmatpush.bf16.msra.mxu0 0
    %371 = vmatpush.bf16.msra.mxu0 %v223
    %372 = vmatpush.bf16.msra.mxu0 %v222
    %373 = vmatmul.bf16.gmra.mxu0 %v363
    %v374 = vpop.f32.mrf.mxu0
    %v375 = vadd.f32 0.0, %v374
    %v376 = vpop.f32.mrf.mxu0
    %377 = vdwg.mxu0
    %v378 = vadd.f32 %v357, %v375
    %v379 = vxor.u32 %v378, 2147483648
    %v380 = vmul.f32 %v379, 1.442695
    %v381 = vpow.pop %v380
    %v382 = vadd.f32 %v381, 1.0
    %v383 = vrcp.pop %v382
    %v384 = vmul.f32 %v382, %v383
    %v385 = vsub.f32 1.0, %v384
    %v386 = vmul.f32 %v383, %v385
    %v387 = vadd.f32 %v383, %v386
    %vm388 = vweird.f32 %v382
    %vm389 = vweird.f32 %v383
    %vm390 = vmor %vm388, %vm389
    %v391 = vsel %vm390, %v383, %v387
    %v392 = vand.u32 2147483647, %v382
    %vm393 = vcmp.eq.f32.partialorder %v392, 8.507059e+37
    %v394 = vand.u32 %v382, 2147483648
    %v395 = vor.u32 1.1754944e-38, %v394
    %v396 = vsel %vm393, %v395, %v391
    %v397 = vmul.f32 1.0, %v396
    %v398 = vmul.f32 %v397, 2.0
    %v399 = vsub.f32 %v398, 1.0
    %v400 = vmul.f32 %v397, %v343
    %402 = vrot.lane.b32.xlu0 %v399, 64
    %v403 = vpop.permute.xlu0 %402
    %v405 = vmul.f32 %v397, %v403
    %407 = vrot.lane.b32.xlu0 %v405, 32
    %v408 = vpop.permute.xlu0 %407
    %v410 = vadd.f32 %v400, %v408
    %v411 = vtanh.pop %v410
    %413 = vrot.lane.b32.xlu0 %v411, 64
    %v414 = vpop.permute.xlu0 %413
    %v416 = vmul.f32 %v397, %v414
    %v417 = vpack.c.bf16 %v416, %v416
    %419 = vrot.lane.b32.xlu0 %v417, 32
    %v420 = vpop.permute.xlu0 %419
    %422 = vst.msk [vmem:[#allocation3 + $0x8] sm:$0xf] %vm287, %v420
    %s423 = scalar_lea.vmem [#allocation2], 3
    %v424 = vld [vmem:[%s423] ss:$4 sm:$0xff]
    %v425 = vunpack.c.l.b16 %v417
    %v426 = vpack.c.b16 %v425, %v425
    %427 = vrot.lane.b32.xlu0 %v426, 32
    %v428 = vpop.permute.xlu0 %427
    %v430 = vsel %vm226, %v428, 0
    %432 = vmatpush.bf16.msra.mxu0 0
    %433 = vmatpush.bf16.msra.mxu0 0
    %434 = vmatpush.bf16.msra.mxu0 0
    %435 = vmatpush.bf16.msra.mxu0 0
    %436 = vmatpush.bf16.msra.mxu0 0
    %437 = vmatpush.bf16.msra.mxu0 0
    %438 = vmatpush.bf16.msra.mxu0 %v223
    %439 = vmatpush.bf16.msra.mxu0 %v222
    %440 = vmatmul.bf16.gmra.mxu0 %v430
    %v441 = vpop.f32.mrf.mxu0
    %v442 = vadd.f32 0.0, %v441
    %v443 = vpop.f32.mrf.mxu0
    %444 = vdwg.mxu0
    %v445 = vadd.f32 %v424, %v442
    %v446 = vxor.u32 %v445, 2147483648
    %v447 = vmul.f32 %v446, 1.442695
    %v448 = vpow.pop %v447
    %v449 = vadd.f32 %v448, 1.0
    %v450 = vrcp.pop %v449
    %v451 = vmul.f32 %v449, %v450
    %v452 = vsub.f32 1.0, %v451
    %v453 = vmul.f32 %v450, %v452
    %v454 = vadd.f32 %v450, %v453
    %vm455 = vweird.f32 %v449
    %vm456 = vweird.f32 %v450
    %vm457 = vmor %vm455, %vm456
    %v458 = vsel %vm457, %v450, %v454
    %v459 = vand.u32 2147483647, %v449
    %vm460 = vcmp.eq.f32.partialorder %v459, 8.507059e+37
    %v461 = vand.u32 %v449, 2147483648
    %v462 = vor.u32 1.1754944e-38, %v461
    %v463 = vsel %vm460, %v462, %v458
    %v464 = vmul.f32 1.0, %v463
    %v465 = vmul.f32 %v464, 2.0
    %v466 = vsub.f32 %v465, 1.0
    %v467 = vmul.f32 %v464, %v410
    %469 = vrot.lane.b32.xlu0 %v466, 64
    %v470 = vpop.permute.xlu0 %469
    %v472 = vmul.f32 %v464, %v470
    %474 = vrot.lane.b32.xlu0 %v472, 32
    %v475 = vpop.permute.xlu0 %474
    %v477 = vadd.f32 %v467, %v475
    %v478 = vtanh.pop %v477
    %480 = vrot.lane.b32.xlu0 %v478, 64
    %v481 = vpop.permute.xlu0 %480
    %v483 = vmul.f32 %v464, %v481
    %v484 = vpack.c.bf16 %v483, %v483
    %486 = vrot.lane.b32.xlu0 %v484, 32
    %v487 = vpop.permute.xlu0 %486
    %489 = vst.msk [vmem:[#allocation3 + $0xc] sm:$0xf] %vm287, %v487
    %s490 = scalar_lea.vmem [#allocation2], 4
    %v491 = vld [vmem:[%s490] ss:$4 sm:$0xff]
    %v492 = vunpack.c.l.b16 %v484
    %v493 = vpack.c.b16 %v492, %v492
    %494 = vrot.lane.b32.xlu0 %v493, 32
    %v495 = vpop.permute.xlu0 %494
    %v497 = vsel %vm226, %v495, 0
    %499 = vmatpush.bf16.msra.mxu0 0
    %500 = vmatpush.bf16.msra.mxu0 0
    %501 = vmatpush.bf16.msra.mxu0 0
    %502 = vmatpush.bf16.msra.mxu0 0
    %503 = vmatpush.bf16.msra.mxu0 0
    %504 = vmatpush.bf16.msra.mxu0 0
    %505 = vmatpush.bf16.msra.mxu0 %v223
    %506 = vmatpush.bf16.msra.mxu0 %v222
    %507 = vmatmul.bf16.gmra.mxu0 %v497
    %v508 = vpop.f32.mrf.mxu0
    %v509 = vadd.f32 0.0, %v508
    %v510 = vpop.f32.mrf.mxu0
    %511 = vdwg.mxu0
    %v512 = vadd.f32 %v491, %v509
    %v513 = vxor.u32 %v512, 2147483648
    %v514 = vmul.f32 %v513, 1.442695
    %v515 = vpow.pop %v514
    %v516 = vadd.f32 %v515, 1.0
    %v517 = vrcp.pop %v516
    %v518 = vmul.f32 %v516, %v517
    %v519 = vsub.f32 1.0, %v518
    %v520 = vmul.f32 %v517, %v519
    %v521 = vadd.f32 %v517, %v520
    %vm522 = vweird.f32 %v516
    %vm523 = vweird.f32 %v517
    %vm524 = vmor %vm522, %vm523
    %v525 = vsel %vm524, %v517, %v521
    %v526 = vand.u32 2147483647, %v516
    %vm527 = vcmp.eq.f32.partialorder %v526, 8.507059e+37
    %v528 = vand.u32 %v516, 2147483648
    %v529 = vor.u32 1.1754944e-38, %v528
    %v530 = vsel %vm527, %v529, %v525
    %v531 = vmul.f32 1.0, %v530
    %v532 = vmul.f32 %v531, 2.0
    %v533 = vsub.f32 %v532, 1.0
    %v534 = vmul.f32 %v531, %v477
    %536 = vrot.lane.b32.xlu0 %v533, 64
    %v537 = vpop.permute.xlu0 %536
    %v539 = vmul.f32 %v531, %v537
    %541 = vrot.lane.b32.xlu0 %v539, 32
    %v542 = vpop.permute.xlu0 %541
    %v544 = vadd.f32 %v534, %v542
    %v545 = vtanh.pop %v544
    %547 = vrot.lane.b32.xlu0 %v545, 64
    %v548 = vpop.permute.xlu0 %547
    %v550 = vmul.f32 %v531, %v548
    %v551 = vpack.c.bf16 %v550, %v550
    %553 = vrot.lane.b32.xlu0 %v551, 32
    %v554 = vpop.permute.xlu0 %553
    %556 = vst.msk [vmem:[#allocation3 + $0x10] sm:$0xf] %vm287, %v554
    %s557 = scalar_lea.vmem [#allocation2], 5
    %v558 = vld [vmem:[%s557] ss:$4 sm:$0xff]
    %v559 = vunpack.c.l.b16 %v551
    %v560 = vpack.c.b16 %v559, %v559
    %561 = vrot.lane.b32.xlu0 %v560, 32
    %v562 = vpop.permute.xlu0 %561
    %v564 = vsel %vm226, %v562, 0
    %566 = vmatpush.bf16.msra.mxu0 0
    %567 = vmatpush.bf16.msra.mxu0 0
    %568 = vmatpush.bf16.msra.mxu0 0
    %569 = vmatpush.bf16.msra.mxu0 0
    %570 = vmatpush.bf16.msra.mxu0 0
    %571 = vmatpush.bf16.msra.mxu0 0
    %572 = vmatpush.bf16.msra.mxu0 %v223
    %573 = vmatpush.bf16.msra.mxu0 %v222
    %574 = vmatmul.bf16.gmra.mxu0 %v564
    %v575 = vpop.f32.mrf.mxu0
    %v576 = vadd.f32 0.0, %v575
    %v577 = vpop.f32.mrf.mxu0
    %578 = vdwg.mxu0
    %v579 = vadd.f32 %v558, %v576
    %v580 = vxor.u32 %v579, 2147483648
    %v581 = vmul.f32 %v580, 1.442695
    %v582 = vpow.pop %v581
    %v583 = vadd.f32 %v582, 1.0
    %v584 = vrcp.pop %v583
    %v585 = vmul.f32 %v583, %v584
    %v586 = vsub.f32 1.0, %v585
    %v587 = vmul.f32 %v584, %v586
    %v588 = vadd.f32 %v584, %v587
    %vm589 = vweird.f32 %v583
    %vm590 = vweird.f32 %v584
    %vm591 = vmor %vm589, %vm590
    %v592 = vsel %vm591, %v584, %v588
    %v593 = vand.u32 2147483647, %v583
    %vm594 = vcmp.eq.f32.partialorder %v593, 8.507059e+37
    %v595 = vand.u32 %v583, 2147483648
    %v596 = vor.u32 1.1754944e-38, %v595
    %v597 = vsel %vm594, %v596, %v592
    %v598 = vmul.f32 1.0, %v597
    %v599 = vmul.f32 %v598, 2.0
    %v600 = vsub.f32 %v599, 1.0
    %v601 = vmul.f32 %v598, %v544
    %603 = vrot.lane.b32.xlu0 %v600, 64
    %v604 = vpop.permute.xlu0 %603
    %v606 = vmul.f32 %v598, %v604
    %608 = vrot.lane.b32.xlu0 %v606, 32
    %v609 = vpop.permute.xlu0 %608
    %v611 = vadd.f32 %v601, %v609
    %v612 = vtanh.pop %v611
    %614 = vrot.lane.b32.xlu0 %v612, 64
    %v615 = vpop.permute.xlu0 %614
    %v617 = vmul.f32 %v598, %v615
    %v618 = vpack.c.bf16 %v617, %v617
    %620 = vrot.lane.b32.xlu0 %v618, 32
    %v621 = vpop.permute.xlu0 %620
    %623 = vst.msk [vmem:[#allocation3 + $0x14] sm:$0xf] %vm287, %v621
    %s624 = scalar_lea.vmem [#allocation2], 6
    %v625 = vld [vmem:[%s624] ss:$4 sm:$0xff]
    %v626 = vunpack.c.l.b16 %v618
    %v627 = vpack.c.b16 %v626, %v626
    %628 = vrot.lane.b32.xlu0 %v627, 32
    %v629 = vpop.permute.xlu0 %628
    %v631 = vsel %vm226, %v629, 0
    %633 = vmatpush.bf16.msra.mxu0 0
    %634 = vmatpush.bf16.msra.mxu0 0
    %635 = vmatpush.bf16.msra.mxu0 0
    %636 = vmatpush.bf16.msra.mxu0 0
    %637 = vmatpush.bf16.msra.mxu0 0
    %638 = vmatpush.bf16.msra.mxu0 0
    %639 = vmatpush.bf16.msra.mxu0 %v223
    %640 = vmatpush.bf16.msra.mxu0 %v222
    %641 = vmatmul.bf16.gmra.mxu0 %v631
    %v642 = vpop.f32.mrf.mxu0
    %v643 = vadd.f32 0.0, %v642
    %v644 = vpop.f32.mrf.mxu0
    %645 = vdwg.mxu0
    %v646 = vadd.f32 %v625, %v643
    %v647 = vxor.u32 %v646, 2147483648
    %v648 = vmul.f32 %v647, 1.442695
    %v649 = vpow.pop %v648
    %v650 = vadd.f32 %v649, 1.0
    %v651 = vrcp.pop %v650
    %v652 = vmul.f32 %v650, %v651
    %v653 = vsub.f32 1.0, %v652
    %v654 = vmul.f32 %v651, %v653
    %v655 = vadd.f32 %v651, %v654
    %vm656 = vweird.f32 %v650
    %vm657 = vweird.f32 %v651
    %vm658 = vmor %vm656, %vm657
    %v659 = vsel %vm658, %v651, %v655
    %v660 = vand.u32 2147483647, %v650
    %vm661 = vcmp.eq.f32.partialorder %v660, 8.507059e+37
    %v662 = vand.u32 %v650, 2147483648
    %v663 = vor.u32 1.1754944e-38, %v662
    %v664 = vsel %vm661, %v663, %v659
    %v665 = vmul.f32 1.0, %v664
    %v666 = vmul.f32 %v665, 2.0
    %v667 = vsub.f32 %v666, 1.0
    %v668 = vmul.f32 %v665, %v611
    %670 = vrot.lane.b32.xlu0 %v667, 64
    %v671 = vpop.permute.xlu0 %670
    %v673 = vmul.f32 %v665, %v671
    %675 = vrot.lane.b32.xlu0 %v673, 32
    %v676 = vpop.permute.xlu0 %675
    %v678 = vadd.f32 %v668, %v676
    %v679 = vtanh.pop %v678
    %681 = vrot.lane.b32.xlu0 %v679, 64
    %v682 = vpop.permute.xlu0 %681
    %v684 = vmul.f32 %v665, %v682
    %v685 = vpack.c.bf16 %v684, %v684
    %687 = vrot.lane.b32.xlu0 %v685, 32
    %v688 = vpop.permute.xlu0 %687
    %690 = vst.msk [vmem:[#allocation3 + $0x18] sm:$0xf] %vm287, %v688
    %s691 = scalar_lea.vmem [#allocation2], 7
    %v692 = vld [vmem:[%s691] ss:$4 sm:$0xff]
    %v693 = vunpack.c.l.b16 %v685
    %v694 = vpack.c.b16 %v693, %v693
    %695 = vrot.lane.b32.xlu0 %v694, 32
    %v696 = vpop.permute.xlu0 %695
    %v698 = vsel %vm226, %v696, 0
    %700 = vmatpush.bf16.msra.mxu0 0
    %701 = vmatpush.bf16.msra.mxu0 0
    %702 = vmatpush.bf16.msra.mxu0 0
    %703 = vmatpush.bf16.msra.mxu0 0
    %704 = vmatpush.bf16.msra.mxu0 0
    %705 = vmatpush.bf16.msra.mxu0 0
    %706 = vmatpush.bf16.msra.mxu0 %v223
    %707 = vmatpush.bf16.msra.mxu0 %v222
    %708 = vmatmul.bf16.gmra.mxu0 %v698
    %v709 = vpop.f32.mrf.mxu0
    %v710 = vadd.f32 0.0, %v709
    %v711 = vpop.f32.mrf.mxu0
    %712 = vdwg.mxu0
    %v713 = vadd.f32 %v692, %v710
    %v714 = vxor.u32 %v713, 2147483648
    %v715 = vmul.f32 %v714, 1.442695
    %v716 = vpow.pop %v715
    %v717 = vadd.f32 %v716, 1.0
    %v718 = vrcp.pop %v717
    %v719 = vmul.f32 %v717, %v718
    %v720 = vsub.f32 1.0, %v719
    %v721 = vmul.f32 %v718, %v720
    %v722 = vadd.f32 %v718, %v721
    %vm723 = vweird.f32 %v717
    %vm724 = vweird.f32 %v718
    %vm725 = vmor %vm723, %vm724
    %v726 = vsel %vm725, %v718, %v722
    %v727 = vand.u32 2147483647, %v717
    %vm728 = vcmp.eq.f32.partialorder %v727, 8.507059e+37
    %v729 = vand.u32 %v717, 2147483648
    %v730 = vor.u32 1.1754944e-38, %v729
    %v731 = vsel %vm728, %v730, %v726
    %v732 = vmul.f32 1.0, %v731
    %v733 = vmul.f32 %v732, 2.0
    %v734 = vsub.f32 %v733, 1.0
    %v735 = vmul.f32 %v732, %v678
    %737 = vrot.lane.b32.xlu0 %v734, 64
    %v738 = vpop.permute.xlu0 %737
    %v740 = vmul.f32 %v732, %v738
    %742 = vrot.lane.b32.xlu0 %v740, 32
    %v743 = vpop.permute.xlu0 %742
    %v745 = vadd.f32 %v735, %v743
    %v746 = vtanh.pop %v745
    %748 = vrot.lane.b32.xlu0 %v746, 64
    %v749 = vpop.permute.xlu0 %748
    %v751 = vmul.f32 %v732, %v749
    %v752 = vpack.c.bf16 %v751, %v751
    %754 = vrot.lane.b32.xlu0 %v752, 32
    %v755 = vpop.permute.xlu0 %754
    %757 = vst.msk [vmem:[#allocation3 + $0x1c] sm:$0xf] %vm287, %v755
    %v758 = vld [vmem:[#allocation3] sm:$0xf]
    %v759 = vld [vmem:[#allocation3 + $0x4] sm:$0xf]
    %v760 = vld [vmem:[#allocation3 + $0x8] sm:$0xf]
    %v761 = vld [vmem:[#allocation3 + $0xc] sm:$0xf]
    %v762 = vld [vmem:[#allocation3 + $0x10] sm:$0xf]
    %v763 = vld [vmem:[#allocation3 + $0x14] sm:$0xf]
    %v764 = vld [vmem:[#allocation3 + $0x18] sm:$0xf]
    %v765 = vld [vmem:[#allocation3 + $0x1c] sm:$0xf]
    %v766 = vld [vmem:[#allocation10] sm:$0xf]
    %v767 = vld [vmem:[#allocation10 + $0x4] sm:$0xf]
    %v768 = vld [vmem:[#allocation10 + $0x8] sm:$0xf]
    %v769 = vld [vmem:[#allocation10 + $0xc] sm:$0xf]
    %v770 = vld [vmem:[%s6] sm:$0x1]
    %v772 = vperm.slane %v770, 0
    %v782 = vunpack.c.l.b16 %v758
    %v783 = vunpack.c.l.b16 %v759
    %v784 = vunpack.c.l.b16 %v760
    %v785 = vunpack.c.l.b16 %v761
    %v786 = vunpack.c.l.b16 %v762
    %v787 = vunpack.c.l.b16 %v763
    %v788 = vunpack.c.l.b16 %v764
    %v789 = vunpack.c.l.b16 %v765
    %v790 = vpack.c.b16 %v783, %v782
    %v791 = vpack.c.b16 %v785, %v784
    %v792 = vpack.c.b16 %v787, %v786
    %v793 = vpack.c.b16 %v789, %v788
    %v798 = vunpack.c.l.b16 %v766
    %v799 = vunpack.c.l.b16 %v767
    %v800 = vunpack.c.l.b16 %v768
    %v801 = vunpack.c.l.b16 %v769
    %v802 = vpack.c.b16 %v799, %v798
    %v803 = vpack.c.b16 %v801, %v800
    %v807 = vsel %vm226, %v790, 0
    %v810 = vsel %vm226, %v791, 0
    %v813 = vsel %vm226, %v792, 0
    %v816 = vsel %vm226, %v793, 0
    %818 = vmatpush.bf16.msra.mxu0 0
    %819 = vmatpush.bf16.msra.mxu0 0
    %820 = vmatpush.bf16.msra.mxu0 0
    %821 = vmatpush.bf16.msra.mxu0 0
    %822 = vmatpush.bf16.msra.mxu0 0
    %823 = vmatpush.bf16.msra.mxu0 0
    %824 = vmatpush.bf16.msra.mxu0 %v803
    %825 = vmatpush.bf16.msra.mxu0 %v802
    %826 = vmatmul.bf16.gmra.mxu0 %v807
    %v827 = vpop.f32.mrf.mxu0
    %v828 = vadd.f32 %v772, %v827
    %v829 = vpop.f32.mrf.mxu0
    %v830 = vadd.f32 %v772, %v829
    %831 = vmatmul.bf16.gmra.mxu0 %v810
    %v832 = vpop.f32.mrf.mxu0
    %v833 = vadd.f32 %v772, %v832
    %v834 = vpop.f32.mrf.mxu0
    %v835 = vadd.f32 %v772, %v834
    %836 = vmatmul.bf16.gmra.mxu0 %v813
    %v837 = vpop.f32.mrf.mxu0
    %v838 = vadd.f32 %v772, %v837
    %v839 = vpop.f32.mrf.mxu0
    %v840 = vadd.f32 %v772, %v839
    %841 = vmatmul.bf16.gmra.mxu0 %v816
    %v842 = vpop.f32.mrf.mxu0
    %v843 = vadd.f32 %v772, %v842
    %v844 = vpop.f32.mrf.mxu0
    %v845 = vadd.f32 %v772, %v844
    %846 = vdwg.mxu0
    %847 = vst [vmem:[#allocation4] sm:$0xff] %v828
    %848 = vst [vmem:[#allocation4 + $0x8] sm:$0xff] %v830
    %849 = vst [vmem:[#allocation4 + $0x10] sm:$0xff] %v833
    %850 = vst [vmem:[#allocation4 + $0x18] sm:$0xff] %v835
    %851 = vst [vmem:[#allocation4 + $0x20] sm:$0xff] %v838
    %852 = vst [vmem:[#allocation4 + $0x28] sm:$0xff] %v840
    %853 = vst [vmem:[#allocation4 + $0x30] sm:$0xff] %v843
    %854 = vst [vmem:[#allocation4 + $0x38] sm:$0xff] %v845
    %v855 = vld [vmem:[%s5] sm:$0xf]
    %v856 = vld [vmem:[%s5 + $0x4] sm:$0xf]
    %v857 = vld [vmem:[%s5 + $0x8] sm:$0xf]
    %v858 = vld [vmem:[%s5 + $0xc] sm:$0xf]
    %v859 = vld [vmem:[#allocation4] sm:$0xff]
    %v864 = vunpack.c.l.b16 %v855
    %v865 = vunpack.c.l.b16 %v856
    %v866 = vunpack.c.l.b16 %v857
    %v867 = vunpack.c.l.b16 %v858
    %v868 = vpack.c.b16 %v865, %v864
    %v869 = vpack.c.b16 %v867, %v866
    %872 = vmatpush.bf16.msra.mxu0 0
    %873 = vmatpush.bf16.msra.mxu0 0
    %874 = vmatpush.bf16.msra.mxu0 0
    %875 = vmatpush.bf16.msra.mxu0 0
    %876 = vmatpush.bf16.msra.mxu0 0
    %877 = vmatpush.bf16.msra.mxu0 0
    %878 = vmatpush.bf16.msra.mxu0 %v869
    %879 = vmatpush.bf16.msra.mxu0 %v868
    %880 = vmatmul.bf16.gmra.mxu0 %v228
    %v881 = vpop.f32.mrf.mxu0
    %v882 = vadd.f32 0.0, %v881
    %v883 = vpop.f32.mrf.mxu0
    %884 = vdwg.mxu0
    %v885 = vadd.f32 %v859, %v882
    %v886 = vxor.u32 %v885, 2147483648
    %v887 = vmul.f32 %v886, 1.442695
    %v888 = vpow.pop %v887
    %v889 = vadd.f32 %v888, 1.0
    %v890 = vrcp.pop %v889
    %v891 = vmul.f32 %v889, %v890
    %v892 = vsub.f32 1.0, %v891
    %v893 = vmul.f32 %v890, %v892
    %v894 = vadd.f32 %v890, %v893
    %vm895 = vweird.f32 %v889
    %vm896 = vweird.f32 %v890
    %vm897 = vmor %vm895, %vm896
    %v898 = vsel %vm897, %v890, %v894
    %v899 = vand.u32 2147483647, %v889
    %vm900 = vcmp.eq.f32.partialorder %v899, 8.507059e+37
    %v901 = vand.u32 %v889, 2147483648
    %v902 = vor.u32 1.1754944e-38, %v901
    %v903 = vsel %vm900, %v902, %v898
    %v904 = vmul.f32 1.0, %v903
    %v905 = vmul.f32 %v904, 2.0
    %v906 = vsub.f32 %v905, 1.0
    %v907 = vmul.f32 %v904, 0.0
    %909 = vrot.lane.b32.xlu0 %v906, 64
    %v910 = vpop.permute.xlu0 %909
    %v912 = vmul.f32 %v904, %v910
    %914 = vrot.lane.b32.xlu0 %v912, 32
    %v915 = vpop.permute.xlu0 %914
    %v917 = vadd.f32 %v907, %v915
    %v918 = vtanh.pop %v917
    %920 = vrot.lane.b32.xlu0 %v918, 64
    %v921 = vpop.permute.xlu0 %920
    %v923 = vmul.f32 %v904, %v921
    %v924 = vpack.c.bf16 %v923, %v923
    %926 = vrot.lane.b32.xlu0 %v924, 32
    %v927 = vpop.permute.xlu0 %926
    %929 = vst.msk [vmem:[#allocation3] sm:$0xf] %vm287, %v927
    %v930 = vld [vmem:[#allocation4 + $0x8] sm:$0xff]
    %v931 = vunpack.c.l.b16 %v924
    %v932 = vpack.c.b16 %v931, %v931
    %933 = vrot.lane.b32.xlu0 %v932, 32
    %v934 = vpop.permute.xlu0 %933
    %v936 = vsel %vm226, %v934, 0
    %938 = vmatpush.bf16.msra.mxu0 0
    %939 = vmatpush.bf16.msra.mxu0 0
    %940 = vmatpush.bf16.msra.mxu0 0
    %941 = vmatpush.bf16.msra.mxu0 0
    %942 = vmatpush.bf16.msra.mxu0 0
    %943 = vmatpush.bf16.msra.mxu0 0
    %944 = vmatpush.bf16.msra.mxu0 %v869
    %945 = vmatpush.bf16.msra.mxu0 %v868
    %946 = vmatmul.bf16.gmra.mxu0 %v936
    %v947 = vpop.f32.mrf.mxu0
    %v948 = vadd.f32 0.0, %v947
    %v949 = vpop.f32.mrf.mxu0
    %950 = vdwg.mxu0
    %v951 = vadd.f32 %v930, %v948
    %v952 = vxor.u32 %v951, 2147483648
    %v953 = vmul.f32 %v952, 1.442695
    %v954 = vpow.pop %v953
    %v955 = vadd.f32 %v954, 1.0
    %v956 = vrcp.pop %v955
    %v957 = vmul.f32 %v955, %v956
    %v958 = vsub.f32 1.0, %v957
    %v959 = vmul.f32 %v956, %v958
    %v960 = vadd.f32 %v956, %v959
    %vm961 = vweird.f32 %v955
    %vm962 = vweird.f32 %v956
    %vm963 = vmor %vm961, %vm962
    %v964 = vsel %vm963, %v956, %v960
    %v965 = vand.u32 2147483647, %v955
    %vm966 = vcmp.eq.f32.partialorder %v965, 8.507059e+37
    %v967 = vand.u32 %v955, 2147483648
    %v968 = vor.u32 1.1754944e-38, %v967
    %v969 = vsel %vm966, %v968, %v964
    %v970 = vmul.f32 1.0, %v969
    %v971 = vmul.f32 %v970, 2.0
    %v972 = vsub.f32 %v971, 1.0
    %v973 = vmul.f32 %v970, %v917
    %975 = vrot.lane.b32.xlu0 %v972, 64
    %v976 = vpop.permute.xlu0 %975
    %v978 = vmul.f32 %v970, %v976
    %980 = vrot.lane.b32.xlu0 %v978, 32
    %v981 = vpop.permute.xlu0 %980
    %v983 = vadd.f32 %v973, %v981
    %v984 = vtanh.pop %v983
    %986 = vrot.lane.b32.xlu0 %v984, 64
    %v987 = vpop.permute.xlu0 %986
    %v989 = vmul.f32 %v970, %v987
    %v990 = vpack.c.bf16 %v989, %v989
    %992 = vrot.lane.b32.xlu0 %v990, 32
    %v993 = vpop.permute.xlu0 %992
    %995 = vst.msk [vmem:[#allocation3 + $0x4] sm:$0xf] %vm287, %v993
    %v996 = vld [vmem:[#allocation4 + $0x10] sm:$0xff]
    %v997 = vunpack.c.l.b16 %v990
    %v998 = vpack.c.b16 %v997, %v997
    %999 = vrot.lane.b32.xlu0 %v998, 32
    %v1000 = vpop.permute.xlu0 %999
    %v1002 = vsel %vm226, %v1000, 0
    %1004 = vmatpush.bf16.msra.mxu0 0
    %1005 = vmatpush.bf16.msra.mxu0 0
    %1006 = vmatpush.bf16.msra.mxu0 0
    %1007 = vmatpush.bf16.msra.mxu0 0
    %1008 = vmatpush.bf16.msra.mxu0 0
    %1009 = vmatpush.bf16.msra.mxu0 0
    %1010 = vmatpush.bf16.msra.mxu0 %v869
    %1011 = vmatpush.bf16.msra.mxu0 %v868
    %1012 = vmatmul.bf16.gmra.mxu0 %v1002
    %v1013 = vpop.f32.mrf.mxu0
    %v1014 = vadd.f32 0.0, %v1013
    %v1015 = vpop.f32.mrf.mxu0
    %1016 = vdwg.mxu0
    %v1017 = vadd.f32 %v996, %v1014
    %v1018 = vxor.u32 %v1017, 2147483648
    %v1019 = vmul.f32 %v1018, 1.442695
    %v1020 = vpow.pop %v1019
    %v1021 = vadd.f32 %v1020, 1.0
    %v1022 = vrcp.pop %v1021
    %v1023 = vmul.f32 %v1021, %v1022
    %v1024 = vsub.f32 1.0, %v1023
    %v1025 = vmul.f32 %v1022, %v1024
    %v1026 = vadd.f32 %v1022, %v1025
    %vm1027 = vweird.f32 %v1021
    %vm1028 = vweird.f32 %v1022
    %vm1029 = vmor %vm1027, %vm1028
    %v1030 = vsel %vm1029, %v1022, %v1026
    %v1031 = vand.u32 2147483647, %v1021
    %vm1032 = vcmp.eq.f32.partialorder %v1031, 8.507059e+37
    %v1033 = vand.u32 %v1021, 2147483648
    %v1034 = vor.u32 1.1754944e-38, %v1033
    %v1035 = vsel %vm1032, %v1034, %v1030
    %v1036 = vmul.f32 1.0, %v1035
    %v1037 = vmul.f32 %v1036, 2.0
    %v1038 = vsub.f32 %v1037, 1.0
    %v1039 = vmul.f32 %v1036, %v983
    %1041 = vrot.lane.b32.xlu0 %v1038, 64
    %v1042 = vpop.permute.xlu0 %1041
    %v1044 = vmul.f32 %v1036, %v1042
    %1046 = vrot.lane.b32.xlu0 %v1044, 32
    %v1047 = vpop.permute.xlu0 %1046
    %v1049 = vadd.f32 %v1039, %v1047
    %v1050 = vtanh.pop %v1049
    %1052 = vrot.lane.b32.xlu0 %v1050, 64
    %v1053 = vpop.permute.xlu0 %1052
    %v1055 = vmul.f32 %v1036, %v1053
    %v1056 = vpack.c.bf16 %v1055, %v1055
    %1058 = vrot.lane.b32.xlu0 %v1056, 32
    %v1059 = vpop.permute.xlu0 %1058
    %1061 = vst.msk [vmem:[#allocation3 + $0x8] sm:$0xf] %vm287, %v1059
    %v1062 = vld [vmem:[#allocation4 + $0x18] sm:$0xff]
    %v1063 = vunpack.c.l.b16 %v1056
    %v1064 = vpack.c.b16 %v1063, %v1063
    %1065 = vrot.lane.b32.xlu0 %v1064, 32
    %v1066 = vpop.permute.xlu0 %1065
    %v1068 = vsel %vm226, %v1066, 0
    %1070 = vmatpush.bf16.msra.mxu0 0
    %1071 = vmatpush.bf16.msra.mxu0 0
    %1072 = vmatpush.bf16.msra.mxu0 0
    %1073 = vmatpush.bf16.msra.mxu0 0
    %1074 = vmatpush.bf16.msra.mxu0 0
    %1075 = vmatpush.bf16.msra.mxu0 0
    %1076 = vmatpush.bf16.msra.mxu0 %v869
    %1077 = vmatpush.bf16.msra.mxu0 %v868
    %1078 = vmatmul.bf16.gmra.mxu0 %v1068
    %v1079 = vpop.f32.mrf.mxu0
    %v1080 = vadd.f32 0.0, %v1079
    %v1081 = vpop.f32.mrf.mxu0
    %1082 = vdwg.mxu0
    %v1083 = vadd.f32 %v1062, %v1080
    %v1084 = vxor.u32 %v1083, 2147483648
    %v1085 = vmul.f32 %v1084, 1.442695
    %v1086 = vpow.pop %v1085
    %v1087 = vadd.f32 %v1086, 1.0
    %v1088 = vrcp.pop %v1087
    %v1089 = vmul.f32 %v1087, %v1088
    %v1090 = vsub.f32 1.0, %v1089
    %v1091 = vmul.f32 %v1088, %v1090
    %v1092 = vadd.f32 %v1088, %v1091
    %vm1093 = vweird.f32 %v1087
    %vm1094 = vweird.f32 %v1088
    %vm1095 = vmor %vm1093, %vm1094
    %v1096 = vsel %vm1095, %v1088, %v1092
    %v1097 = vand.u32 2147483647, %v1087
    %vm1098 = vcmp.eq.f32.partialorder %v1097, 8.507059e+37
    %v1099 = vand.u32 %v1087, 2147483648
    %v1100 = vor.u32 1.1754944e-38, %v1099
    %v1101 = vsel %vm1098, %v1100, %v1096
    %v1102 = vmul.f32 1.0, %v1101
    %v1103 = vmul.f32 %v1102, 2.0
    %v1104 = vsub.f32 %v1103, 1.0
    %v1105 = vmul.f32 %v1102, %v1049
    %1107 = vrot.lane.b32.xlu0 %v1104, 64
    %v1108 = vpop.permute.xlu0 %1107
    %v1110 = vmul.f32 %v1102, %v1108
    %1112 = vrot.lane.b32.xlu0 %v1110, 32
    %v1113 = vpop.permute.xlu0 %1112
    %v1115 = vadd.f32 %v1105, %v1113
    %v1116 = vtanh.pop %v1115
    %1118 = vrot.lane.b32.xlu0 %v1116, 64
    %v1119 = vpop.permute.xlu0 %1118
    %v1121 = vmul.f32 %v1102, %v1119
    %v1122 = vpack.c.bf16 %v1121, %v1121
    %1124 = vrot.lane.b32.xlu0 %v1122, 32
    %v1125 = vpop.permute.xlu0 %1124
    %1127 = vst.msk [vmem:[#allocation3 + $0xc] sm:$0xf] %vm287, %v1125
    %v1128 = vld [vmem:[#allocation4 + $0x20] sm:$0xff]
    %v1129 = vunpack.c.l.b16 %v1122
    %v1130 = vpack.c.b16 %v1129, %v1129
    %1131 = vrot.lane.b32.xlu0 %v1130, 32
    %v1132 = vpop.permute.xlu0 %1131
    %v1134 = vsel %vm226, %v1132, 0
    %1136 = vmatpush.bf16.msra.mxu0 0
    %1137 = vmatpush.bf16.msra.mxu0 0
    %1138 = vmatpush.bf16.msra.mxu0 0
    %1139 = vmatpush.bf16.msra.mxu0 0
    %1140 = vmatpush.bf16.msra.mxu0 0
    %1141 = vmatpush.bf16.msra.mxu0 0
    %1142 = vmatpush.bf16.msra.mxu0 %v869
    %1143 = vmatpush.bf16.msra.mxu0 %v868
    %1144 = vmatmul.bf16.gmra.mxu0 %v1134
    %v1145 = vpop.f32.mrf.mxu0
    %v1146 = vadd.f32 0.0, %v1145
    %v1147 = vpop.f32.mrf.mxu0
    %1148 = vdwg.mxu0
    %v1149 = vadd.f32 %v1128, %v1146
    %v1150 = vxor.u32 %v1149, 2147483648
    %v1151 = vmul.f32 %v1150, 1.442695
    %v1152 = vpow.pop %v1151
    %v1153 = vadd.f32 %v1152, 1.0
    %v1154 = vrcp.pop %v1153
    %v1155 = vmul.f32 %v1153, %v1154
    %v1156 = vsub.f32 1.0, %v1155
    %v1157 = vmul.f32 %v1154, %v1156
    %v1158 = vadd.f32 %v1154, %v1157
    %vm1159 = vweird.f32 %v1153
    %vm1160 = vweird.f32 %v1154
    %vm1161 = vmor %vm1159, %vm1160
    %v1162 = vsel %vm1161, %v1154, %v1158
    %v1163 = vand.u32 2147483647, %v1153
    %vm1164 = vcmp.eq.f32.partialorder %v1163, 8.507059e+37
    %v1165 = vand.u32 %v1153, 2147483648
    %v1166 = vor.u32 1.1754944e-38, %v1165
    %v1167 = vsel %vm1164, %v1166, %v1162
    %v1168 = vmul.f32 1.0, %v1167
    %v1169 = vmul.f32 %v1168, 2.0
    %v1170 = vsub.f32 %v1169, 1.0
    %v1171 = vmul.f32 %v1168, %v1115
    %1173 = vrot.lane.b32.xlu0 %v1170, 64
    %v1174 = vpop.permute.xlu0 %1173
    %v1176 = vmul.f32 %v1168, %v1174
    %1178 = vrot.lane.b32.xlu0 %v1176, 32
    %v1179 = vpop.permute.xlu0 %1178
    %v1181 = vadd.f32 %v1171, %v1179
    %v1182 = vtanh.pop %v1181
    %1184 = vrot.lane.b32.xlu0 %v1182, 64
    %v1185 = vpop.permute.xlu0 %1184
    %v1187 = vmul.f32 %v1168, %v1185
    %v1188 = vpack.c.bf16 %v1187, %v1187
    %1190 = vrot.lane.b32.xlu0 %v1188, 32
    %v1191 = vpop.permute.xlu0 %1190
    %1193 = vst.msk [vmem:[#allocation3 + $0x10] sm:$0xf] %vm287, %v1191
    %v1194 = vld [vmem:[#allocation4 + $0x28] sm:$0xff]
    %v1195 = vunpack.c.l.b16 %v1188
    %v1196 = vpack.c.b16 %v1195, %v1195
    %1197 = vrot.lane.b32.xlu0 %v1196, 32
    %v1198 = vpop.permute.xlu0 %1197
    %v1200 = vsel %vm226, %v1198, 0
    %1202 = vmatpush.bf16.msra.mxu0 0
    %1203 = vmatpush.bf16.msra.mxu0 0
    %1204 = vmatpush.bf16.msra.mxu0 0
    %1205 = vmatpush.bf16.msra.mxu0 0
    %1206 = vmatpush.bf16.msra.mxu0 0
    %1207 = vmatpush.bf16.msra.mxu0 0
    %1208 = vmatpush.bf16.msra.mxu0 %v869
    %1209 = vmatpush.bf16.msra.mxu0 %v868
    %1210 = vmatmul.bf16.gmra.mxu0 %v1200
    %v1211 = vpop.f32.mrf.mxu0
    %v1212 = vadd.f32 0.0, %v1211
    %v1213 = vpop.f32.mrf.mxu0
    %1214 = vdwg.mxu0
    %v1215 = vadd.f32 %v1194, %v1212
    %v1216 = vxor.u32 %v1215, 2147483648
    %v1217 = vmul.f32 %v1216, 1.442695
    %v1218 = vpow.pop %v1217
    %v1219 = vadd.f32 %v1218, 1.0
    %v1220 = vrcp.pop %v1219
    %v1221 = vmul.f32 %v1219, %v1220
    %v1222 = vsub.f32 1.0, %v1221
    %v1223 = vmul.f32 %v1220, %v1222
    %v1224 = vadd.f32 %v1220, %v1223
    %vm1225 = vweird.f32 %v1219
    %vm1226 = vweird.f32 %v1220
    %vm1227 = vmor %vm1225, %vm1226
    %v1228 = vsel %vm1227, %v1220, %v1224
    %v1229 = vand.u32 2147483647, %v1219
    %vm1230 = vcmp.eq.f32.partialorder %v1229, 8.507059e+37
    %v1231 = vand.u32 %v1219, 2147483648
    %v1232 = vor.u32 1.1754944e-38, %v1231
    %v1233 = vsel %vm1230, %v1232, %v1228
    %v1234 = vmul.f32 1.0, %v1233
    %v1235 = vmul.f32 %v1234, 2.0
    %v1236 = vsub.f32 %v1235, 1.0
    %v1237 = vmul.f32 %v1234, %v1181
    %1239 = vrot.lane.b32.xlu0 %v1236, 64
    %v1240 = vpop.permute.xlu0 %1239
    %v1242 = vmul.f32 %v1234, %v1240
    %1244 = vrot.lane.b32.xlu0 %v1242, 32
    %v1245 = vpop.permute.xlu0 %1244
    %v1247 = vadd.f32 %v1237, %v1245
    %v1248 = vtanh.pop %v1247
    %1250 = vrot.lane.b32.xlu0 %v1248, 64
    %v1251 = vpop.permute.xlu0 %1250
    %v1253 = vmul.f32 %v1234, %v1251
    %v1254 = vpack.c.bf16 %v1253, %v1253
    %1256 = vrot.lane.b32.xlu0 %v1254, 32
    %v1257 = vpop.permute.xlu0 %1256
    %1259 = vst.msk [vmem:[#allocation3 + $0x14] sm:$0xf] %vm287, %v1257
    %v1260 = vld [vmem:[#allocation4 + $0x30] sm:$0xff]
    %v1261 = vunpack.c.l.b16 %v1254
    %v1262 = vpack.c.b16 %v1261, %v1261
    %1263 = vrot.lane.b32.xlu0 %v1262, 32
    %v1264 = vpop.permute.xlu0 %1263
    %v1266 = vsel %vm226, %v1264, 0
    %1268 = vmatpush.bf16.msra.mxu0 0
    %1269 = vmatpush.bf16.msra.mxu0 0
    %1270 = vmatpush.bf16.msra.mxu0 0
    %1271 = vmatpush.bf16.msra.mxu0 0
    %1272 = vmatpush.bf16.msra.mxu0 0
    %1273 = vmatpush.bf16.msra.mxu0 0
    %1274 = vmatpush.bf16.msra.mxu0 %v869
    %1275 = vmatpush.bf16.msra.mxu0 %v868
    %1276 = vmatmul.bf16.gmra.mxu0 %v1266
    %v1277 = vpop.f32.mrf.mxu0
    %v1278 = vadd.f32 0.0, %v1277
    %v1279 = vpop.f32.mrf.mxu0
    %1280 = vdwg.mxu0
    %v1281 = vadd.f32 %v1260, %v1278
    %v1282 = vxor.u32 %v1281, 2147483648
    %v1283 = vmul.f32 %v1282, 1.442695
    %v1284 = vpow.pop %v1283
    %v1285 = vadd.f32 %v1284, 1.0
    %v1286 = vrcp.pop %v1285
    %v1287 = vmul.f32 %v1285, %v1286
    %v1288 = vsub.f32 1.0, %v1287
    %v1289 = vmul.f32 %v1286, %v1288
    %v1290 = vadd.f32 %v1286, %v1289
    %vm1291 = vweird.f32 %v1285
    %vm1292 = vweird.f32 %v1286
    %vm1293 = vmor %vm1291, %vm1292
    %v1294 = vsel %vm1293, %v1286, %v1290
    %v1295 = vand.u32 2147483647, %v1285
    %vm1296 = vcmp.eq.f32.partialorder %v1295, 8.507059e+37
    %v1297 = vand.u32 %v1285, 2147483648
    %v1298 = vor.u32 1.1754944e-38, %v1297
    %v1299 = vsel %vm1296, %v1298, %v1294
    %v1300 = vmul.f32 1.0, %v1299
    %v1301 = vmul.f32 %v1300, 2.0
    %v1302 = vsub.f32 %v1301, 1.0
    %v1303 = vmul.f32 %v1300, %v1247
    %1305 = vrot.lane.b32.xlu0 %v1302, 64
    %v1306 = vpop.permute.xlu0 %1305
    %v1308 = vmul.f32 %v1300, %v1306
    %1310 = vrot.lane.b32.xlu0 %v1308, 32
    %v1311 = vpop.permute.xlu0 %1310
    %v1313 = vadd.f32 %v1303, %v1311
    %v1314 = vtanh.pop %v1313
    %1316 = vrot.lane.b32.xlu0 %v1314, 64
    %v1317 = vpop.permute.xlu0 %1316
    %v1319 = vmul.f32 %v1300, %v1317
    %v1320 = vpack.c.bf16 %v1319, %v1319
    %1322 = vrot.lane.b32.xlu0 %v1320, 32
    %v1323 = vpop.permute.xlu0 %1322
    %1325 = vst.msk [vmem:[#allocation3 + $0x18] sm:$0xf] %vm287, %v1323
    %v1326 = vld [vmem:[#allocation4 + $0x38] sm:$0xff]
    %v1327 = vunpack.c.l.b16 %v1320
    %v1328 = vpack.c.b16 %v1327, %v1327
    %1329 = vrot.lane.b32.xlu0 %v1328, 32
    %v1330 = vpop.permute.xlu0 %1329
    %v1332 = vsel %vm226, %v1330, 0
    %1334 = vmatpush.bf16.msra.mxu0 0
    %1335 = vmatpush.bf16.msra.mxu0 0
    %1336 = vmatpush.bf16.msra.mxu0 0
    %1337 = vmatpush.bf16.msra.mxu0 0
    %1338 = vmatpush.bf16.msra.mxu0 0
    %1339 = vmatpush.bf16.msra.mxu0 0
    %1340 = vmatpush.bf16.msra.mxu0 %v869
    %1341 = vmatpush.bf16.msra.mxu0 %v868
    %1342 = vmatmul.bf16.gmra.mxu0 %v1332
    %v1343 = vpop.f32.mrf.mxu0
    %v1344 = vadd.f32 0.0, %v1343
    %v1345 = vpop.f32.mrf.mxu0
    %1346 = vdwg.mxu0
    %v1347 = vadd.f32 %v1326, %v1344
    %v1348 = vxor.u32 %v1347, 2147483648
    %v1349 = vmul.f32 %v1348, 1.442695
    %v1350 = vpow.pop %v1349
    %v1351 = vadd.f32 %v1350, 1.0
    %v1352 = vrcp.pop %v1351
    %v1353 = vmul.f32 %v1351, %v1352
    %v1354 = vsub.f32 1.0, %v1353
    %v1355 = vmul.f32 %v1352, %v1354
    %v1356 = vadd.f32 %v1352, %v1355
    %vm1357 = vweird.f32 %v1351
    %vm1358 = vweird.f32 %v1352
    %vm1359 = vmor %vm1357, %vm1358
    %v1360 = vsel %vm1359, %v1352, %v1356
    %v1361 = vand.u32 2147483647, %v1351
    %vm1362 = vcmp.eq.f32.partialorder %v1361, 8.507059e+37
    %v1363 = vand.u32 %v1351, 2147483648
    %v1364 = vor.u32 1.1754944e-38, %v1363
    %v1365 = vsel %vm1362, %v1364, %v1360
    %v1366 = vmul.f32 1.0, %v1365
    %v1367 = vmul.f32 %v1366, 2.0
    %v1368 = vsub.f32 %v1367, 1.0
    %v1369 = vmul.f32 %v1366, %v1313
    %1371 = vrot.lane.b32.xlu0 %v1368, 64
    %v1372 = vpop.permute.xlu0 %1371
    %v1374 = vmul.f32 %v1366, %v1372
    %1376 = vrot.lane.b32.xlu0 %v1374, 32
    %v1377 = vpop.permute.xlu0 %1376
    %v1379 = vadd.f32 %v1369, %v1377
    %v1380 = vtanh.pop %v1379
    %1382 = vrot.lane.b32.xlu0 %v1380, 64
    %v1383 = vpop.permute.xlu0 %1382
    %v1385 = vmul.f32 %v1366, %v1383
    %v1386 = vpack.c.bf16 %v1385, %v1385
    %1388 = vrot.lane.b32.xlu0 %v1386, 32
    %v1389 = vpop.permute.xlu0 %1388
    %1391 = vst.msk [vmem:[#allocation3 + $0x1c] sm:$0xf] %vm287, %v1389
    %v1392 = vld [vmem:[#allocation3] sm:$0xf]
    %v1393 = vld [vmem:[#allocation3 + $0x4] sm:$0xf]
    %v1394 = vld [vmem:[#allocation3 + $0x8] sm:$0xf]
    %v1395 = vld [vmem:[#allocation3 + $0xc] sm:$0xf]
    %v1396 = vld [vmem:[#allocation3 + $0x10] sm:$0xf]
    %v1397 = vld [vmem:[#allocation3 + $0x14] sm:$0xf]
    %v1398 = vld [vmem:[#allocation3 + $0x18] sm:$0xf]
    %v1399 = vld [vmem:[#allocation3 + $0x1c] sm:$0xf]
    %v1400 = vld [vmem:[#allocation11] sm:$0xf]
    %v1401 = vld [vmem:[#allocation11 + $0x4] sm:$0xf]
    %v1402 = vld [vmem:[#allocation11 + $0x8] sm:$0xf]
    %v1403 = vld [vmem:[#allocation11 + $0xc] sm:$0xf]
    %v1404 = vld [vmem:[%s9] sm:$0x1]
    %v1406 = vperm.slane %v1404, 0
    %v1416 = vunpack.c.l.b16 %v1392
    %v1417 = vunpack.c.l.b16 %v1393
    %v1418 = vunpack.c.l.b16 %v1394
    %v1419 = vunpack.c.l.b16 %v1395
    %v1420 = vunpack.c.l.b16 %v1396
    %v1421 = vunpack.c.l.b16 %v1397
    %v1422 = vunpack.c.l.b16 %v1398
    %v1423 = vunpack.c.l.b16 %v1399
    %v1424 = vpack.c.b16 %v1417, %v1416
    %v1425 = vpack.c.b16 %v1419, %v1418
    %v1426 = vpack.c.b16 %v1421, %v1420
    %v1427 = vpack.c.b16 %v1423, %v1422
    %v1432 = vunpack.c.l.b16 %v1400
    %v1433 = vunpack.c.l.b16 %v1401
    %v1434 = vunpack.c.l.b16 %v1402
    %v1435 = vunpack.c.l.b16 %v1403
    %v1436 = vpack.c.b16 %v1433, %v1432
    %v1437 = vpack.c.b16 %v1435, %v1434
    %v1441 = vsel %vm226, %v1424, 0
    %v1444 = vsel %vm226, %v1425, 0
    %v1447 = vsel %vm226, %v1426, 0
    %v1450 = vsel %vm226, %v1427, 0
    %1452 = vmatpush.bf16.msra.mxu0 0
    %1453 = vmatpush.bf16.msra.mxu0 0
    %1454 = vmatpush.bf16.msra.mxu0 0
    %1455 = vmatpush.bf16.msra.mxu0 0
    %1456 = vmatpush.bf16.msra.mxu0 0
    %1457 = vmatpush.bf16.msra.mxu0 0
    %1458 = vmatpush.bf16.msra.mxu0 %v1437
    %1459 = vmatpush.bf16.msra.mxu0 %v1436
    %1460 = vmatmul.bf16.gmra.mxu0 %v1441
    %v1461 = vpop.f32.mrf.mxu0
    %v1462 = vadd.f32 %v1406, %v1461
    %v1463 = vpop.f32.mrf.mxu0
    %v1464 = vadd.f32 %v1406, %v1463
    %1465 = vmatmul.bf16.gmra.mxu0 %v1444
    %v1466 = vpop.f32.mrf.mxu0
    %v1467 = vadd.f32 %v1406, %v1466
    %v1468 = vpop.f32.mrf.mxu0
    %v1469 = vadd.f32 %v1406, %v1468
    %1470 = vmatmul.bf16.gmra.mxu0 %v1447
    %v1471 = vpop.f32.mrf.mxu0
    %v1472 = vadd.f32 %v1406, %v1471
    %v1473 = vpop.f32.mrf.mxu0
    %v1474 = vadd.f32 %v1406, %v1473
    %1475 = vmatmul.bf16.gmra.mxu0 %v1450
    %v1476 = vpop.f32.mrf.mxu0
    %v1477 = vadd.f32 %v1406, %v1476
    %v1478 = vpop.f32.mrf.mxu0
    %v1479 = vadd.f32 %v1406, %v1478
    %1480 = vdwg.mxu0
    %1481 = vst [vmem:[#allocation4] sm:$0xff] %v1462
    %1482 = vst [vmem:[#allocation4 + $0x8] sm:$0xff] %v1464
    %1483 = vst [vmem:[#allocation4 + $0x10] sm:$0xff] %v1467
    %1484 = vst [vmem:[#allocation4 + $0x18] sm:$0xff] %v1469
    %1485 = vst [vmem:[#allocation4 + $0x20] sm:$0xff] %v1472
    %1486 = vst [vmem:[#allocation4 + $0x28] sm:$0xff] %v1474
    %1487 = vst [vmem:[#allocation4 + $0x30] sm:$0xff] %v1477
    %1488 = vst [vmem:[#allocation4 + $0x38] sm:$0xff] %v1479
    %v1489 = vld [vmem:[#allocation13] sm:$0xf]
    %v1490 = vld [vmem:[#allocation13 + $0x4] sm:$0xf]
    %v1491 = vld [vmem:[#allocation13 + $0x8] sm:$0xf]
    %v1492 = vld [vmem:[#allocation13 + $0xc] sm:$0xf]
    %v1493 = vld [vmem:[#allocation4] sm:$0xff]
    %v1498 = vunpack.c.l.b16 %v1489
    %v1499 = vunpack.c.l.b16 %v1490
    %v1500 = vunpack.c.l.b16 %v1491
    %v1501 = vunpack.c.l.b16 %v1492
    %v1502 = vpack.c.b16 %v1499, %v1498
    %v1503 = vpack.c.b16 %v1501, %v1500
    %1506 = vmatpush.bf16.msra.mxu0 0
    %1507 = vmatpush.bf16.msra.mxu0 0
    %1508 = vmatpush.bf16.msra.mxu0 0
    %1509 = vmatpush.bf16.msra.mxu0 0
    %1510 = vmatpush.bf16.msra.mxu0 0
    %1511 = vmatpush.bf16.msra.mxu0 0
    %1512 = vmatpush.bf16.msra.mxu0 %v1503
    %1513 = vmatpush.bf16.msra.mxu0 %v1502
    %1514 = vmatmul.bf16.gmra.mxu0 %v228
    %v1515 = vpop.f32.mrf.mxu0
    %v1516 = vadd.f32 0.0, %v1515
    %v1517 = vpop.f32.mrf.mxu0
    %1518 = vdwg.mxu0
    %v1519 = vadd.f32 %v1493, %v1516
    %v1520 = vxor.u32 %v1519, 2147483648
    %v1521 = vmul.f32 %v1520, 1.442695
    %v1522 = vpow.pop %v1521
    %v1523 = vadd.f32 %v1522, 1.0
    %v1524 = vrcp.pop %v1523
    %v1525 = vmul.f32 %v1523, %v1524
    %v1526 = vsub.f32 1.0, %v1525
    %v1527 = vmul.f32 %v1524, %v1526
    %v1528 = vadd.f32 %v1524, %v1527
    %vm1529 = vweird.f32 %v1523
    %vm1530 = vweird.f32 %v1524
    %vm1531 = vmor %vm1529, %vm1530
    %v1532 = vsel %vm1531, %v1524, %v1528
    %v1533 = vand.u32 2147483647, %v1523
    %vm1534 = vcmp.eq.f32.partialorder %v1533, 8.507059e+37
    %v1535 = vand.u32 %v1523, 2147483648
    %v1536 = vor.u32 1.1754944e-38, %v1535
    %v1537 = vsel %vm1534, %v1536, %v1532
    %v1538 = vmul.f32 1.0, %v1537
    %v1539 = vmul.f32 %v1538, 2.0
    %v1540 = vsub.f32 %v1539, 1.0
    %v1541 = vmul.f32 %v1538, 0.0
    %1543 = vrot.lane.b32.xlu0 %v1540, 64
    %v1544 = vpop.permute.xlu0 %1543
    %v1546 = vmul.f32 %v1538, %v1544
    %1548 = vrot.lane.b32.xlu0 %v1546, 32
    %v1549 = vpop.permute.xlu0 %1548
    %v1551 = vadd.f32 %v1541, %v1549
    %v1552 = vtanh.pop %v1551
    %1554 = vrot.lane.b32.xlu0 %v1552, 64
    %v1555 = vpop.permute.xlu0 %1554
    %v1557 = vmul.f32 %v1538, %v1555
    %v1558 = vld [vmem:[#allocation4 + $0x8] sm:$0xff]
    %v1559 = vpack.c.bf16 %v1557, %v1557
    %1561 = vrot.lane.b32.xlu0 %v1559, 32
    %v1562 = vpop.permute.xlu0 %1561
    %v1564 = vsel %vm226, %v1562, 0
    %1566 = vmatpush.bf16.msra.mxu0 0
    %1567 = vmatpush.bf16.msra.mxu0 0
    %1568 = vmatpush.bf16.msra.mxu0 0
    %1569 = vmatpush.bf16.msra.mxu0 0
    %1570 = vmatpush.bf16.msra.mxu0 0
    %1571 = vmatpush.bf16.msra.mxu0 0
    %1572 = vmatpush.bf16.msra.mxu0 %v1503
    %1573 = vmatpush.bf16.msra.mxu0 %v1502
    %1574 = vmatmul.bf16.gmra.mxu0 %v1564
    %v1575 = vpop.f32.mrf.mxu0
    %v1576 = vadd.f32 0.0, %v1575
    %v1577 = vpop.f32.mrf.mxu0
    %1578 = vdwg.mxu0
    %v1579 = vadd.f32 %v1558, %v1576
    %v1580 = vxor.u32 %v1579, 2147483648
    %v1581 = vmul.f32 %v1580, 1.442695
    %v1582 = vpow.pop %v1581
    %v1583 = vadd.f32 %v1582, 1.0
    %v1584 = vrcp.pop %v1583
    %v1585 = vmul.f32 %v1583, %v1584
    %v1586 = vsub.f32 1.0, %v1585
    %v1587 = vmul.f32 %v1584, %v1586
    %v1588 = vadd.f32 %v1584, %v1587
    %vm1589 = vweird.f32 %v1583
    %vm1590 = vweird.f32 %v1584
    %vm1591 = vmor %vm1589, %vm1590
    %v1592 = vsel %vm1591, %v1584, %v1588
    %v1593 = vand.u32 2147483647, %v1583
    %vm1594 = vcmp.eq.f32.partialorder %v1593, 8.507059e+37
    %v1595 = vand.u32 %v1583, 2147483648
    %v1596 = vor.u32 1.1754944e-38, %v1595
    %v1597 = vsel %vm1594, %v1596, %v1592
    %v1598 = vmul.f32 1.0, %v1597
    %v1599 = vmul.f32 %v1598, 2.0
    %v1600 = vsub.f32 %v1599, 1.0
    %v1601 = vmul.f32 %v1598, %v1551
    %1603 = vrot.lane.b32.xlu0 %v1600, 64
    %v1604 = vpop.permute.xlu0 %1603
    %v1606 = vmul.f32 %v1598, %v1604
    %1608 = vrot.lane.b32.xlu0 %v1606, 32
    %v1609 = vpop.permute.xlu0 %1608
    %v1611 = vadd.f32 %v1601, %v1609
    %v1612 = vtanh.pop %v1611
    %1614 = vrot.lane.b32.xlu0 %v1612, 64
    %v1615 = vpop.permute.xlu0 %1614
    %v1617 = vmul.f32 %v1598, %v1615
    %v1618 = vld [vmem:[#allocation4 + $0x10] sm:$0xff]
    %v1619 = vpack.c.bf16 %v1617, %v1617
    %1621 = vrot.lane.b32.xlu0 %v1619, 32
    %v1622 = vpop.permute.xlu0 %1621
    %v1624 = vsel %vm226, %v1622, 0
    %1626 = vmatpush.bf16.msra.mxu0 0
    %1627 = vmatpush.bf16.msra.mxu0 0
    %1628 = vmatpush.bf16.msra.mxu0 0
    %1629 = vmatpush.bf16.msra.mxu0 0
    %1630 = vmatpush.bf16.msra.mxu0 0
    %1631 = vmatpush.bf16.msra.mxu0 0
    %1632 = vmatpush.bf16.msra.mxu0 %v1503
    %1633 = vmatpush.bf16.msra.mxu0 %v1502
    %1634 = vmatmul.bf16.gmra.mxu0 %v1624
    %v1635 = vpop.f32.mrf.mxu0
    %v1636 = vadd.f32 0.0, %v1635
    %v1637 = vpop.f32.mrf.mxu0
    %1638 = vdwg.mxu0
    %v1639 = vadd.f32 %v1618, %v1636
    %v1640 = vxor.u32 %v1639, 2147483648
    %v1641 = vmul.f32 %v1640, 1.442695
    %v1642 = vpow.pop %v1641
    %v1643 = vadd.f32 %v1642, 1.0
    %v1644 = vrcp.pop %v1643
    %v1645 = vmul.f32 %v1643, %v1644
    %v1646 = vsub.f32 1.0, %v1645
    %v1647 = vmul.f32 %v1644, %v1646
    %v1648 = vadd.f32 %v1644, %v1647
    %vm1649 = vweird.f32 %v1643
    %vm1650 = vweird.f32 %v1644
    %vm1651 = vmor %vm1649, %vm1650
    %v1652 = vsel %vm1651, %v1644, %v1648
    %v1653 = vand.u32 2147483647, %v1643
    %vm1654 = vcmp.eq.f32.partialorder %v1653, 8.507059e+37
    %v1655 = vand.u32 %v1643, 2147483648
    %v1656 = vor.u32 1.1754944e-38, %v1655
    %v1657 = vsel %vm1654, %v1656, %v1652
    %v1658 = vmul.f32 1.0, %v1657
    %v1659 = vmul.f32 %v1658, 2.0
    %v1660 = vsub.f32 %v1659, 1.0
    %v1661 = vmul.f32 %v1658, %v1611
    %1663 = vrot.lane.b32.xlu0 %v1660, 64
    %v1664 = vpop.permute.xlu0 %1663
    %v1666 = vmul.f32 %v1658, %v1664
    %1668 = vrot.lane.b32.xlu0 %v1666, 32
    %v1669 = vpop.permute.xlu0 %1668
    %v1671 = vadd.f32 %v1661, %v1669
    %v1672 = vtanh.pop %v1671
    %1674 = vrot.lane.b32.xlu0 %v1672, 64
    %v1675 = vpop.permute.xlu0 %1674
    %v1677 = vmul.f32 %v1658, %v1675
    %v1678 = vld [vmem:[#allocation4 + $0x18] sm:$0xff]
    %v1679 = vpack.c.bf16 %v1677, %v1677
    %1681 = vrot.lane.b32.xlu0 %v1679, 32
    %v1682 = vpop.permute.xlu0 %1681
    %v1684 = vsel %vm226, %v1682, 0
    %1686 = vmatpush.bf16.msra.mxu0 0
    %1687 = vmatpush.bf16.msra.mxu0 0
    %1688 = vmatpush.bf16.msra.mxu0 0
    %1689 = vmatpush.bf16.msra.mxu0 0
    %1690 = vmatpush.bf16.msra.mxu0 0
    %1691 = vmatpush.bf16.msra.mxu0 0
    %1692 = vmatpush.bf16.msra.mxu0 %v1503
    %1693 = vmatpush.bf16.msra.mxu0 %v1502
    %1694 = vmatmul.bf16.gmra.mxu0 %v1684
    %v1695 = vpop.f32.mrf.mxu0
    %v1696 = vadd.f32 0.0, %v1695
    %v1697 = vpop.f32.mrf.mxu0
    %1698 = vdwg.mxu0
    %v1699 = vadd.f32 %v1678, %v1696
    %v1700 = vxor.u32 %v1699, 2147483648
    %v1701 = vmul.f32 %v1700, 1.442695
    %v1702 = vpow.pop %v1701
    %v1703 = vadd.f32 %v1702, 1.0
    %v1704 = vrcp.pop %v1703
    %v1705 = vmul.f32 %v1703, %v1704
    %v1706 = vsub.f32 1.0, %v1705
    %v1707 = vmul.f32 %v1704, %v1706
    %v1708 = vadd.f32 %v1704, %v1707
    %vm1709 = vweird.f32 %v1703
    %vm1710 = vweird.f32 %v1704
    %vm1711 = vmor %vm1709, %vm1710
    %v1712 = vsel %vm1711, %v1704, %v1708
    %v1713 = vand.u32 2147483647, %v1703
    %vm1714 = vcmp.eq.f32.partialorder %v1713, 8.507059e+37
    %v1715 = vand.u32 %v1703, 2147483648
    %v1716 = vor.u32 1.1754944e-38, %v1715
    %v1717 = vsel %vm1714, %v1716, %v1712
    %v1718 = vmul.f32 1.0, %v1717
    %v1719 = vmul.f32 %v1718, 2.0
    %v1720 = vsub.f32 %v1719, 1.0
    %v1721 = vmul.f32 %v1718, %v1671
    %1723 = vrot.lane.b32.xlu0 %v1720, 64
    %v1724 = vpop.permute.xlu0 %1723
    %v1726 = vmul.f32 %v1718, %v1724
    %1728 = vrot.lane.b32.xlu0 %v1726, 32
    %v1729 = vpop.permute.xlu0 %1728
    %v1731 = vadd.f32 %v1721, %v1729
    %v1732 = vtanh.pop %v1731
    %1734 = vrot.lane.b32.xlu0 %v1732, 64
    %v1735 = vpop.permute.xlu0 %1734
    %v1737 = vmul.f32 %v1718, %v1735
    %v1738 = vld [vmem:[#allocation4 + $0x20] sm:$0xff]
    %v1739 = vpack.c.bf16 %v1737, %v1737
    %1741 = vrot.lane.b32.xlu0 %v1739, 32
    %v1742 = vpop.permute.xlu0 %1741
    %v1744 = vsel %vm226, %v1742, 0
    %1746 = vmatpush.bf16.msra.mxu0 0
    %1747 = vmatpush.bf16.msra.mxu0 0
    %1748 = vmatpush.bf16.msra.mxu0 0
    %1749 = vmatpush.bf16.msra.mxu0 0
    %1750 = vmatpush.bf16.msra.mxu0 0
    %1751 = vmatpush.bf16.msra.mxu0 0
    %1752 = vmatpush.bf16.msra.mxu0 %v1503
    %1753 = vmatpush.bf16.msra.mxu0 %v1502
    %1754 = vmatmul.bf16.gmra.mxu0 %v1744
    %v1755 = vpop.f32.mrf.mxu0
    %v1756 = vadd.f32 0.0, %v1755
    %v1757 = vpop.f32.mrf.mxu0
    %1758 = vdwg.mxu0
    %v1759 = vadd.f32 %v1738, %v1756
    %v1760 = vxor.u32 %v1759, 2147483648
    %v1761 = vmul.f32 %v1760, 1.442695
    %v1762 = vpow.pop %v1761
    %v1763 = vadd.f32 %v1762, 1.0
    %v1764 = vrcp.pop %v1763
    %v1765 = vmul.f32 %v1763, %v1764
    %v1766 = vsub.f32 1.0, %v1765
    %v1767 = vmul.f32 %v1764, %v1766
    %v1768 = vadd.f32 %v1764, %v1767
    %vm1769 = vweird.f32 %v1763
    %vm1770 = vweird.f32 %v1764
    %vm1771 = vmor %vm1769, %vm1770
    %v1772 = vsel %vm1771, %v1764, %v1768
    %v1773 = vand.u32 2147483647, %v1763
    %vm1774 = vcmp.eq.f32.partialorder %v1773, 8.507059e+37
    %v1775 = vand.u32 %v1763, 2147483648
    %v1776 = vor.u32 1.1754944e-38, %v1775
    %v1777 = vsel %vm1774, %v1776, %v1772
    %v1778 = vmul.f32 1.0, %v1777
    %v1779 = vmul.f32 %v1778, 2.0
    %v1780 = vsub.f32 %v1779, 1.0
    %v1781 = vmul.f32 %v1778, %v1731
    %1783 = vrot.lane.b32.xlu0 %v1780, 64
    %v1784 = vpop.permute.xlu0 %1783
    %v1786 = vmul.f32 %v1778, %v1784
    %1788 = vrot.lane.b32.xlu0 %v1786, 32
    %v1789 = vpop.permute.xlu0 %1788
    %v1791 = vadd.f32 %v1781, %v1789
    %v1792 = vtanh.pop %v1791
    %1794 = vrot.lane.b32.xlu0 %v1792, 64
    %v1795 = vpop.permute.xlu0 %1794
    %v1797 = vmul.f32 %v1778, %v1795
    %v1798 = vld [vmem:[#allocation4 + $0x28] sm:$0xff]
    %v1799 = vpack.c.bf16 %v1797, %v1797
    %1801 = vrot.lane.b32.xlu0 %v1799, 32
    %v1802 = vpop.permute.xlu0 %1801
    %v1804 = vsel %vm226, %v1802, 0
    %1806 = vmatpush.bf16.msra.mxu0 0
    %1807 = vmatpush.bf16.msra.mxu0 0
    %1808 = vmatpush.bf16.msra.mxu0 0
    %1809 = vmatpush.bf16.msra.mxu0 0
    %1810 = vmatpush.bf16.msra.mxu0 0
    %1811 = vmatpush.bf16.msra.mxu0 0
    %1812 = vmatpush.bf16.msra.mxu0 %v1503
    %1813 = vmatpush.bf16.msra.mxu0 %v1502
    %1814 = vmatmul.bf16.gmra.mxu0 %v1804
    %v1815 = vpop.f32.mrf.mxu0
    %v1816 = vadd.f32 0.0, %v1815
    %v1817 = vpop.f32.mrf.mxu0
    %1818 = vdwg.mxu0
    %v1819 = vadd.f32 %v1798, %v1816
    %v1820 = vxor.u32 %v1819, 2147483648
    %v1821 = vmul.f32 %v1820, 1.442695
    %v1822 = vpow.pop %v1821
    %v1823 = vadd.f32 %v1822, 1.0
    %v1824 = vrcp.pop %v1823
    %v1825 = vmul.f32 %v1823, %v1824
    %v1826 = vsub.f32 1.0, %v1825
    %v1827 = vmul.f32 %v1824, %v1826
    %v1828 = vadd.f32 %v1824, %v1827
    %vm1829 = vweird.f32 %v1823
    %vm1830 = vweird.f32 %v1824
    %vm1831 = vmor %vm1829, %vm1830
    %v1832 = vsel %vm1831, %v1824, %v1828
    %v1833 = vand.u32 2147483647, %v1823
    %vm1834 = vcmp.eq.f32.partialorder %v1833, 8.507059e+37
    %v1835 = vand.u32 %v1823, 2147483648
    %v1836 = vor.u32 1.1754944e-38, %v1835
    %v1837 = vsel %vm1834, %v1836, %v1832
    %v1838 = vmul.f32 1.0, %v1837
    %v1839 = vmul.f32 %v1838, 2.0
    %v1840 = vsub.f32 %v1839, 1.0
    %v1841 = vmul.f32 %v1838, %v1791
    %1843 = vrot.lane.b32.xlu0 %v1840, 64
    %v1844 = vpop.permute.xlu0 %1843
    %v1846 = vmul.f32 %v1838, %v1844
    %1848 = vrot.lane.b32.xlu0 %v1846, 32
    %v1849 = vpop.permute.xlu0 %1848
    %v1851 = vadd.f32 %v1841, %v1849
    %v1852 = vtanh.pop %v1851
    %1854 = vrot.lane.b32.xlu0 %v1852, 64
    %v1855 = vpop.permute.xlu0 %1854
    %v1857 = vmul.f32 %v1838, %v1855
    %v1858 = vld [vmem:[#allocation4 + $0x30] sm:$0xff]
    %v1859 = vpack.c.bf16 %v1857, %v1857
    %1861 = vrot.lane.b32.xlu0 %v1859, 32
    %v1862 = vpop.permute.xlu0 %1861
    %v1864 = vsel %vm226, %v1862, 0
    %1866 = vmatpush.bf16.msra.mxu0 0
    %1867 = vmatpush.bf16.msra.mxu0 0
    %1868 = vmatpush.bf16.msra.mxu0 0
    %1869 = vmatpush.bf16.msra.mxu0 0
    %1870 = vmatpush.bf16.msra.mxu0 0
    %1871 = vmatpush.bf16.msra.mxu0 0
    %1872 = vmatpush.bf16.msra.mxu0 %v1503
    %1873 = vmatpush.bf16.msra.mxu0 %v1502
    %1874 = vmatmul.bf16.gmra.mxu0 %v1864
    %v1875 = vpop.f32.mrf.mxu0
    %v1876 = vadd.f32 0.0, %v1875
    %v1877 = vpop.f32.mrf.mxu0
    %1878 = vdwg.mxu0
    %v1879 = vadd.f32 %v1858, %v1876
    %v1880 = vxor.u32 %v1879, 2147483648
    %v1881 = vmul.f32 %v1880, 1.442695
    %v1882 = vpow.pop %v1881
    %v1883 = vadd.f32 %v1882, 1.0
    %v1884 = vrcp.pop %v1883
    %v1885 = vmul.f32 %v1883, %v1884
    %v1886 = vsub.f32 1.0, %v1885
    %v1887 = vmul.f32 %v1884, %v1886
    %v1888 = vadd.f32 %v1884, %v1887
    %vm1889 = vweird.f32 %v1883
    %vm1890 = vweird.f32 %v1884
    %vm1891 = vmor %vm1889, %vm1890
    %v1892 = vsel %vm1891, %v1884, %v1888
    %v1893 = vand.u32 2147483647, %v1883
    %vm1894 = vcmp.eq.f32.partialorder %v1893, 8.507059e+37
    %v1895 = vand.u32 %v1883, 2147483648
    %v1896 = vor.u32 1.1754944e-38, %v1895
    %v1897 = vsel %vm1894, %v1896, %v1892
    %v1898 = vmul.f32 1.0, %v1897
    %v1899 = vmul.f32 %v1898, 2.0
    %v1900 = vsub.f32 %v1899, 1.0
    %v1901 = vmul.f32 %v1898, %v1851
    %1903 = vrot.lane.b32.xlu0 %v1900, 64
    %v1904 = vpop.permute.xlu0 %1903
    %v1906 = vmul.f32 %v1898, %v1904
    %1908 = vrot.lane.b32.xlu0 %v1906, 32
    %v1909 = vpop.permute.xlu0 %1908
    %v1911 = vadd.f32 %v1901, %v1909
    %v1912 = vtanh.pop %v1911
    %1914 = vrot.lane.b32.xlu0 %v1912, 64
    %v1915 = vpop.permute.xlu0 %1914
    %v1917 = vmul.f32 %v1898, %v1915
    %v1918 = vld [vmem:[#allocation4 + $0x38] sm:$0xff]
    %v1919 = vpack.c.bf16 %v1917, %v1917
    %1921 = vrot.lane.b32.xlu0 %v1919, 32
    %v1922 = vpop.permute.xlu0 %1921
    %v1924 = vsel %vm226, %v1922, 0
    %1926 = vmatpush.bf16.msra.mxu0 0
    %1927 = vmatpush.bf16.msra.mxu0 0
    %1928 = vmatpush.bf16.msra.mxu0 0
    %1929 = vmatpush.bf16.msra.mxu0 0
    %1930 = vmatpush.bf16.msra.mxu0 0
    %1931 = vmatpush.bf16.msra.mxu0 0
    %1932 = vmatpush.bf16.msra.mxu0 %v1503
    %1933 = vmatpush.bf16.msra.mxu0 %v1502
    %1934 = vmatmul.bf16.gmra.mxu0 %v1924
    %v1935 = vpop.f32.mrf.mxu0
    %v1936 = vadd.f32 0.0, %v1935
    %v1937 = vpop.f32.mrf.mxu0
    %1938 = vdwg.mxu0
    %v1939 = vadd.f32 %v1918, %v1936
    %v1940 = vxor.u32 %v1939, 2147483648
    %v1941 = vmul.f32 %v1940, 1.442695
    %v1942 = vpow.pop %v1941
    %v1943 = vadd.f32 %v1942, 1.0
    %v1944 = vrcp.pop %v1943
    %v1945 = vmul.f32 %v1943, %v1944
    %v1946 = vsub.f32 1.0, %v1945
    %v1947 = vmul.f32 %v1944, %v1946
    %v1948 = vadd.f32 %v1944, %v1947
    %vm1949 = vweird.f32 %v1943
    %vm1950 = vweird.f32 %v1944
    %vm1951 = vmor %vm1949, %vm1950
    %v1952 = vsel %vm1951, %v1944, %v1948
    %v1953 = vand.u32 2147483647, %v1943
    %vm1954 = vcmp.eq.f32.partialorder %v1953, 8.507059e+37
    %v1955 = vand.u32 %v1943, 2147483648
    %v1956 = vor.u32 1.1754944e-38, %v1955
    %v1957 = vsel %vm1954, %v1956, %v1952
    %v1958 = vmul.f32 1.0, %v1957
    %v1959 = vmul.f32 %v1958, 2.0
    %v1960 = vsub.f32 %v1959, 1.0
    %v1961 = vmul.f32 %v1958, %v1911
    %1963 = vrot.lane.b32.xlu0 %v1960, 64
    %v1964 = vpop.permute.xlu0 %1963
    %v1966 = vmul.f32 %v1958, %v1964
    %1968 = vrot.lane.b32.xlu0 %v1966, 32
    %v1969 = vpop.permute.xlu0 %1968
    %v1971 = vadd.f32 %v1961, %v1969
    %v1972 = vtanh.pop %v1971
    %1974 = vrot.lane.b32.xlu0 %v1972, 64
    %v1975 = vpop.permute.xlu0 %1974
    %v1977 = vmul.f32 %v1958, %v1975
    %v1978 = vpack.c.bf16 %v1977, %v1977
    %v1979 = vld [vmem:[#allocation14] sm:$0xf]
    %v1980 = vld [vmem:[#allocation14 + $0x4] sm:$0xf]
    %v1981 = vld [vmem:[#allocation14 + $0x8] sm:$0xf]
    %v1982 = vld [vmem:[#allocation14 + $0xc] sm:$0xf]
    %v1983 = vld [vmem:[%s11] sm:$0x1]
    %v1985 = vperm.slane %v1983, 0
    %1988 = vrot.lane.b32.xlu0 %v1978, 32
    %v1989 = vpop.permute.xlu0 %1988
    %v1994 = vunpack.c.l.b16 %v1979
    %v1995 = vunpack.c.l.b16 %v1980
    %v1996 = vunpack.c.l.b16 %v1981
    %v1997 = vunpack.c.l.b16 %v1982
    %v1998 = vpack.c.b16 %v1995, %v1994
    %v1999 = vpack.c.b16 %v1997, %v1996
    %v2003 = vsel %vm226, %v1989, 0
    %2005 = vmatpush.bf16.msra.mxu0 0
    %2006 = vmatpush.bf16.msra.mxu0 0
    %2007 = vmatpush.bf16.msra.mxu0 0
    %2008 = vmatpush.bf16.msra.mxu0 0
    %2009 = vmatpush.bf16.msra.mxu0 0
    %2010 = vmatpush.bf16.msra.mxu0 0
    %2011 = vmatpush.bf16.msra.mxu0 %v1999
    %2012 = vmatpush.bf16.msra.mxu0 %v1998
    %2013 = vmatmul.bf16.gmra.mxu0 %v2003
    %v2014 = vpop.f32.mrf.mxu0
    %v2015 = vadd.f32 %v1985, %v2014
    %v2016 = vpop.f32.mrf.mxu0
    %2017 = vdwg.mxu0
    %v2018 = vmul.f32 %v2015, %v2015
    %2019 = vadd.xlane.f32.xlu0 %v2018
    %v2020 = vpop.xlane.xlu0 %2019
    %v2021 = vrsqrt.pop %v2020
    %v2022 = vmul.f32 %v2021, %v2020
    %v2023 = vmul.f32 %v2022, %v2021
    %v2024 = vmul.f32 0.5, %v2023
    %v2025 = vsub.f32 1.5, %v2024
    %v2026 = vmul.f32 %v2021, %v2025
    %vm2027 = vweird.f32 %v2020
    %vm2028 = vweird.f32 %v2021
    %vm2029 = vmor %vm2027, %vm2028
    %v2030 = vsel %vm2029, %v2021, %v2026
    %v2031 = vmul.f32 %v2030, 0.16666667
    %s2032 = smul.u32 %s135, 8
    %v2033 = vlaneseq
    %v2034 = vshrl.u32 %v2033, 7
    %v2035 = vstv %s2032
    %v2036 = vadd.s32 %v2035, %v2034
    %vm2037 = vcmp.lt.s32.totalorder %v2036, 6
    %v2038 = vmul.f32 %v2015, %v2031
    %v2039 = vsel %vm2037, 1, 0
    %vm2040 = vcmp.eq.s32.totalorder %v2039, 1
    %v2041 = vsel %vm2040, %v2038, 0.0
    %v2042 = vrot.slane %v2041, 4
    %v2043 = vadd.f32 %v2041, %v2042
    %v2044 = vrot.slane %v2043, 2
    %v2045 = vadd.f32 %v2043, %v2044
    %v2046 = vrot.slane %v2045, 1
    %v2047 = vadd.f32 %v2045, %v2046
    %p2048 = scmp.eq.s32.totalorder 0, 0
    // Predicated region
    $region74: #{tpu_custom_call.1} parent=1 // pred_check
      %p2049 = pneg %p2048
    $region75: #{tpu_custom_call.1} parent=1 // pred_check_branch
      %2051 = sbr.rel (%p2049) target = $region77
    $region76: #{tpu_custom_call.1} parent=1 // pred_region
      %2052 = vst [vmem:[#allocation16] sm:$0x1] 0.0
    $region77: #{tpu_custom_call.1} parent=1 // pred_fallthru
      _
    %v2053 = vld [vmem:[#allocation16] sm:$0x1]
    %v2054 = vadd.f32 %v2053, %v2047
    %2055 = vst [vmem:[#allocation16] sm:$0x1] %v2054
    // Predicated region
    $region78: #{tpu_custom_call.1} parent=1 // pred_check
      _
    $region79: #{tpu_custom_call.1} parent=1 // pred_check_branch
      %2057 = sbr.rel (0) target = $region81
    $region80: #{tpu_custom_call.1} parent=1 // pred_region
      %2059 = vsyncadd [#allocation7], 0
      %s2061 = sshll.u32 [#allocation16], 4
      %s2062 = int_to_ptr.vmem [resolvable:$true] %s2061
      %s2063 = sshll.u32 %s12, 4
      %s2064 = int_to_ptr.hbm [resolvable:$true] %s2063
      %2066 = dma.vmem_to_hbm [thread:$0]  %s2062, 16, %s2064, [#allocation7]
    $region81: #{tpu_custom_call.1} parent=1 // pred_fallthru
      _
    // Predicated region
    $region82: #{tpu_custom_call.1} parent=1 // pred_check
      _
    $region83: #{tpu_custom_call.1} parent=1 // pred_check_branch
      %2068 = sbr.rel (0) target = $region85
    $region84: #{tpu_custom_call.1} parent=1 // pred_region
      %2070 = dma.done [#allocation7], 16
    $region85: #{tpu_custom_call.1} parent=1 // pred_fallthru
      _
    %2071 = vsyncpa [#allocation6], 1
    %2072 = vsyncpa [#allocation9], 1
    %2073 = vsyncpa [#allocation12], 1
    %2074 = vsyncpa [#allocation15], 1
    %2075 = vsyncpa [#allocation7], 1

</llo_original>
